<compile_context>
chip_gen: v6e
topology: v6e:2x2x1
jax: 0.10.0
libtpu: 0.0.40
codegen_flags: <defaults>
</compile_context>

<pallas_src>
import jax
import jax.numpy as jnp
from jax.experimental import pallas as pl
from jax.experimental.pallas import tpu as pltpu

EPS = 1e-5
LANE = 128


def _round_up(v, m):
    return (v + m - 1) // m * m


def _vmem_plan():
    """Return (vmem_limit_bytes, max_row_tile), generation aware."""
    try:
        phys = int(pltpu.get_tpu_info().vmem_capacity_bytes)
    except Exception:
        phys = 64 * 1024 * 1024                 # conservative (v7x-class)
    if phys > 96 * 1024 * 1024:                 # v5e / v6e: 128 MiB physical
        return 96 * 1024 * 1024, 2048
    return 32 * 1024 * 1024, 512                # v7x: 64 MiB physical VMEM


def _pick_row_tile(M, Cp, Pp, budget, tm_max):
    """Largest row tile that divides M and fits the per-step VMEM budget."""
    per_row = max(2 * (4 * Cp + 2 * Pp),        # K1: x f32 in, y1 bf16 out
                  2 * (2 * Pp + 2 * Cp),        # K3: y2 bf16 in, y3 bf16 out
                  2 * (2 * Cp + 4 * Cp + 4 * Cp))   # K4: y3 bf16 + x f32 + out f32
    weight_bytes = 4 * Cp * Pp                  # bf16 weights, double-buffered
    avail = max(budget * 3 // 4 - weight_bytes, 8 * per_row)
    cap = min(tm_max, max(8, avail // per_row))
    for t in (2048, 1024, 512, 256, 128, 64, 32, 16, 8):
        if t <= cap and M % t == 0:
            return t
    # TODO(synk): for M not divisible by 8, use a pl.cdiv grid with a masked
    # last tile (padded rows must be excluded from BN sum/sumsq and count).
    return M


def _pick_img_tile(N, H, W, Pp, budget):
    """Images per K2 grid step: reach >=256 matmul rows but stay in VMEM."""
    HW = H * W

    def fits(b):
        m2 = b * HW
        est = 2 * (m2 * Pp * 2)                 # y1 in (bf16), double-buffered
        est += 2 * (m2 * Pp * 2)                # y2 out (bf16), double-buffered
        est += b * (H + 2) * (W + 2) * Pp * 2   # padded bf16 copy
        est += m2 * 9 * Pp * 2                  # im2col patch slab (bf16)
        est += m2 * Pp * 4                      # f32 accumulator
        est += 2 * (9 * Pp * Pp * 2)            # weights, double-buffered
        return est <= budget * 3 // 4

    divs = [b for b in range(1, N + 1) if N % b == 0 and fits(b)]
    if not divs:
        return 1
    big = [b for b in divs if b * HW >= 256]
    return min(big) if big else max(divs)


def _maybe_pad2d(a, rows, cols):
    r, c = a.shape
    if r == rows and c == cols:
        return a
    return jnp.pad(a, ((0, rows - r), (0, cols - c)))


def _cparams(vmem_limit):
    return pltpu.CompilerParams(
        dimension_semantics=("parallel",),
        vmem_limit_bytes=vmem_limit)


# --------------------------------------------------------------------------
# Kernels
# --------------------------------------------------------------------------

def _conv1_kernel(x_ref, w_ref, y_ref, sum_ref, sq_ref):
    # conv1 (1x1) == channel matmul.  bf16 operands, f32 accumulation.
    y = jnp.dot(x_ref[...].astype(jnp.bfloat16), w_ref[...],
                preferred_element_type=jnp.float32)
    # BN partials from the f32 accumulator, activation stored as bf16.
    sum_ref[...] = jnp.sum(y, axis=0).reshape(1, 1, -1)
    sq_ref[...] = jnp.sum(y * y, axis=0).reshape(1, 1, -1)
    y_ref[...] = y.astype(y_ref.dtype)


def _conv2_kernel(y1_ref, s1_ref, b1_ref, w2_ref, y2_ref, sum_ref, sq_ref):
    # B images per grid step: block (B, H, W, Pp).  3x3 SAME conv as a single
    # im2col matmul (contraction depth 9*Pp) so accumulation stays in the MXU.
    B, H, W, Pp = y1_ref.shape
    BHW = B * H * W
    # bn1 + relu (affine in f32, cast once to bf16 for the MXU)
    y1n = jnp.maximum(y1_ref[...] * s1_ref[...] + b1_ref[...], 0.0)
    y1n = y1n.astype(jnp.bfloat16)
    # TODO(synk): replace pad + misaligned slices with H-halo tiling and
    # pltpu.roll + edge masks for very large spatial maps (frees vld/vst).
    ypad = jnp.pad(y1n, ((0, 0), (1, 1), (1, 1), (0, 0)))
    patches = [ypad[:, dh:dh + H, dw:dw + W, :].reshape(BHW, Pp)
               for dh in range(3) for dw in range(3)]
    im2col = jnp.concatenate(patches, axis=-1)                 # (BHW, 9*Pp)
    acc = jnp.dot(im2col, w2_ref[...],
                  preferred_element_type=jnp.float32)          # (BHW, Pp) f32
    sum_ref[...] = jnp.sum(acc, axis=0).reshape(1, 1, Pp)
    sq_ref[...] = jnp.sum(acc * acc, axis=0).reshape(1, 1, Pp)
    y2_ref[...] = acc.reshape(B, H, W, Pp).astype(y2_ref.dtype)


def _conv3_kernel(y2_ref, s2_ref, b2_ref, w_ref, y3_ref, sum_ref, sq_ref):
    # bn2 + relu + conv3 (1x1 channel matmul)
    y2n = jnp.maximum(y2_ref[...] * s2_ref[...] + b2_ref[...], 0.0)
    y3 = jnp.dot(y2n.astype(jnp.bfloat16), w_ref[...],
                 preferred_element_type=jnp.float32)
    sum_ref[...] = jnp.sum(y3, axis=0).reshape(1, 1, -1)
    sq_ref[...] = jnp.sum(y3 * y3, axis=0).reshape(1, 1, -1)
    y3_ref[...] = y3.astype(y3_ref.dtype)


def _bn_residual_relu_kernel(y3_ref, s3_ref, b3_ref, x_ref, o_ref):
    y3n = y3_ref[...] * s3_ref[...] + b3_ref[...]                  # bn3 (f32)
    o_ref[...] = jnp.maximum(y3n + x_ref[...], 0.0)                # +res, relu


# --------------------------------------------------------------------------
# Wrapper
# --------------------------------------------------------------------------

def _bn_scale_bias(sum_part, sq_part, gamma, beta, count):
    """Fold per-tile sum / sum-of-squares partials into BN scale/bias (1, C)."""
    total = jnp.sum(sum_part, axis=0)          # (1, C)
    total_sq = jnp.sum(sq_part, axis=0)        # (1, C)
    mean = total / count
    var = jnp.maximum(total_sq / count - mean * mean, 0.0)   # biased variance
    inv = jax.lax.rsqrt(var + EPS)
    scale = gamma * inv
    bias = beta - mean * scale
    return scale, bias


def bottleneck_forward(x_nhwc, params):
    """x_nhwc: (N, H, W, Cin) float32.  Returns (N, H, W, Cout) float32."""
    w1, w2, w3, g1, b1, g2, b2, g3, b3 = params
    N, H, W, Cin = x_nhwc.shape
    P = w1.shape[1]
    Cout = w3.shape[1]
    assert Cin == Cout, "downsample=None requires inplanes == planes*expansion"

    vmem_limit, tm_max = _vmem_plan()

    # Lane-dense channel padding (skipped when already a multiple of 128).
    # Padded gamma/beta are zero so padded channels stay exactly zero and do
    # not affect BN statistics of real channels.
    Cp = _round_up(Cin, LANE)
    Pp = _round_up(P, LANE)
    M = N * H * W
    TM = _pick_row_tile(M, Cp, Pp, vmem_limit, tm_max)
    nt = M // TM
    BI = _pick_img_tile(N, H, W, Pp, vmem_limit)
    ni = N // BI
    f32 = jnp.float32
    bf16 = jnp.bfloat16

    x2d = _maybe_pad2d(x_nhwc.reshape(M, Cin), M, Cp)
    w1p = _maybe_pad2d(w1, Cp, Pp).astype(bf16)
    if (Pp - P) != 0:
        w2p = jnp.pad(w2, ((0, 0), (0, 0), (0, Pp - P), (0, Pp - P)))
    else:
        w2p = w2
    w2p = w2p.reshape(9 * Pp, Pp).astype(bf16)          # tap-major rows
    w3p = _maybe_pad2d(w3, Pp, Cp).astype(bf16)
    g1p = _maybe_pad2d(g1, 1, Pp)
    b1p = _maybe_pad2d(b1, 1, Pp)
    g2p = _maybe_pad2d(g2, 1, Pp)
    b2p = _maybe_pad2d(b2, 1, Pp)
    g3p = _maybe_pad2d(g3, 1, Cp)
    b3p = _maybe_pad2d(b3, 1, Cp)

    row_spec_c = pl.BlockSpec((TM, Cp), lambda i: (i, 0))
    row_spec_p = pl.BlockSpec((TM, Pp), lambda i: (i, 0))
    vec_spec_p = pl.BlockSpec((1, Pp), lambda i: (0, 0))
    vec_spec_c = pl.BlockSpec((1, Cp), lambda i: (0, 0))
    stat_spec_p = pl.BlockSpec((1, 1, Pp), lambda i: (i, 0, 0))
    stat_spec_c = pl.BlockSpec((1, 1, Cp), lambda i: (i, 0, 0))
    # TODO(synk): on v7x, single-buffer the grid-invariant weight blocks
    # (pipeline_mode=pl.Buffered(1)) to free VMEM for larger activation tiles.

    # ---- K1: conv1 (1x1) + bn1 partial stats, tiled over rows ----
    y1_raw, s1, q1 = pl.pallas_call(
        _conv1_kernel,
        grid=(nt,),
        in_specs=[row_spec_c, pl.BlockSpec((Cp, Pp), lambda i: (0, 0))],
        out_specs=(row_spec_p, stat_spec_p, stat_spec_p),
        out_shape=(jax.ShapeDtypeStruct((M, Pp), bf16),
                   jax.ShapeDtypeStruct((nt, 1, Pp), f32),
                   jax.ShapeDtypeStruct((nt, 1, Pp), f32)),
        compiler_params=_cparams(vmem_limit),
    )(x2d, w1p)
    scale1, bias1 = _bn_scale_bias(s1, q1, g1p, b1p, M)

    # ---- K2: bn1 + relu + conv2 (3x3 im2col) + bn2 partials, BI images/step ----
    y1_4d = y1_raw.reshape(N, H, W, Pp)
    img_spec = pl.BlockSpec((BI, H, W, Pp), lambda n: (n, 0, 0, 0))
    y2_raw, s2, q2 = pl.pallas_call(
        _conv2_kernel,
        grid=(ni,),
        in_specs=[img_spec, vec_spec_p, vec_spec_p,
                  pl.BlockSpec((9 * Pp, Pp), lambda n: (0, 0))],
        out_specs=(img_spec,
                   pl.BlockSpec((1, 1, Pp), lambda n: (n, 0, 0)),
                   pl.BlockSpec((1, 1, Pp), lambda n: (n, 0, 0))),
        out_shape=(jax.ShapeDtypeStruct((N, H, W, Pp), bf16),
                   jax.ShapeDtypeStruct((ni, 1, Pp), f32),
                   jax.ShapeDtypeStruct((ni, 1, Pp), f32)),
        compiler_params=_cparams(vmem_limit),
    )(y1_4d, scale1, bias1, w2p)
    scale2, bias2 = _bn_scale_bias(s2, q2, g2p, b2p, M)

    # ---- K3: bn2 + relu + conv3 (1x1) + bn3 partial stats, tiled over rows ----
    y2_2d = y2_raw.reshape(M, Pp)
    y3_raw, s3, q3 = pl.pallas_call(
        _conv3_kernel,
        grid=(nt,),
        in_specs=[row_spec_p, vec_spec_p, vec_spec_p,
                  pl.BlockSpec((Pp, Cp), lambda i: (0, 0))],
        out_specs=(row_spec_c, stat_spec_c, stat_spec_c),
        out_shape=(jax.ShapeDtypeStruct((M, Cp), bf16),
                   jax.ShapeDtypeStruct((nt, 1, Cp), f32),
                   jax.ShapeDtypeStruct((nt, 1, Cp), f32)),
        compiler_params=_cparams(vmem_limit),
    )(y2_2d, scale2, bias2, w3p)
    scale3, bias3 = _bn_scale_bias(s3, q3, g3p, b3p, M)

    # ---- K4: bn3 + residual add + relu, tiled over rows ----
    out2d = pl.pallas_call(
        _bn_residual_relu_kernel,
        grid=(nt,),
        in_specs=[row_spec_c, vec_spec_c, vec_spec_c, row_spec_c],
        out_specs=row_spec_c,
        out_shape=jax.ShapeDtypeStruct((M, Cp), f32),
        compiler_params=_cparams(vmem_limit),
    )(y3_raw, scale3, bias3, x2d)

    out = out2d.reshape(N, H, W, Cp)
    return out if Cp == Cout else out[..., :Cout]


# --------------------------------------------------------------------------
# Pure-JAX f32 reference (mirrors the PyTorch module in training mode)
# --------------------------------------------------------------------------

def reference(x_nhwc, params):
    w1, w2, w3, g1, b1, g2, b2, g3, b3 = params

    def bn(y, g, b):
        m = y.mean(axis=(0, 1, 2), keepdims=True)
        v = ((y - m) ** 2).mean(axis=(0, 1, 2), keepdims=True)
        return (y - m) / jnp.sqrt(v + EPS) * g + b

    y1 = jnp.einsum('nhwc,cp->nhwp', x_nhwc, w1)
    y1 = jax.nn.relu(bn(y1, g1[0], b1[0]))
    y2 = jax.lax.conv_general_dilated(
        y1, w2, window_strides=(1, 1), padding='SAME',
        dimension_numbers=('NHWC', 'HWIO', 'NHWC'))
    y2 = jax.nn.relu(bn(y2, g2[0], b2[0]))
    y3 = jnp.einsum('nhwp,pc->nhwc', y2, w3)
    y3 = bn(y3, g3[0], b3[0])
    return jax.nn.relu(y3 + x_nhwc)


if __name__ == "__main__":
    # Module config: inplanes = planes * expansion (required by downsample=None),
    # stride=1.
    N, H, W = 2, 8, 8
    planes = 4
    expansion = 4
    inplanes = planes * expansion          # 16
    cout = planes * expansion              # 16

    key = jax.random.PRNGKey(0)
    kx, k1, k2, k3 = jax.random.split(key, 4)

    x_nchw = jax.random.normal(kx, (N, inplanes, H, W), dtype=jnp.float32)
    x_nhwc = jnp.transpose(x_nchw, (0, 2, 3, 1))   # NCHW -> NHWC

    w1 = 0.1 * jax.random.normal(k1, (inplanes, planes), dtype=jnp.float32)
    w2 = 0.1 * jax.random.normal(k2, (3, 3, planes, planes), dtype=jnp.float32)
    w3 = 0.1 * jax.random.normal(k3, (planes, cout), dtype=jnp.float32)

    # BatchNorm affine params at PyTorch defaults (gamma=1, beta=0), as (1, C).
    g1 = jnp.ones((1, planes), jnp.float32);  b1 = jnp.zeros((1, planes), jnp.float32)
    g2 = jnp.ones((1, planes), jnp.float32);  b2 = jnp.zeros((1, planes), jnp.float32)
    g3 = jnp.ones((1, cout),   jnp.float32);  b3 = jnp.zeros((1, cout),   jnp.float32)
    # TODO(synk): BatchNorm running_mean/var buffer updates (training-time side
    # effect) are not modeled; they do not affect the forward output.

    params = (w1, w2, w3, g1, b1, g2, b2, g3, b3)

    out = jax.jit(bottleneck_forward)(x_nhwc, params)
    out = jax.block_until_ready(out)

    ref = jax.block_until_ready(reference(x_nhwc, params))
    assert out.shape == (N, H, W, cout)
    max_err = jnp.max(jnp.abs(out - ref))
    # bf16 MXU operands + bf16 inter-stage activations (f32 accumulation /
    # f32 BN math) vs a pure-f32 reference.
    assert jnp.allclose(out, ref, atol=5e-2, rtol=5e-2), f"max abs err {max_err}"

    print("KERNEL_OK")
</pallas_src>

<mosaic_0001>
module attributes {stable_mosaic.version = 11 : i64} {
  func.func @_conv1_kernel(%arg0: i32, %arg1: memref<128x128xf32, #tpu.memory_space<vmem>>, %arg2: memref<128x128xbf16, #tpu.memory_space<vmem>>, %arg3: memref<128x128xbf16, #tpu.memory_space<vmem>>, %arg4: memref<1x1x128xf32, #tpu.memory_space<vmem>>, %arg5: memref<1x1x128xf32, #tpu.memory_space<vmem>>) attributes {dimension_semantics = [#tpu.dimension_semantics<parallel>], iteration_bounds = array<i64: 1>, scalar_prefetch = 0 : i64, scratch_operands = 0 : i64, tpu.core_type = #tpu.core_type<tc>, window_params = [{transform_indices = @transform_0, window_bounds = array<i64: 128, 128>}, {pipeline_mode = #tpu.pipeline_mode<synchronous>, transform_indices = @transform_1, window_bounds = array<i64: 128, 128>}, {transform_indices = @transform_2, window_bounds = array<i64: 128, 128>}, {transform_indices = @transform_3, window_bounds = array<i64: 1, 1, 128>}, {transform_indices = @transform_4, window_bounds = array<i64: 1, 1, 128>}]} {
    %c0 = arith.constant 0 : index
    %c0_0 = arith.constant 0 : index
    %0 = vector.load %arg1[%c0, %c0_0] : memref<128x128xf32, #tpu.memory_space<vmem>>, vector<128x128xf32>
    %1 = arith.truncf %0 : vector<128x128xf32> to vector<128x128xbf16>
    %c0_1 = arith.constant 0 : index
    %c0_2 = arith.constant 0 : index
    %2 = vector.load %arg2[%c0_1, %c0_2] : memref<128x128xbf16, #tpu.memory_space<vmem>>, vector<128x128xbf16>
    %cst = arith.constant dense<0.000000e+00> : vector<128x128xf32>
    %3 = tpu.matmul %1, %2, %cst {dimension_numbers = #tpu.dot_dimension_numbers<[1], [0], [0], [1], [0, 0, 1, 1], [], []>} : vector<128x128xbf16>, vector<128x128xbf16>, vector<128x128xf32> -> vector<128x128xf32>
    %cst_3 = arith.constant dense<0.000000e+00> : vector<128xf32>
    %4 = vector.multi_reduction <add>, %3, %cst_3 [0] : vector<128x128xf32> to vector<128xf32>
    %5 = vector.shape_cast %4 : vector<128xf32> to vector<1x1x128xf32>
    %c0_4 = arith.constant 0 : index
    %c0_5 = arith.constant 0 : index
    %c0_6 = arith.constant 0 : index
    %6 = vector.load %arg4[%c0_4, %c0_5, %c0_6] : memref<1x1x128xf32, #tpu.memory_space<vmem>>, vector<1x1x128xf32>
    tpu.vector_store %arg4[%c0_4, %c0_5, %c0_6], %5 {strides = array<i32>} : memref<1x1x128xf32, #tpu.memory_space<vmem>>, vector<1x1x128xf32>,
    %7 = arith.mulf %3, %3 : vector<128x128xf32>
    %cst_7 = arith.constant dense<0.000000e+00> : vector<128xf32>
    %8 = vector.multi_reduction <add>, %7, %cst_7 [0] : vector<128x128xf32> to vector<128xf32>
    %9 = vector.shape_cast %8 : vector<128xf32> to vector<1x1x128xf32>
    %c0_8 = arith.constant 0 : index
    %c0_9 = arith.constant 0 : index
    %c0_10 = arith.constant 0 : index
    %10 = vector.load %arg5[%c0_8, %c0_9, %c0_10] : memref<1x1x128xf32, #tpu.memory_space<vmem>>, vector<1x1x128xf32>
    tpu.vector_store %arg5[%c0_8, %c0_9, %c0_10], %9 {strides = array<i32>} : memref<1x1x128xf32, #tpu.memory_space<vmem>>, vector<1x1x128xf32>,
    %11 = arith.truncf %3 : vector<128x128xf32> to vector<128x128xbf16>
    %c0_11 = arith.constant 0 : index
    %c0_12 = arith.constant 0 : index
    %12 = vector.load %arg3[%c0_11, %c0_12] : memref<128x128xbf16, #tpu.memory_space<vmem>>, vector<128x128xbf16>
    tpu.vector_store %arg3[%c0_11, %c0_12], %11 {strides = array<i32>} : memref<128x128xbf16, #tpu.memory_space<vmem>>, vector<128x128xbf16>,
    return
  }
  func.func @transform_0(%arg0: i32) -> (i32, i32) {
    %c0_i32 = arith.constant 0 : i32
    %c0_i32_0 = arith.constant 0 : i32
    return %arg0, %c0_i32 : i32, i32
  }
  func.func @transform_1(%arg0: i32) -> (i32, i32) {
    %c0_i32 = arith.constant 0 : i32
    %c0_i32_0 = arith.constant 0 : i32
    %c0_i32_1 = arith.constant 0 : i32
    return %c0_i32, %c0_i32_0 : i32, i32
  }
  func.func @transform_2(%arg0: i32) -> (i32, i32) {
    %c0_i32 = arith.constant 0 : i32
    %c0_i32_0 = arith.constant 0 : i32
    return %arg0, %c0_i32 : i32, i32
  }
  func.func @transform_3(%arg0: i32) -> (i32, i32, i32) {
    %c0_i32 = arith.constant 0 : i32
    %c0_i32_0 = arith.constant 0 : i32
    %c0_i32_1 = arith.constant 0 : i32
    return %arg0, %c0_i32, %c0_i32_0 : i32, i32, i32
  }
  func.func @transform_4(%arg0: i32) -> (i32, i32, i32) {
    %c0_i32 = arith.constant 0 : i32
    %c0_i32_0 = arith.constant 0 : i32
    %c0_i32_1 = arith.constant 0 : i32
    return %arg0, %c0_i32, %c0_i32_0 : i32, i32, i32
  }
}

module attributes {stable_mosaic.version = 11 : i64} {
  func.func @_conv2_kernel(%arg0: i32, %arg1: memref<2x8x8x128xbf16, #tpu.memory_space<vmem>>, %arg2: memref<1x128xf32, #tpu.memory_space<vmem>>, %arg3: memref<1x128xf32, #tpu.memory_space<vmem>>, %arg4: memref<1152x128xbf16, #tpu.memory_space<vmem>>, %arg5: memref<2x8x8x128xbf16, #tpu.memory_space<vmem>>, %arg6: memref<1x1x128xf32, #tpu.memory_space<vmem>>, %arg7: memref<1x1x128xf32, #tpu.memory_space<vmem>>) attributes {dimension_semantics = [#tpu.dimension_semantics<parallel>], iteration_bounds = array<i64: 1>, scalar_prefetch = 0 : i64, scratch_operands = 0 : i64, tpu.core_type = #tpu.core_type<tc>, window_params = [{transform_indices = @transform_0, window_bounds = array<i64: 2, 8, 8, 128>}, {pipeline_mode = #tpu.pipeline_mode<synchronous>, transform_indices = @transform_1, window_bounds = array<i64: 1, 128>}, {pipeline_mode = #tpu.pipeline_mode<synchronous>, transform_indices = @transform_2, window_bounds = array<i64: 1, 128>}, {pipeline_mode = #tpu.pipeline_mode<synchronous>, transform_indices = @transform_3, window_bounds = array<i64: 1152, 128>}, {transform_indices = @transform_4, window_bounds = array<i64: 2, 8, 8, 128>}, {transform_indices = @transform_5, window_bounds = array<i64: 1, 1, 128>}, {transform_indices = @transform_6, window_bounds = array<i64: 1, 1, 128>}]} {
    %c0 = arith.constant 0 : index
    %c0_0 = arith.constant 0 : index
    %c0_1 = arith.constant 0 : index
    %c0_2 = arith.constant 0 : index
    %0 = vector.load %arg1[%c0, %c0_0, %c0_1, %c0_2] : memref<2x8x8x128xbf16, #tpu.memory_space<vmem>>, vector<2x8x8x128xbf16>
    %c0_3 = arith.constant 0 : index
    %c0_4 = arith.constant 0 : index
    %1 = vector.load %arg2[%c0_3, %c0_4] : memref<1x128xf32, #tpu.memory_space<vmem>>, vector<1x128xf32>
    %2 = arith.extf %0 : vector<2x8x8x128xbf16> to vector<2x8x8x128xf32>
    %3 = vector.shape_cast %1 : vector<1x128xf32> to vector<1x1x1x128xf32>
    %4 = vector.broadcast %3 : vector<1x1x1x128xf32> to vector<2x8x8x128xf32>
    %5 = arith.mulf %2, %4 : vector<2x8x8x128xf32>
    %c0_5 = arith.constant 0 : index
    %c0_6 = arith.constant 0 : index
    %6 = vector.load %arg3[%c0_5, %c0_6] : memref<1x128xf32, #tpu.memory_space<vmem>>, vector<1x128xf32>
    %7 = vector.shape_cast %6 : vector<1x128xf32> to vector<1x1x1x128xf32>
    %8 = vector.broadcast %7 : vector<1x1x1x128xf32> to vector<2x8x8x128xf32>
    %9 = arith.addf %5, %8 : vector<2x8x8x128xf32>
    %cst = arith.constant 0.000000e+00 : f32
    %10 = vector.broadcast %cst : f32 to vector<2x8x8x128xf32>
    %11 = arith.maximumf %9, %10 : vector<2x8x8x128xf32>
    %12 = arith.truncf %11 : vector<2x8x8x128xf32> to vector<2x8x8x128xbf16>
    %c0_i32 = arith.constant 0 : i32
    %13 = arith.sitofp %c0_i32 : i32 to bf16
    %14 = vector.broadcast %13 : bf16 to vector<2x1x8x128xbf16>
    %15 = tpu.concatenate %14, %12 in 1 : vector<2x1x8x128xbf16>, vector<2x8x8x128xbf16> -> vector<2x9x8x128xbf16>
    %16 = vector.broadcast %13 : bf16 to vector<2x1x8x128xbf16>
    %17 = tpu.concatenate %15, %16 in 1 : vector<2x9x8x128xbf16>, vector<2x1x8x128xbf16> -> vector<2x10x8x128xbf16>
    %18 = vector.broadcast %13 : bf16 to vector<2x10x1x128xbf16>
    %19 = tpu.concatenate %18, %17 in 2 : vector<2x10x1x128xbf16>, vector<2x10x8x128xbf16> -> vector<2x10x9x128xbf16>
    %20 = vector.broadcast %13 : bf16 to vector<2x10x1x128xbf16>
    %21 = tpu.concatenate %19, %20 in 2 : vector<2x10x9x128xbf16>, vector<2x10x1x128xbf16> -> vector<2x10x10x128xbf16>
    %22 = vector.extract_strided_slice %21 {offsets = [0, 0, 0, 0], sizes = [2, 8, 8, 128], strides = [1, 1, 1, 1]} : vector<2x10x10x128xbf16> to vector<2x8x8x128xbf16>
    %23 = vector.shape_cast %22 : vector<2x8x8x128xbf16> to vector<128x128xbf16>
    %24 = vector.extract_strided_slice %21 {offsets = [0, 0, 1, 0], sizes = [2, 8, 8, 128], strides = [1, 1, 1, 1]} : vector<2x10x10x128xbf16> to vector<2x8x8x128xbf16>
    %25 = vector.shape_cast %24 : vector<2x8x8x128xbf16> to vector<128x128xbf16>
    %26 = vector.extract_strided_slice %21 {offsets = [0, 0, 2, 0], sizes = [2, 8, 8, 128], strides = [1, 1, 1, 1]} : vector<2x10x10x128xbf16> to vector<2x8x8x128xbf16>
    %27 = vector.shape_cast %26 : vector<2x8x8x128xbf16> to vector<128x128xbf16>
    %28 = vector.extract_strided_slice %21 {offsets = [0, 1, 0, 0], sizes = [2, 8, 8, 128], strides = [1, 1, 1, 1]} : vector<2x10x10x128xbf16> to vector<2x8x8x128xbf16>
    %29 = vector.shape_cast %28 : vector<2x8x8x128xbf16> to vector<128x128xbf16>
    %30 = vector.extract_strided_slice %21 {offsets = [0, 1, 1, 0], sizes = [2, 8, 8, 128], strides = [1, 1, 1, 1]} : vector<2x10x10x128xbf16> to vector<2x8x8x128xbf16>
    %31 = vector.shape_cast %30 : vector<2x8x8x128xbf16> to vector<128x128xbf16>
    %32 = vector.extract_strided_slice %21 {offsets = [0, 1, 2, 0], sizes = [2, 8, 8, 128], strides = [1, 1, 1, 1]} : vector<2x10x10x128xbf16> to vector<2x8x8x128xbf16>
    %33 = vector.shape_cast %32 : vector<2x8x8x128xbf16> to vector<128x128xbf16>
    %34 = vector.extract_strided_slice %21 {offsets = [0, 2, 0, 0], sizes = [2, 8, 8, 128], strides = [1, 1, 1, 1]} : vector<2x10x10x128xbf16> to vector<2x8x8x128xbf16>
    %35 = vector.shape_cast %34 : vector<2x8x8x128xbf16> to vector<128x128xbf16>
    %36 = vector.extract_strided_slice %21 {offsets = [0, 2, 1, 0], sizes = [2, 8, 8, 128], strides = [1, 1, 1, 1]} : vector<2x10x10x128xbf16> to vector<2x8x8x128xbf16>
    %37 = vector.shape_cast %36 : vector<2x8x8x128xbf16> to vector<128x128xbf16>
    %38 = vector.extract_strided_slice %21 {offsets = [0, 2, 2, 0], sizes = [2, 8, 8, 128], strides = [1, 1, 1, 1]} : vector<2x10x10x128xbf16> to vector<2x8x8x128xbf16>
    %39 = vector.shape_cast %38 : vector<2x8x8x128xbf16> to vector<128x128xbf16>
    %40 = tpu.concatenate %23, %25, %27, %29, %31, %33, %35, %37, %39 in 1 : vector<128x128xbf16>, vector<128x128xbf16>, vector<128x128xbf16>, vector<128x128xbf16>, vector<128x128xbf16>, vector<128x128xbf16>, vector<128x128xbf16>, vector<128x128xbf16>, vector<128x128xbf16> -> vector<128x1152xbf16>
    %c0_7 = arith.constant 0 : index
    %c0_8 = arith.constant 0 : index
    %41 = vector.load %arg4[%c0_7, %c0_8] : memref<1152x128xbf16, #tpu.memory_space<vmem>>, vector<1152x128xbf16>
    %cst_9 = arith.constant dense<0.000000e+00> : vector<128x128xf32>
    %42 = tpu.matmul %40, %41, %cst_9 {dimension_numbers = #tpu.dot_dimension_numbers<[1], [0], [0], [1], [0, 0, 1, 1], [], []>} : vector<128x1152xbf16>, vector<1152x128xbf16>, vector<128x128xf32> -> vector<128x128xf32>
    %cst_10 = arith.constant dense<0.000000e+00> : vector<128xf32>
    %43 = vector.multi_reduction <add>, %42, %cst_10 [0] : vector<128x128xf32> to vector<128xf32>
    %44 = vector.shape_cast %43 : vector<128xf32> to vector<1x1x128xf32>
    %c0_11 = arith.constant 0 : index
    %c0_12 = arith.constant 0 : index
    %c0_13 = arith.constant 0 : index
    %45 = vector.load %arg6[%c0_11, %c0_12, %c0_13] : memref<1x1x128xf32, #tpu.memory_space<vmem>>, vector<1x1x128xf32>
    tpu.vector_store %arg6[%c0_11, %c0_12, %c0_13], %44 {strides = array<i32>} : memref<1x1x128xf32, #tpu.memory_space<vmem>>, vector<1x1x128xf32>,
    %46 = arith.mulf %42, %42 : vector<128x128xf32>
    %cst_14 = arith.constant dense<0.000000e+00> : vector<128xf32>
    %47 = vector.multi_reduction <add>, %46, %cst_14 [0] : vector<128x128xf32> to vector<128xf32>
    %48 = vector.shape_cast %47 : vector<128xf32> to vector<1x1x128xf32>
    %c0_15 = arith.constant 0 : index
    %c0_16 = arith.constant 0 : index
    %c0_17 = arith.constant 0 : index
    %49 = vector.load %arg7[%c0_15, %c0_16, %c0_17] : memref<1x1x128xf32, #tpu.memory_space<vmem>>, vector<1x1x128xf32>
    tpu.vector_store %arg7[%c0_15, %c0_16, %c0_17], %48 {strides = array<i32>} : memref<1x1x128xf32, #tpu.memory_space<vmem>>, vector<1x1x128xf32>,
    %50 = vector.shape_cast %42 : vector<128x128xf32> to vector<2x8x8x128xf32>
    %51 = arith.truncf %50 : vector<2x8x8x128xf32> to vector<2x8x8x128xbf16>
    %c0_18 = arith.constant 0 : index
    %c0_19 = arith.constant 0 : index
    %c0_20 = arith.constant 0 : index
    %c0_21 = arith.constant 0 : index
    %52 = vector.load %arg5[%c0_18, %c0_19, %c0_20, %c0_21] : memref<2x8x8x128xbf16, #tpu.memory_space<vmem>>, vector<2x8x8x128xbf16>
    tpu.vector_store %arg5[%c0_18, %c0_19, %c0_20, %c0_21], %51 {strides = array<i32>} : memref<2x8x8x128xbf16, #tpu.memory_space<vmem>>, vector<2x8x8x128xbf16>,
    return
  }
  func.func @transform_0(%arg0: i32) -> (i32, i32, i32, i32) {
    %c0_i32 = arith.constant 0 : i32
    %c0_i32_0 = arith.constant 0 : i32
    %c0_i32_1 = arith.constant 0 : i32
    %c0_i32_2 = arith.constant 0 : i32
    return %arg0, %c0_i32, %c0_i32_0, %c0_i32_1 : i32, i32, i32, i32
  }
  func.func @transform_1(%arg0: i32) -> (i32, i32) {
    %c0_i32 = arith.constant 0 : i32
    %c0_i32_0 = arith.constant 0 : i32
    %c0_i32_1 = arith.constant 0 : i32
    return %c0_i32, %c0_i32_0 : i32, i32
  }
  func.func @transform_2(%arg0: i32) -> (i32, i32) {
    %c0_i32 = arith.constant 0 : i32
    %c0_i32_0 = arith.constant 0 : i32
    %c0_i32_1 = arith.constant 0 : i32
    return %c0_i32, %c0_i32_0 : i32, i32
  }
  func.func @transform_3(%arg0: i32) -> (i32, i32) {
    %c0_i32 = arith.constant 0 : i32
    %c0_i32_0 = arith.constant 0 : i32
    %c0_i32_1 = arith.constant 0 : i32
    return %c0_i32, %c0_i32_0 : i32, i32
  }
  func.func @transform_4(%arg0: i32) -> (i32, i32, i32, i32) {
    %c0_i32 = arith.constant 0 : i32
    %c0_i32_0 = arith.constant 0 : i32
    %c0_i32_1 = arith.constant 0 : i32
    %c0_i32_2 = arith.constant 0 : i32
    return %arg0, %c0_i32, %c0_i32_0, %c0_i32_1 : i32, i32, i32, i32
  }
  func.func @transform_5(%arg0: i32) -> (i32, i32, i32) {
    %c0_i32 = arith.constant 0 : i32
    %c0_i32_0 = arith.constant 0 : i32
    %c0_i32_1 = arith.constant 0 : i32
    return %arg0, %c0_i32, %c0_i32_0 : i32, i32, i32
  }
  func.func @transform_6(%arg0: i32) -> (i32, i32, i32) {
    %c0_i32 = arith.constant 0 : i32
    %c0_i32_0 = arith.constant 0 : i32
    %c0_i32_1 = arith.constant 0 : i32
    return %arg0, %c0_i32, %c0_i32_0 : i32, i32, i32
  }
}

module attributes {stable_mosaic.version = 11 : i64} {
  func.func @_conv3_kernel(%arg0: i32, %arg1: memref<128x128xbf16, #tpu.memory_space<vmem>>, %arg2: memref<1x128xf32, #tpu.memory_space<vmem>>, %arg3: memref<1x128xf32, #tpu.memory_space<vmem>>, %arg4: memref<128x128xbf16, #tpu.memory_space<vmem>>, %arg5: memref<128x128xbf16, #tpu.memory_space<vmem>>, %arg6: memref<1x1x128xf32, #tpu.memory_space<vmem>>, %arg7: memref<1x1x128xf32, #tpu.memory_space<vmem>>) attributes {dimension_semantics = [#tpu.dimension_semantics<parallel>], iteration_bounds = array<i64: 1>, scalar_prefetch = 0 : i64, scratch_operands = 0 : i64, tpu.core_type = #tpu.core_type<tc>, window_params = [{transform_indices = @transform_0, window_bounds = array<i64: 128, 128>}, {pipeline_mode = #tpu.pipeline_mode<synchronous>, transform_indices = @transform_1, window_bounds = array<i64: 1, 128>}, {pipeline_mode = #tpu.pipeline_mode<synchronous>, transform_indices = @transform_2, window_bounds = array<i64: 1, 128>}, {pipeline_mode = #tpu.pipeline_mode<synchronous>, transform_indices = @transform_3, window_bounds = array<i64: 128, 128>}, {transform_indices = @transform_4, window_bounds = array<i64: 128, 128>}, {transform_indices = @transform_5, window_bounds = array<i64: 1, 1, 128>}, {transform_indices = @transform_6, window_bounds = array<i64: 1, 1, 128>}]} {
    %c0 = arith.constant 0 : index
    %c0_0 = arith.constant 0 : index
    %0 = vector.load %arg1[%c0, %c0_0] : memref<128x128xbf16, #tpu.memory_space<vmem>>, vector<128x128xbf16>
    %c0_1 = arith.constant 0 : index
    %c0_2 = arith.constant 0 : index
    %1 = vector.load %arg2[%c0_1, %c0_2] : memref<1x128xf32, #tpu.memory_space<vmem>>, vector<1x128xf32>
    %2 = arith.extf %0 : vector<128x128xbf16> to vector<128x128xf32>
    %3 = vector.broadcast %1 : vector<1x128xf32> to vector<128x128xf32>
    %4 = arith.mulf %2, %3 : vector<128x128xf32>
    %c0_3 = arith.constant 0 : index
    %c0_4 = arith.constant 0 : index
    %5 = vector.load %arg3[%c0_3, %c0_4] : memref<1x128xf32, #tpu.memory_space<vmem>>, vector<1x128xf32>
    %6 = vector.broadcast %5 : vector<1x128xf32> to vector<128x128xf32>
    %7 = arith.addf %4, %6 : vector<128x128xf32>
    %cst = arith.constant 0.000000e+00 : f32
    %8 = vector.broadcast %cst : f32 to vector<128x128xf32>
    %9 = arith.maximumf %7, %8 : vector<128x128xf32>
    %10 = arith.truncf %9 : vector<128x128xf32> to vector<128x128xbf16>
    %c0_5 = arith.constant 0 : index
    %c0_6 = arith.constant 0 : index
    %11 = vector.load %arg4[%c0_5, %c0_6] : memref<128x128xbf16, #tpu.memory_space<vmem>>, vector<128x128xbf16>
    %cst_7 = arith.constant dense<0.000000e+00> : vector<128x128xf32>
    %12 = tpu.matmul %10, %11, %cst_7 {dimension_numbers = #tpu.dot_dimension_numbers<[1], [0], [0], [1], [0, 0, 1, 1], [], []>} : vector<128x128xbf16>, vector<128x128xbf16>, vector<128x128xf32> -> vector<128x128xf32>
    %cst_8 = arith.constant dense<0.000000e+00> : vector<128xf32>
    %13 = vector.multi_reduction <add>, %12, %cst_8 [0] : vector<128x128xf32> to vector<128xf32>
    %14 = vector.shape_cast %13 : vector<128xf32> to vector<1x1x128xf32>
    %c0_9 = arith.constant 0 : index
    %c0_10 = arith.constant 0 : index
    %c0_11 = arith.constant 0 : index
    %15 = vector.load %arg6[%c0_9, %c0_10, %c0_11] : memref<1x1x128xf32, #tpu.memory_space<vmem>>, vector<1x1x128xf32>
    tpu.vector_store %arg6[%c0_9, %c0_10, %c0_11], %14 {strides = array<i32>} : memref<1x1x128xf32, #tpu.memory_space<vmem>>, vector<1x1x128xf32>,
    %16 = arith.mulf %12, %12 : vector<128x128xf32>
    %cst_12 = arith.constant dense<0.000000e+00> : vector<128xf32>
    %17 = vector.multi_reduction <add>, %16, %cst_12 [0] : vector<128x128xf32> to vector<128xf32>
    %18 = vector.shape_cast %17 : vector<128xf32> to vector<1x1x128xf32>
    %c0_13 = arith.constant 0 : index
    %c0_14 = arith.constant 0 : index
    %c0_15 = arith.constant 0 : index
    %19 = vector.load %arg7[%c0_13, %c0_14, %c0_15] : memref<1x1x128xf32, #tpu.memory_space<vmem>>, vector<1x1x128xf32>
    tpu.vector_store %arg7[%c0_13, %c0_14, %c0_15], %18 {strides = array<i32>} : memref<1x1x128xf32, #tpu.memory_space<vmem>>, vector<1x1x128xf32>,
    %20 = arith.truncf %12 : vector<128x128xf32> to vector<128x128xbf16>
    %c0_16 = arith.constant 0 : index
    %c0_17 = arith.constant 0 : index
    %21 = vector.load %arg5[%c0_16, %c0_17] : memref<128x128xbf16, #tpu.memory_space<vmem>>, vector<128x128xbf16>
    tpu.vector_store %arg5[%c0_16, %c0_17], %20 {strides = array<i32>} : memref<128x128xbf16, #tpu.memory_space<vmem>>, vector<128x128xbf16>,
    return
  }
  func.func @transform_0(%arg0: i32) -> (i32, i32) {
    %c0_i32 = arith.constant 0 : i32
    %c0_i32_0 = arith.constant 0 : i32
    return %arg0, %c0_i32 : i32, i32
  }
  func.func @transform_1(%arg0: i32) -> (i32, i32) {
    %c0_i32 = arith.constant 0 : i32
    %c0_i32_0 = arith.constant 0 : i32
    %c0_i32_1 = arith.constant 0 : i32
    return %c0_i32, %c0_i32_0 : i32, i32
  }
  func.func @transform_2(%arg0: i32) -> (i32, i32) {
    %c0_i32 = arith.constant 0 : i32
    %c0_i32_0 = arith.constant 0 : i32
    %c0_i32_1 = arith.constant 0 : i32
    return %c0_i32, %c0_i32_0 : i32, i32
  }
  func.func @transform_3(%arg0: i32) -> (i32, i32) {
    %c0_i32 = arith.constant 0 : i32
    %c0_i32_0 = arith.constant 0 : i32
    %c0_i32_1 = arith.constant 0 : i32
    return %c0_i32, %c0_i32_0 : i32, i32
  }
  func.func @transform_4(%arg0: i32) -> (i32, i32) {
    %c0_i32 = arith.constant 0 : i32
    %c0_i32_0 = arith.constant 0 : i32
    return %arg0, %c0_i32 : i32, i32
  }
  func.func @transform_5(%arg0: i32) -> (i32, i32, i32) {
    %c0_i32 = arith.constant 0 : i32
    %c0_i32_0 = arith.constant 0 : i32
    %c0_i32_1 = arith.constant 0 : i32
    return %arg0, %c0_i32, %c0_i32_0 : i32, i32, i32
  }
  func.func @transform_6(%arg0: i32) -> (i32, i32, i32) {
    %c0_i32 = arith.constant 0 : i32
    %c0_i32_0 = arith.constant 0 : i32
    %c0_i32_1 = arith.constant 0 : i32
    return %arg0, %c0_i32, %c0_i32_0 : i32, i32, i32
  }
}

module attributes {stable_mosaic.version = 11 : i64} {
  func.func @_bn_residual_relu_kernel(%arg0: i32, %arg1: memref<128x128xbf16, #tpu.memory_space<vmem>>, %arg2: memref<1x128xf32, #tpu.memory_space<vmem>>, %arg3: memref<1x128xf32, #tpu.memory_space<vmem>>, %arg4: memref<128x128xf32, #tpu.memory_space<vmem>>, %arg5: memref<128x128xf32, #tpu.memory_space<vmem>>) attributes {dimension_semantics = [#tpu.dimension_semantics<parallel>], iteration_bounds = array<i64: 1>, scalar_prefetch = 0 : i64, scratch_operands = 0 : i64, tpu.core_type = #tpu.core_type<tc>, window_params = [{transform_indices = @transform_0, window_bounds = array<i64: 128, 128>}, {pipeline_mode = #tpu.pipeline_mode<synchronous>, transform_indices = @transform_1, window_bounds = array<i64: 1, 128>}, {pipeline_mode = #tpu.pipeline_mode<synchronous>, transform_indices = @transform_2, window_bounds = array<i64: 1, 128>}, {transform_indices = @transform_3, window_bounds = array<i64: 128, 128>}, {transform_indices = @transform_4, window_bounds = array<i64: 128, 128>}]} {
    %c0 = arith.constant 0 : index
    %c0_0 = arith.constant 0 : index
    %0 = vector.load %arg1[%c0, %c0_0] : memref<128x128xbf16, #tpu.memory_space<vmem>>, vector<128x128xbf16>
    %c0_1 = arith.constant 0 : index
    %c0_2 = arith.constant 0 : index
    %1 = vector.load %arg2[%c0_1, %c0_2] : memref<1x128xf32, #tpu.memory_space<vmem>>, vector<1x128xf32>
    %2 = arith.extf %0 : vector<128x128xbf16> to vector<128x128xf32>
    %3 = vector.broadcast %1 : vector<1x128xf32> to vector<128x128xf32>
    %4 = arith.mulf %2, %3 : vector<128x128xf32>
    %c0_3 = arith.constant 0 : index
    %c0_4 = arith.constant 0 : index
    %5 = vector.load %arg3[%c0_3, %c0_4] : memref<1x128xf32, #tpu.memory_space<vmem>>, vector<1x128xf32>
    %6 = vector.broadcast %5 : vector<1x128xf32> to vector<128x128xf32>
    %7 = arith.addf %4, %6 : vector<128x128xf32>
    %c0_5 = arith.constant 0 : index
    %c0_6 = arith.constant 0 : index
    %8 = vector.load %arg4[%c0_5, %c0_6] : memref<128x128xf32, #tpu.memory_space<vmem>>, vector<128x128xf32>
    %9 = arith.addf %7, %8 : vector<128x128xf32>
    %cst = arith.constant 0.000000e+00 : f32
    %10 = vector.broadcast %cst : f32 to vector<128x128xf32>
    %11 = arith.maximumf %9, %10 : vector<128x128xf32>
    %c0_7 = arith.constant 0 : index
    %c0_8 = arith.constant 0 : index
    %12 = vector.load %arg5[%c0_7, %c0_8] : memref<128x128xf32, #tpu.memory_space<vmem>>, vector<128x128xf32>
    tpu.vector_store %arg5[%c0_7, %c0_8], %11 {strides = array<i32>} : memref<128x128xf32, #tpu.memory_space<vmem>>, vector<128x128xf32>,
    return
  }
  func.func @transform_0(%arg0: i32) -> (i32, i32) {
    %c0_i32 = arith.constant 0 : i32
    %c0_i32_0 = arith.constant 0 : i32
    return %arg0, %c0_i32 : i32, i32
  }
  func.func @transform_1(%arg0: i32) -> (i32, i32) {
    %c0_i32 = arith.constant 0 : i32
    %c0_i32_0 = arith.constant 0 : i32
    %c0_i32_1 = arith.constant 0 : i32
    return %c0_i32, %c0_i32_0 : i32, i32
  }
  func.func @transform_2(%arg0: i32) -> (i32, i32) {
    %c0_i32 = arith.constant 0 : i32
    %c0_i32_0 = arith.constant 0 : i32
    %c0_i32_1 = arith.constant 0 : i32
    return %c0_i32, %c0_i32_0 : i32, i32
  }
  func.func @transform_3(%arg0: i32) -> (i32, i32) {
    %c0_i32 = arith.constant 0 : i32
    %c0_i32_0 = arith.constant 0 : i32
    return %arg0, %c0_i32 : i32, i32
  }
  func.func @transform_4(%arg0: i32) -> (i32, i32) {
    %c0_i32 = arith.constant 0 : i32
    %c0_i32_0 = arith.constant 0 : i32
    return %arg0, %c0_i32 : i32, i32
  }
}

</mosaic_0001>

<llo_original>
// kernel: bottleneck_forward.4
$region0: #{bottleneck_forward.4}
  #allocation0 [shape = 'u32[]', space=smem, size = 0x4, offset = 0x4, fixed_abs, tag = 'smem constant byte address 0x4 - core index']
  #allocation1 [shape = 'u32[144,128]{1,0:T(1,128)}', space=vmem, size = 0x12000, scoped, tag = 'internal scratch']
  %s0 = inlined_call_operand.vmem [shape: f32[128,128], index: 0, kind: input, shape index: {}]
  %s1 = inlined_call_operand.vmem [shape: bf16[128,128], index: 1, kind: input, shape index: {}]
  %s2 = inlined_call_operand.vmem [shape: bf16[128,128], index: 2, kind: output, shape index: {0}]
  %s3 = inlined_call_operand.vmem [shape: f32[1,1,128], index: 3, kind: output, shape index: {1}]
  %s4 = inlined_call_operand.vmem [shape: f32[1,1,128], index: 4, kind: output, shape index: {2}]
  %5 = xla_tuple %s2, %s3, %s4
  %s6 = sld [smem:[#allocation0]]
  $region34: #{bottleneck_forward.4} parent=0
    _
  %s8 = ssub.s32 1, %s6
  %s9 = scalar_select 0, %s8, %s6
  // Predicated region
  $region2: #{bottleneck_forward.4} parent=0 // pred_check
    _
  $region3: #{bottleneck_forward.4} parent=0 // pred_check_branch
    %11 = sbr.rel (0) target = $region5
  $region4: #{bottleneck_forward.4} parent=0 // pred_region
    _
  $region5: #{bottleneck_forward.4} parent=0 // pred_fallthru
    _
  // Predicated region
  $region6: #{bottleneck_forward.4} parent=0 // pred_check
    _
  $region7: #{bottleneck_forward.4} parent=0 // pred_check_branch
    %13 = sbr.rel (0) target = $region9
  $region8: #{bottleneck_forward.4} parent=0 // pred_region
    _
  $region9: #{bottleneck_forward.4} parent=0 // pred_fallthru
    _
  %v15 = vld [vmem:[%s0] sm:$0xff]
  %v16 = vld [vmem:[%s0 + $0x8] sm:$0xff]
  %v17 = vld [vmem:[%s0 + $0x10] sm:$0xff]
  %v18 = vld [vmem:[%s0 + $0x18] sm:$0xff]
  %v19 = vld [vmem:[%s0 + $0x20] sm:$0xff]
  %v20 = vld [vmem:[%s0 + $0x28] sm:$0xff]
  %v21 = vld [vmem:[%s0 + $0x30] sm:$0xff]
  %v22 = vld [vmem:[%s0 + $0x38] sm:$0xff]
  %v23 = vld [vmem:[%s0 + $0x40] sm:$0xff]
  %v24 = vld [vmem:[%s0 + $0x48] sm:$0xff]
  %v25 = vld [vmem:[%s0 + $0x50] sm:$0xff]
  %v26 = vld [vmem:[%s0 + $0x58] sm:$0xff]
  %v27 = vld [vmem:[%s0 + $0x60] sm:$0xff]
  %v28 = vld [vmem:[%s0 + $0x68] sm:$0xff]
  %v29 = vld [vmem:[%s0 + $0x70] sm:$0xff]
  %v30 = vld [vmem:[%s0 + $0x78] sm:$0xff]
  %v31 = vpack.c.bf16 %v16, %v15
  %v32 = vpack.c.bf16 %v18, %v17
  %v33 = vpack.c.bf16 %v20, %v19
  %v34 = vpack.c.bf16 %v22, %v21
  %v35 = vpack.c.bf16 %v24, %v23
  %v36 = vpack.c.bf16 %v26, %v25
  %v37 = vpack.c.bf16 %v28, %v27
  %v38 = vpack.c.bf16 %v30, %v29
  %v39 = vld [vmem:[%s1] sm:$0xf]
  %v40 = vld [vmem:[%s1 + $0x4] sm:$0xf]
  %v41 = vld [vmem:[%s1 + $0x8] sm:$0xf]
  %v42 = vld [vmem:[%s1 + $0xc] sm:$0xf]
  %v43 = vld [vmem:[%s1 + $0x10] sm:$0xf]
  %v44 = vld [vmem:[%s1 + $0x14] sm:$0xf]
  %v45 = vld [vmem:[%s1 + $0x18] sm:$0xf]
  %v46 = vld [vmem:[%s1 + $0x1c] sm:$0xf]
  %v47 = vld [vmem:[%s1 + $0x20] sm:$0xf]
  %v48 = vld [vmem:[%s1 + $0x24] sm:$0xf]
  %v49 = vld [vmem:[%s1 + $0x28] sm:$0xf]
  %v50 = vld [vmem:[%s1 + $0x2c] sm:$0xf]
  %v51 = vld [vmem:[%s1 + $0x30] sm:$0xf]
  %v52 = vld [vmem:[%s1 + $0x34] sm:$0xf]
  %v53 = vld [vmem:[%s1 + $0x38] sm:$0xf]
  %v54 = vld [vmem:[%s1 + $0x3c] sm:$0xf]
  %v71 = vunpack.c.l.b16 %v39
  %v72 = vunpack.c.l.b16 %v40
  %v73 = vunpack.c.l.b16 %v41
  %v74 = vunpack.c.l.b16 %v42
  %v75 = vunpack.c.l.b16 %v43
  %v76 = vunpack.c.l.b16 %v44
  %v77 = vunpack.c.l.b16 %v45
  %v78 = vunpack.c.l.b16 %v46
  %v79 = vunpack.c.l.b16 %v47
  %v80 = vunpack.c.l.b16 %v48
  %v81 = vunpack.c.l.b16 %v49
  %v82 = vunpack.c.l.b16 %v50
  %v83 = vunpack.c.l.b16 %v51
  %v84 = vunpack.c.l.b16 %v52
  %v85 = vunpack.c.l.b16 %v53
  %v86 = vunpack.c.l.b16 %v54
  %v87 = vpack.c.b16 %v72, %v71
  %v88 = vpack.c.b16 %v74, %v73
  %v89 = vpack.c.b16 %v76, %v75
  %v90 = vpack.c.b16 %v78, %v77
  %v91 = vpack.c.b16 %v80, %v79
  %v92 = vpack.c.b16 %v82, %v81
  %v93 = vpack.c.b16 %v84, %v83
  %v94 = vpack.c.b16 %v86, %v85
  %103 = vmatprep.subr.bf16.mxu0 0
  %104 = vmatpush1.bf16.msra.mxu0 %v94
  %105 = vmatprep.subr.bf16.mxu0 0
  %106 = vmatpush1.bf16.msra.mxu0 %v93
  %107 = vmatprep.subr.bf16.mxu0 0
  %108 = vmatpush1.bf16.msra.mxu0 %v92
  %109 = vmatprep.subr.bf16.mxu0 0
  %110 = vmatpush1.bf16.msra.mxu0 %v91
  %111 = vmatprep.subr.bf16.mxu0 0
  %112 = vmatpush1.bf16.msra.mxu0 %v90
  %113 = vmatprep.subr.bf16.mxu0 0
  %114 = vmatpush1.bf16.msra.mxu0 %v89
  %115 = vmatprep.subr.bf16.mxu0 0
  %116 = vmatpush1.bf16.msra.mxu0 %v88
  %117 = vmatprep.subr.bf16.mxu0 0
  %118 = vmatpush1.bf16.msra.mxu0 %v87
  %119 = vmatprep.subr.bf16.mxu0 0
  %120 = vmatpush2.bf16.msra.mxu0 0
  %121 = vmatprep.subr.bf16.mxu0 0
  %122 = vmatpush2.bf16.msra.mxu0 0
  %123 = vmatprep.subr.bf16.mxu0 0
  %124 = vmatpush2.bf16.msra.mxu0 0
  %125 = vmatprep.subr.bf16.mxu0 0
  %126 = vmatpush2.bf16.msra.mxu0 0
  %127 = vmatprep.subr.bf16.mxu0 0
  %128 = vmatpush2.bf16.msra.mxu0 0
  %129 = vmatprep.subr.bf16.mxu0 0
  %130 = vmatpush2.bf16.msra.mxu0 0
  %131 = vmatprep.subr.bf16.mxu0 0
  %132 = vmatpush2.bf16.msra.mxu0 0
  %133 = vmatprep.subr.bf16.mxu0 0
  %134 = vmatpush2.bf16.msra.mxu0 0
  %135 = vmatprep.mubr.bf16.mxu0 0
  %136 = vmatmul.mubr.bf16.gmra.mxu0 %v31
  %v137 = vpop.f32.mrf.mxu0
  %v138 = vadd.f32 0.0, %v137
  %v139 = vpop.f32.mrf.mxu0
  %v140 = vpop.f32.mrf.mxu0
  %v141 = vadd.f32 0.0, %v140
  %v142 = vpop.f32.mrf.mxu0
  %143 = vmatprep.mubr.bf16.mxu0 0
  %144 = vmatmul.mubr.bf16.gmra.mxu0 %v32
  %v145 = vpop.f32.mrf.mxu0
  %v146 = vadd.f32 0.0, %v145
  %v147 = vpop.f32.mrf.mxu0
  %v148 = vpop.f32.mrf.mxu0
  %v149 = vadd.f32 0.0, %v148
  %v150 = vpop.f32.mrf.mxu0
  %151 = vmatprep.mubr.bf16.mxu0 0
  %152 = vmatmul.mubr.bf16.gmra.mxu0 %v33
  %v153 = vpop.f32.mrf.mxu0
  %v154 = vadd.f32 0.0, %v153
  %v155 = vpop.f32.mrf.mxu0
  %v156 = vpop.f32.mrf.mxu0
  %v157 = vadd.f32 0.0, %v156
  %v158 = vpop.f32.mrf.mxu0
  %159 = vmatprep.mubr.bf16.mxu0 0
  %160 = vmatmul.mubr.bf16.gmra.mxu0 %v34
  %v161 = vpop.f32.mrf.mxu0
  %v162 = vadd.f32 0.0, %v161
  %v163 = vpop.f32.mrf.mxu0
  %v164 = vpop.f32.mrf.mxu0
  %v165 = vadd.f32 0.0, %v164
  %v166 = vpop.f32.mrf.mxu0
  %167 = vmatprep.mubr.bf16.mxu0 0
  %168 = vmatmul.mubr.bf16.gmra.mxu0 %v35
  %v169 = vpop.f32.mrf.mxu0
  %v170 = vadd.f32 0.0, %v169
  %v171 = vpop.f32.mrf.mxu0
  %v172 = vpop.f32.mrf.mxu0
  %v173 = vadd.f32 0.0, %v172
  %v174 = vpop.f32.mrf.mxu0
  %175 = vmatprep.mubr.bf16.mxu0 0
  %176 = vmatmul.mubr.bf16.gmra.mxu0 %v36
  %v177 = vpop.f32.mrf.mxu0
  %v178 = vadd.f32 0.0, %v177
  %v179 = vpop.f32.mrf.mxu0
  %v180 = vpop.f32.mrf.mxu0
  %v181 = vadd.f32 0.0, %v180
  %v182 = vpop.f32.mrf.mxu0
  %183 = vmatprep.mubr.bf16.mxu0 0
  %184 = vmatmul.mubr.bf16.gmra.mxu0 %v37
  %v185 = vpop.f32.mrf.mxu0
  %v186 = vadd.f32 0.0, %v185
  %v187 = vpop.f32.mrf.mxu0
  %v188 = vpop.f32.mrf.mxu0
  %v189 = vadd.f32 0.0, %v188
  %v190 = vpop.f32.mrf.mxu0
  %191 = vmatprep.mubr.bf16.mxu0 0
  %192 = vmatmul.mubr.bf16.gmra.mxu0 %v38
  %v193 = vpop.f32.mrf.mxu0
  %v194 = vadd.f32 0.0, %v193
  %v195 = vpop.f32.mrf.mxu0
  %v196 = vpop.f32.mrf.mxu0
  %v197 = vadd.f32 0.0, %v196
  %v198 = vpop.f32.mrf.mxu0
  %199 = vdwg.mxu0
  %v200 = vadd.f32 %v138, %v141
  %v201 = vadd.f32 %v200, %v146
  %v202 = vadd.f32 %v201, %v149
  %v203 = vadd.f32 %v202, %v154
  %v204 = vadd.f32 %v203, %v157
  %v205 = vadd.f32 %v204, %v162
  %v206 = vadd.f32 %v205, %v165
  %v207 = vadd.f32 %v206, %v170
  %v208 = vadd.f32 %v207, %v173
  %v209 = vadd.f32 %v208, %v178
  %v210 = vadd.f32 %v209, %v181
  %v211 = vadd.f32 %v210, %v186
  %v212 = vadd.f32 %v211, %v189
  %v213 = vadd.f32 %v212, %v194
  %v214 = vadd.f32 %v213, %v197
  %v215 = vrot.slane %v214, 4
  %v216 = vadd.f32 %v214, %v215
  %v217 = vrot.slane %v216, 2
  %v218 = vadd.f32 %v216, %v217
  %v219 = vrot.slane %v218, 1
  %v220 = vadd.f32 %v218, %v219
  %221 = vst [vmem:[%s3] sm:$0x1] %v220
  %v222 = vmul.f32 %v138, %v138
  %v223 = vmul.f32 %v141, %v141
  %v224 = vmul.f32 %v146, %v146
  %v225 = vmul.f32 %v149, %v149
  %v226 = vmul.f32 %v154, %v154
  %v227 = vmul.f32 %v157, %v157
  %v228 = vmul.f32 %v162, %v162
  %v229 = vmul.f32 %v165, %v165
  %v230 = vmul.f32 %v170, %v170
  %v231 = vmul.f32 %v173, %v173
  %v232 = vmul.f32 %v178, %v178
  %v233 = vmul.f32 %v181, %v181
  %v234 = vmul.f32 %v186, %v186
  %v235 = vmul.f32 %v189, %v189
  %v236 = vmul.f32 %v194, %v194
  %v237 = vmul.f32 %v197, %v197
  %v238 = vadd.f32 %v222, %v223
  %v239 = vadd.f32 %v238, %v224
  %v240 = vadd.f32 %v239, %v225
  %v241 = vadd.f32 %v240, %v226
  %v242 = vadd.f32 %v241, %v227
  %v243 = vadd.f32 %v242, %v228
  %v244 = vadd.f32 %v243, %v229
  %v245 = vadd.f32 %v244, %v230
  %v246 = vadd.f32 %v245, %v231
  %v247 = vadd.f32 %v246, %v232
  %v248 = vadd.f32 %v247, %v233
  %v249 = vadd.f32 %v248, %v234
  %v250 = vadd.f32 %v249, %v235
  %v251 = vadd.f32 %v250, %v236
  %v252 = vadd.f32 %v251, %v237
  %v253 = vrot.slane %v252, 4
  %v254 = vadd.f32 %v252, %v253
  %v255 = vrot.slane %v254, 2
  %v256 = vadd.f32 %v254, %v255
  %v257 = vrot.slane %v256, 1
  %v258 = vadd.f32 %v256, %v257
  %259 = vst [vmem:[%s4] sm:$0x1] %v258
  %v260 = vpack.c.bf16 %v141, %v138
  %v261 = vpack.c.bf16 %v149, %v146
  %v262 = vpack.c.bf16 %v157, %v154
  %v263 = vpack.c.bf16 %v165, %v162
  %v264 = vpack.c.bf16 %v173, %v170
  %v265 = vpack.c.bf16 %v181, %v178
  %v266 = vpack.c.bf16 %v189, %v186
  %v267 = vpack.c.bf16 %v197, %v194
  %v276 = vunpack.c.l.b16 %v260
  %v277 = vunpack.c.h.b16 %v260
  %v278 = vunpack.c.l.b16 %v261
  %v279 = vunpack.c.h.b16 %v261
  %v280 = vunpack.c.l.b16 %v262
  %v281 = vunpack.c.h.b16 %v262
  %v282 = vunpack.c.l.b16 %v263
  %v283 = vunpack.c.h.b16 %v263
  %v284 = vunpack.c.l.b16 %v264
  %v285 = vunpack.c.h.b16 %v264
  %v286 = vunpack.c.l.b16 %v265
  %v287 = vunpack.c.h.b16 %v265
  %v288 = vunpack.c.l.b16 %v266
  %v289 = vunpack.c.h.b16 %v266
  %v290 = vunpack.c.l.b16 %v267
  %v291 = vunpack.c.h.b16 %v267
  %v292 = vpack.c.b16 %v276, %v276
  %v293 = vpack.c.b16 %v277, %v277
  %v294 = vpack.c.b16 %v278, %v278
  %v295 = vpack.c.b16 %v279, %v279
  %v296 = vpack.c.b16 %v280, %v280
  %v297 = vpack.c.b16 %v281, %v281
  %v298 = vpack.c.b16 %v282, %v282
  %v299 = vpack.c.b16 %v283, %v283
  %v300 = vpack.c.b16 %v284, %v284
  %v301 = vpack.c.b16 %v285, %v285
  %v302 = vpack.c.b16 %v286, %v286
  %v303 = vpack.c.b16 %v287, %v287
  %v304 = vpack.c.b16 %v288, %v288
  %v305 = vpack.c.b16 %v289, %v289
  %v306 = vpack.c.b16 %v290, %v290
  %v307 = vpack.c.b16 %v291, %v291
  %324 = vst [vmem:[%s2] sm:$0xf] %v292
  %325 = vst [vmem:[%s2 + $0x4] sm:$0xf] %v293
  %326 = vst [vmem:[%s2 + $0x8] sm:$0xf] %v294
  %327 = vst [vmem:[%s2 + $0xc] sm:$0xf] %v295
  %328 = vst [vmem:[%s2 + $0x10] sm:$0xf] %v296
  %329 = vst [vmem:[%s2 + $0x14] sm:$0xf] %v297
  %330 = vst [vmem:[%s2 + $0x18] sm:$0xf] %v298
  %331 = vst [vmem:[%s2 + $0x1c] sm:$0xf] %v299
  %332 = vst [vmem:[%s2 + $0x20] sm:$0xf] %v300
  %333 = vst [vmem:[%s2 + $0x24] sm:$0xf] %v301
  %334 = vst [vmem:[%s2 + $0x28] sm:$0xf] %v302
  %335 = vst [vmem:[%s2 + $0x2c] sm:$0xf] %v303
  %336 = vst [vmem:[%s2 + $0x30] sm:$0xf] %v304
  %337 = vst [vmem:[%s2 + $0x34] sm:$0xf] %v305
  %338 = vst [vmem:[%s2 + $0x38] sm:$0xf] %v306
  %339 = vst [vmem:[%s2 + $0x3c] sm:$0xf] %v307
  // Predicated region
  $region10: #{bottleneck_forward.4} parent=0 // pred_check
    _
  $region11: #{bottleneck_forward.4} parent=0 // pred_check_branch
    %341 = sbr.rel (0) target = $region13
  $region12: #{bottleneck_forward.4} parent=0 // pred_region
    _
  $region13: #{bottleneck_forward.4} parent=0 // pred_fallthru
    _
  // Predicated region
  $region14: #{bottleneck_forward.4} parent=0 // pred_check
    _
  $region15: #{bottleneck_forward.4} parent=0 // pred_check_branch
    %343 = sbr.rel (0) target = $region17
  $region16: #{bottleneck_forward.4} parent=0 // pred_region
    _
  $region17: #{bottleneck_forward.4} parent=0 // pred_fallthru
    _
  // Predicated region
  $region18: #{bottleneck_forward.4} parent=0 // pred_check
    _
  $region19: #{bottleneck_forward.4} parent=0 // pred_check_branch
    %345 = sbr.rel (0) target = $region21
  $region20: #{bottleneck_forward.4} parent=0 // pred_region
    _
  $region21: #{bottleneck_forward.4} parent=0 // pred_fallthru
    _
  // Predicated region
  $region22: #{bottleneck_forward.4} parent=0 // pred_check
    _
  $region23: #{bottleneck_forward.4} parent=0 // pred_check_branch
    %347 = sbr.rel (0) target = $region25
  $region24: #{bottleneck_forward.4} parent=0 // pred_region
    _
  $region25: #{bottleneck_forward.4} parent=0 // pred_fallthru
    _
  // Predicated region
  $region26: #{bottleneck_forward.4} parent=0 // pred_check
    _
  $region27: #{bottleneck_forward.4} parent=0 // pred_check_branch
    %349 = sbr.rel (0) target = $region29
  $region28: #{bottleneck_forward.4} parent=0 // pred_region
    _
  $region29: #{bottleneck_forward.4} parent=0 // pred_fallthru
    _
  // Predicated region
  $region30: #{bottleneck_forward.4} parent=0 // pred_check
    _
  $region31: #{bottleneck_forward.4} parent=0 // pred_check_branch
    %351 = sbr.rel (0) target = $region33
  $region32: #{bottleneck_forward.4} parent=0 // pred_region
    _
  $region33: #{bottleneck_forward.4} parent=0 // pred_fallthru
    _

// kernel: bottleneck_forward.6
$region0: #{bottleneck_forward.6}
  #allocation0 [shape = 'u32[]', space=smem, size = 0x4, offset = 0x4, fixed_abs, tag = 'smem constant byte address 0x4 - core index']
  #allocation1 [shape = 'u32[144,128]{1,0:T(1,128)}', space=vmem, size = 0x12000, scoped, tag = 'internal scratch']
  %s0 = inlined_call_operand.vmem [shape: bf16[128,128], index: 0, kind: input, shape index: {}]
  %s1 = inlined_call_operand.vmem [shape: f32[1,128], index: 1, kind: input, shape index: {}]
  %s2 = inlined_call_operand.vmem [shape: f32[1,128], index: 2, kind: input, shape index: {}]
  %s3 = inlined_call_operand.vmem [shape: bf16[128,128], index: 3, kind: input, shape index: {}]
  %s4 = inlined_call_operand.vmem [shape: bf16[128,128], index: 4, kind: output, shape index: {0}]
  %s5 = inlined_call_operand.vmem [shape: f32[1,1,128], index: 5, kind: output, shape index: {1}]
  %s6 = inlined_call_operand.vmem [shape: f32[1,1,128], index: 6, kind: output, shape index: {2}]
  %7 = xla_tuple %s4, %s5, %s6
  %s8 = sld [smem:[#allocation0]]
  $region42: #{bottleneck_forward.6} parent=0
    _
  %s10 = ssub.s32 1, %s8
  %s11 = scalar_select 0, %s10, %s8
  // Predicated region
  $region2: #{bottleneck_forward.6} parent=0 // pred_check
    _
  $region3: #{bottleneck_forward.6} parent=0 // pred_check_branch
    %13 = sbr.rel (0) target = $region5
  $region4: #{bottleneck_forward.6} parent=0 // pred_region
    _
  $region5: #{bottleneck_forward.6} parent=0 // pred_fallthru
    _
  // Predicated region
  $region6: #{bottleneck_forward.6} parent=0 // pred_check
    _
  $region7: #{bottleneck_forward.6} parent=0 // pred_check_branch
    %15 = sbr.rel (0) target = $region9
  $region8: #{bottleneck_forward.6} parent=0 // pred_region
    _
  $region9: #{bottleneck_forward.6} parent=0 // pred_fallthru
    _
  // Predicated region
  $region10: #{bottleneck_forward.6} parent=0 // pred_check
    _
  $region11: #{bottleneck_forward.6} parent=0 // pred_check_branch
    %17 = sbr.rel (0) target = $region13
  $region12: #{bottleneck_forward.6} parent=0 // pred_region
    _
  $region13: #{bottleneck_forward.6} parent=0 // pred_fallthru
    _
  // Predicated region
  $region14: #{bottleneck_forward.6} parent=0 // pred_check
    _
  $region15: #{bottleneck_forward.6} parent=0 // pred_check_branch
    %19 = sbr.rel (0) target = $region17
  $region16: #{bottleneck_forward.6} parent=0 // pred_region
    _
  $region17: #{bottleneck_forward.6} parent=0 // pred_fallthru
    _
  %v21 = vld [vmem:[%s0] sm:$0xf]
  %v22 = vld [vmem:[%s0 + $0x4] sm:$0xf]
  %v23 = vld [vmem:[%s0 + $0x8] sm:$0xf]
  %v24 = vld [vmem:[%s0 + $0xc] sm:$0xf]
  %v25 = vld [vmem:[%s0 + $0x10] sm:$0xf]
  %v26 = vld [vmem:[%s0 + $0x14] sm:$0xf]
  %v27 = vld [vmem:[%s0 + $0x18] sm:$0xf]
  %v28 = vld [vmem:[%s0 + $0x1c] sm:$0xf]
  %v29 = vld [vmem:[%s0 + $0x20] sm:$0xf]
  %v30 = vld [vmem:[%s0 + $0x24] sm:$0xf]
  %v31 = vld [vmem:[%s0 + $0x28] sm:$0xf]
  %v32 = vld [vmem:[%s0 + $0x2c] sm:$0xf]
  %v33 = vld [vmem:[%s0 + $0x30] sm:$0xf]
  %v34 = vld [vmem:[%s0 + $0x34] sm:$0xf]
  %v35 = vld [vmem:[%s0 + $0x38] sm:$0xf]
  %v36 = vld [vmem:[%s0 + $0x3c] sm:$0xf]
  %v37 = vld [vmem:[%s1] sm:$0x1]
  %v38 = vunpack.c.l.bf16 %v21
  %v39 = vunpack.c.l.bf16 %v22
  %v40 = vunpack.c.l.bf16 %v23
  %v41 = vunpack.c.l.bf16 %v24
  %v42 = vunpack.c.l.bf16 %v25
  %v43 = vunpack.c.l.bf16 %v26
  %v44 = vunpack.c.l.bf16 %v27
  %v45 = vunpack.c.l.bf16 %v28
  %v46 = vunpack.c.l.bf16 %v29
  %v47 = vunpack.c.l.bf16 %v30
  %v48 = vunpack.c.l.bf16 %v31
  %v49 = vunpack.c.l.bf16 %v32
  %v50 = vunpack.c.l.bf16 %v33
  %v51 = vunpack.c.l.bf16 %v34
  %v52 = vunpack.c.l.bf16 %v35
  %v53 = vunpack.c.l.bf16 %v36
  %v55 = vlaneseq
  %v56 = vshrl.u32 %v55, 7
  %v57 = vsub.s32 0, %v56
  %v58 = vrot.slane %v37, %v57
  %v60 = vmul.f32 %v38, %v58
  %v61 = vmul.f32 %v39, %v58
  %v62 = vmul.f32 %v40, %v58
  %v63 = vmul.f32 %v41, %v58
  %v64 = vmul.f32 %v42, %v58
  %v65 = vmul.f32 %v43, %v58
  %v66 = vmul.f32 %v44, %v58
  %v67 = vmul.f32 %v45, %v58
  %v68 = vmul.f32 %v46, %v58
  %v69 = vmul.f32 %v47, %v58
  %v70 = vmul.f32 %v48, %v58
  %v71 = vmul.f32 %v49, %v58
  %v72 = vmul.f32 %v50, %v58
  %v73 = vmul.f32 %v51, %v58
  %v74 = vmul.f32 %v52, %v58
  %v75 = vmul.f32 %v53, %v58
  %v76 = vld [vmem:[%s2] sm:$0x1]
  %v78 = vlaneseq
  %v79 = vshrl.u32 %v78, 7
  %v80 = vsub.s32 0, %v79
  %v81 = vrot.slane %v76, %v80
  %v83 = vadd.f32 %v60, %v81
  %v84 = vadd.f32 %v61, %v81
  %v85 = vadd.f32 %v62, %v81
  %v86 = vadd.f32 %v63, %v81
  %v87 = vadd.f32 %v64, %v81
  %v88 = vadd.f32 %v65, %v81
  %v89 = vadd.f32 %v66, %v81
  %v90 = vadd.f32 %v67, %v81
  %v91 = vadd.f32 %v68, %v81
  %v92 = vadd.f32 %v69, %v81
  %v93 = vadd.f32 %v70, %v81
  %v94 = vadd.f32 %v71, %v81
  %v95 = vadd.f32 %v72, %v81
  %v96 = vadd.f32 %v73, %v81
  %v97 = vadd.f32 %v74, %v81
  %v98 = vadd.f32 %v75, %v81
  %v99 = vmax.f32 %v83, 0.0
  %v100 = vmax.f32 %v84, 0.0
  %v101 = vmax.f32 %v85, 0.0
  %v102 = vmax.f32 %v86, 0.0
  %v103 = vmax.f32 %v87, 0.0
  %v104 = vmax.f32 %v88, 0.0
  %v105 = vmax.f32 %v89, 0.0
  %v106 = vmax.f32 %v90, 0.0
  %v107 = vmax.f32 %v91, 0.0
  %v108 = vmax.f32 %v92, 0.0
  %v109 = vmax.f32 %v93, 0.0
  %v110 = vmax.f32 %v94, 0.0
  %v111 = vmax.f32 %v95, 0.0
  %v112 = vmax.f32 %v96, 0.0
  %v113 = vmax.f32 %v97, 0.0
  %v114 = vmax.f32 %v98, 0.0
  %v115 = vpack.c.bf16 %v100, %v99
  %v116 = vpack.c.bf16 %v102, %v101
  %v117 = vpack.c.bf16 %v104, %v103
  %v118 = vpack.c.bf16 %v106, %v105
  %v119 = vpack.c.bf16 %v108, %v107
  %v120 = vpack.c.bf16 %v110, %v109
  %v121 = vpack.c.bf16 %v112, %v111
  %v122 = vpack.c.bf16 %v114, %v113
  %v123 = vld [vmem:[%s3] sm:$0xf]
  %v124 = vld [vmem:[%s3 + $0x4] sm:$0xf]
  %v125 = vld [vmem:[%s3 + $0x8] sm:$0xf]
  %v126 = vld [vmem:[%s3 + $0xc] sm:$0xf]
  %v127 = vld [vmem:[%s3 + $0x10] sm:$0xf]
  %v128 = vld [vmem:[%s3 + $0x14] sm:$0xf]
  %v129 = vld [vmem:[%s3 + $0x18] sm:$0xf]
  %v130 = vld [vmem:[%s3 + $0x1c] sm:$0xf]
  %v131 = vld [vmem:[%s3 + $0x20] sm:$0xf]
  %v132 = vld [vmem:[%s3 + $0x24] sm:$0xf]
  %v133 = vld [vmem:[%s3 + $0x28] sm:$0xf]
  %v134 = vld [vmem:[%s3 + $0x2c] sm:$0xf]
  %v135 = vld [vmem:[%s3 + $0x30] sm:$0xf]
  %v136 = vld [vmem:[%s3 + $0x34] sm:$0xf]
  %v137 = vld [vmem:[%s3 + $0x38] sm:$0xf]
  %v138 = vld [vmem:[%s3 + $0x3c] sm:$0xf]
  %v155 = vunpack.c.l.b16 %v123
  %v156 = vunpack.c.l.b16 %v124
  %v157 = vunpack.c.l.b16 %v125
  %v158 = vunpack.c.l.b16 %v126
  %v159 = vunpack.c.l.b16 %v127
  %v160 = vunpack.c.l.b16 %v128
  %v161 = vunpack.c.l.b16 %v129
  %v162 = vunpack.c.l.b16 %v130
  %v163 = vunpack.c.l.b16 %v131
  %v164 = vunpack.c.l.b16 %v132
  %v165 = vunpack.c.l.b16 %v133
  %v166 = vunpack.c.l.b16 %v134
  %v167 = vunpack.c.l.b16 %v135
  %v168 = vunpack.c.l.b16 %v136
  %v169 = vunpack.c.l.b16 %v137
  %v170 = vunpack.c.l.b16 %v138
  %v171 = vpack.c.b16 %v156, %v155
  %v172 = vpack.c.b16 %v158, %v157
  %v173 = vpack.c.b16 %v160, %v159
  %v174 = vpack.c.b16 %v162, %v161
  %v175 = vpack.c.b16 %v164, %v163
  %v176 = vpack.c.b16 %v166, %v165
  %v177 = vpack.c.b16 %v168, %v167
  %v178 = vpack.c.b16 %v170, %v169
  %187 = vmatprep.subr.bf16.mxu0 0
  %188 = vmatpush1.bf16.msra.mxu0 %v178
  %189 = vmatprep.subr.bf16.mxu0 0
  %190 = vmatpush1.bf16.msra.mxu0 %v177
  %191 = vmatprep.subr.bf16.mxu0 0
  %192 = vmatpush1.bf16.msra.mxu0 %v176
  %193 = vmatprep.subr.bf16.mxu0 0
  %194 = vmatpush1.bf16.msra.mxu0 %v175
  %195 = vmatprep.subr.bf16.mxu0 0
  %196 = vmatpush1.bf16.msra.mxu0 %v174
  %197 = vmatprep.subr.bf16.mxu0 0
  %198 = vmatpush1.bf16.msra.mxu0 %v173
  %199 = vmatprep.subr.bf16.mxu0 0
  %200 = vmatpush1.bf16.msra.mxu0 %v172
  %201 = vmatprep.subr.bf16.mxu0 0
  %202 = vmatpush1.bf16.msra.mxu0 %v171
  %203 = vmatprep.subr.bf16.mxu0 0
  %204 = vmatpush2.bf16.msra.mxu0 0
  %205 = vmatprep.subr.bf16.mxu0 0
  %206 = vmatpush2.bf16.msra.mxu0 0
  %207 = vmatprep.subr.bf16.mxu0 0
  %208 = vmatpush2.bf16.msra.mxu0 0
  %209 = vmatprep.subr.bf16.mxu0 0
  %210 = vmatpush2.bf16.msra.mxu0 0
  %211 = vmatprep.subr.bf16.mxu0 0
  %212 = vmatpush2.bf16.msra.mxu0 0
  %213 = vmatprep.subr.bf16.mxu0 0
  %214 = vmatpush2.bf16.msra.mxu0 0
  %215 = vmatprep.subr.bf16.mxu0 0
  %216 = vmatpush2.bf16.msra.mxu0 0
  %217 = vmatprep.subr.bf16.mxu0 0
  %218 = vmatpush2.bf16.msra.mxu0 0
  %219 = vmatprep.mubr.bf16.mxu0 0
  %220 = vmatmul.mubr.bf16.gmra.mxu0 %v115
  %v221 = vpop.f32.mrf.mxu0
  %v222 = vadd.f32 0.0, %v221
  %v223 = vpop.f32.mrf.mxu0
  %v224 = vpop.f32.mrf.mxu0
  %v225 = vadd.f32 0.0, %v224
  %v226 = vpop.f32.mrf.mxu0
  %227 = vmatprep.mubr.bf16.mxu0 0
  %228 = vmatmul.mubr.bf16.gmra.mxu0 %v116
  %v229 = vpop.f32.mrf.mxu0
  %v230 = vadd.f32 0.0, %v229
  %v231 = vpop.f32.mrf.mxu0
  %v232 = vpop.f32.mrf.mxu0
  %v233 = vadd.f32 0.0, %v232
  %v234 = vpop.f32.mrf.mxu0
  %235 = vmatprep.mubr.bf16.mxu0 0
  %236 = vmatmul.mubr.bf16.gmra.mxu0 %v117
  %v237 = vpop.f32.mrf.mxu0
  %v238 = vadd.f32 0.0, %v237
  %v239 = vpop.f32.mrf.mxu0
  %v240 = vpop.f32.mrf.mxu0
  %v241 = vadd.f32 0.0, %v240
  %v242 = vpop.f32.mrf.mxu0
  %243 = vmatprep.mubr.bf16.mxu0 0
  %244 = vmatmul.mubr.bf16.gmra.mxu0 %v118
  %v245 = vpop.f32.mrf.mxu0
  %v246 = vadd.f32 0.0, %v245
  %v247 = vpop.f32.mrf.mxu0
  %v248 = vpop.f32.mrf.mxu0
  %v249 = vadd.f32 0.0, %v248
  %v250 = vpop.f32.mrf.mxu0
  %251 = vmatprep.mubr.bf16.mxu0 0
  %252 = vmatmul.mubr.bf16.gmra.mxu0 %v119
  %v253 = vpop.f32.mrf.mxu0
  %v254 = vadd.f32 0.0, %v253
  %v255 = vpop.f32.mrf.mxu0
  %v256 = vpop.f32.mrf.mxu0
  %v257 = vadd.f32 0.0, %v256
  %v258 = vpop.f32.mrf.mxu0
  %259 = vmatprep.mubr.bf16.mxu0 0
  %260 = vmatmul.mubr.bf16.gmra.mxu0 %v120
  %v261 = vpop.f32.mrf.mxu0
  %v262 = vadd.f32 0.0, %v261
  %v263 = vpop.f32.mrf.mxu0
  %v264 = vpop.f32.mrf.mxu0
  %v265 = vadd.f32 0.0, %v264
  %v266 = vpop.f32.mrf.mxu0
  %267 = vmatprep.mubr.bf16.mxu0 0
  %268 = vmatmul.mubr.bf16.gmra.mxu0 %v121
  %v269 = vpop.f32.mrf.mxu0
  %v270 = vadd.f32 0.0, %v269
  %v271 = vpop.f32.mrf.mxu0
  %v272 = vpop.f32.mrf.mxu0
  %v273 = vadd.f32 0.0, %v272
  %v274 = vpop.f32.mrf.mxu0
  %275 = vmatprep.mubr.bf16.mxu0 0
  %276 = vmatmul.mubr.bf16.gmra.mxu0 %v122
  %v277 = vpop.f32.mrf.mxu0
  %v278 = vadd.f32 0.0, %v277
  %v279 = vpop.f32.mrf.mxu0
  %v280 = vpop.f32.mrf.mxu0
  %v281 = vadd.f32 0.0, %v280
  %v282 = vpop.f32.mrf.mxu0
  %283 = vdwg.mxu0
  %v284 = vadd.f32 %v222, %v225
  %v285 = vadd.f32 %v284, %v230
  %v286 = vadd.f32 %v285, %v233
  %v287 = vadd.f32 %v286, %v238
  %v288 = vadd.f32 %v287, %v241
  %v289 = vadd.f32 %v288, %v246
  %v290 = vadd.f32 %v289, %v249
  %v291 = vadd.f32 %v290, %v254
  %v292 = vadd.f32 %v291, %v257
  %v293 = vadd.f32 %v292, %v262
  %v294 = vadd.f32 %v293, %v265
  %v295 = vadd.f32 %v294, %v270
  %v296 = vadd.f32 %v295, %v273
  %v297 = vadd.f32 %v296, %v278
  %v298 = vadd.f32 %v297, %v281
  %v299 = vrot.slane %v298, 4
  %v300 = vadd.f32 %v298, %v299
  %v301 = vrot.slane %v300, 2
  %v302 = vadd.f32 %v300, %v301
  %v303 = vrot.slane %v302, 1
  %v304 = vadd.f32 %v302, %v303
  %305 = vst [vmem:[%s5] sm:$0x1] %v304
  %v306 = vmul.f32 %v222, %v222
  %v307 = vmul.f32 %v225, %v225
  %v308 = vmul.f32 %v230, %v230
  %v309 = vmul.f32 %v233, %v233
  %v310 = vmul.f32 %v238, %v238
  %v311 = vmul.f32 %v241, %v241
  %v312 = vmul.f32 %v246, %v246
  %v313 = vmul.f32 %v249, %v249
  %v314 = vmul.f32 %v254, %v254
  %v315 = vmul.f32 %v257, %v257
  %v316 = vmul.f32 %v262, %v262
  %v317 = vmul.f32 %v265, %v265
  %v318 = vmul.f32 %v270, %v270
  %v319 = vmul.f32 %v273, %v273
  %v320 = vmul.f32 %v278, %v278
  %v321 = vmul.f32 %v281, %v281
  %v322 = vadd.f32 %v306, %v307
  %v323 = vadd.f32 %v322, %v308
  %v324 = vadd.f32 %v323, %v309
  %v325 = vadd.f32 %v324, %v310
  %v326 = vadd.f32 %v325, %v311
  %v327 = vadd.f32 %v326, %v312
  %v328 = vadd.f32 %v327, %v313
  %v329 = vadd.f32 %v328, %v314
  %v330 = vadd.f32 %v329, %v315
  %v331 = vadd.f32 %v330, %v316
  %v332 = vadd.f32 %v331, %v317
  %v333 = vadd.f32 %v332, %v318
  %v334 = vadd.f32 %v333, %v319
  %v335 = vadd.f32 %v334, %v320
  %v336 = vadd.f32 %v335, %v321
  %v337 = vrot.slane %v336, 4
  %v338 = vadd.f32 %v336, %v337
  %v339 = vrot.slane %v338, 2
  %v340 = vadd.f32 %v338, %v339
  %v341 = vrot.slane %v340, 1
  %v342 = vadd.f32 %v340, %v341
  %343 = vst [vmem:[%s6] sm:$0x1] %v342
  %v344 = vpack.c.bf16 %v225, %v222
  %v345 = vpack.c.bf16 %v233, %v230
  %v346 = vpack.c.bf16 %v241, %v238
  %v347 = vpack.c.bf16 %v249, %v246
  %v348 = vpack.c.bf16 %v257, %v254
  %v349 = vpack.c.bf16 %v265, %v262
  %v350 = vpack.c.bf16 %v273, %v270
  %v351 = vpack.c.bf16 %v281, %v278
  %v360 = vunpack.c.l.b16 %v344
  %v361 = vunpack.c.h.b16 %v344
  %v362 = vunpack.c.l.b16 %v345
  %v363 = vunpack.c.h.b16 %v345
  %v364 = vunpack.c.l.b16 %v346
  %v365 = vunpack.c.h.b16 %v346
  %v366 = vunpack.c.l.b16 %v347
  %v367 = vunpack.c.h.b16 %v347
  %v368 = vunpack.c.l.b16 %v348
  %v369 = vunpack.c.h.b16 %v348
  %v370 = vunpack.c.l.b16 %v349
  %v371 = vunpack.c.h.b16 %v349
  %v372 = vunpack.c.l.b16 %v350
  %v373 = vunpack.c.h.b16 %v350
  %v374 = vunpack.c.l.b16 %v351
  %v375 = vunpack.c.h.b16 %v351
  %v376 = vpack.c.b16 %v360, %v360
  %v377 = vpack.c.b16 %v361, %v361
  %v378 = vpack.c.b16 %v362, %v362
  %v379 = vpack.c.b16 %v363, %v363
  %v380 = vpack.c.b16 %v364, %v364
  %v381 = vpack.c.b16 %v365, %v365
  %v382 = vpack.c.b16 %v366, %v366
  %v383 = vpack.c.b16 %v367, %v367
  %v384 = vpack.c.b16 %v368, %v368
  %v385 = vpack.c.b16 %v369, %v369
  %v386 = vpack.c.b16 %v370, %v370
  %v387 = vpack.c.b16 %v371, %v371
  %v388 = vpack.c.b16 %v372, %v372
  %v389 = vpack.c.b16 %v373, %v373
  %v390 = vpack.c.b16 %v374, %v374
  %v391 = vpack.c.b16 %v375, %v375
  %408 = vst [vmem:[%s4] sm:$0xf] %v376
  %409 = vst [vmem:[%s4 + $0x4] sm:$0xf] %v377
  %410 = vst [vmem:[%s4 + $0x8] sm:$0xf] %v378
  %411 = vst [vmem:[%s4 + $0xc] sm:$0xf] %v379
  %412 = vst [vmem:[%s4 + $0x10] sm:$0xf] %v380
  %413 = vst [vmem:[%s4 + $0x14] sm:$0xf] %v381
  %414 = vst [vmem:[%s4 + $0x18] sm:$0xf] %v382
  %415 = vst [vmem:[%s4 + $0x1c] sm:$0xf] %v383
  %416 = vst [vmem:[%s4 + $0x20] sm:$0xf] %v384
  %417 = vst [vmem:[%s4 + $0x24] sm:$0xf] %v385
  %418 = vst [vmem:[%s4 + $0x28] sm:$0xf] %v386
  %419 = vst [vmem:[%s4 + $0x2c] sm:$0xf] %v387
  %420 = vst [vmem:[%s4 + $0x30] sm:$0xf] %v388
  %421 = vst [vmem:[%s4 + $0x34] sm:$0xf] %v389
  %422 = vst [vmem:[%s4 + $0x38] sm:$0xf] %v390
  %423 = vst [vmem:[%s4 + $0x3c] sm:$0xf] %v391
  // Predicated region
  $region18: #{bottleneck_forward.6} parent=0 // pred_check
    _
  $region19: #{bottleneck_forward.6} parent=0 // pred_check_branch
    %425 = sbr.rel (0) target = $region21
  $region20: #{bottleneck_forward.6} parent=0 // pred_region
    _
  $region21: #{bottleneck_forward.6} parent=0 // pred_fallthru
    _
  // Predicated region
  $region22: #{bottleneck_forward.6} parent=0 // pred_check
    _
  $region23: #{bottleneck_forward.6} parent=0 // pred_check_branch
    %427 = sbr.rel (0) target = $region25
  $region24: #{bottleneck_forward.6} parent=0 // pred_region
    _
  $region25: #{bottleneck_forward.6} parent=0 // pred_fallthru
    _
  // Predicated region
  $region26: #{bottleneck_forward.6} parent=0 // pred_check
    _
  $region27: #{bottleneck_forward.6} parent=0 // pred_check_branch
    %429 = sbr.rel (0) target = $region29
  $region28: #{bottleneck_forward.6} parent=0 // pred_region
    _
  $region29: #{bottleneck_forward.6} parent=0 // pred_fallthru
    _
  // Predicated region
  $region30: #{bottleneck_forward.6} parent=0 // pred_check
    _
  $region31: #{bottleneck_forward.6} parent=0 // pred_check_branch
    %431 = sbr.rel (0) target = $region33
  $region32: #{bottleneck_forward.6} parent=0 // pred_region
    _
  $region33: #{bottleneck_forward.6} parent=0 // pred_fallthru
    _
  // Predicated region
  $region34: #{bottleneck_forward.6} parent=0 // pred_check
    _
  $region35: #{bottleneck_forward.6} parent=0 // pred_check_branch
    %433 = sbr.rel (0) target = $region37
  $region36: #{bottleneck_forward.6} parent=0 // pred_region
    _
  $region37: #{bottleneck_forward.6} parent=0 // pred_fallthru
    _
  // Predicated region
  $region38: #{bottleneck_forward.6} parent=0 // pred_check
    _
  $region39: #{bottleneck_forward.6} parent=0 // pred_check_branch
    %435 = sbr.rel (0) target = $region41
  $region40: #{bottleneck_forward.6} parent=0 // pred_region
    _
  $region41: #{bottleneck_forward.6} parent=0 // pred_fallthru
    _

// kernel: bottleneck_forward.7
$region0: #{bottleneck_forward.7}
  #allocation0 [shape = 'u32[]', space=smem, size = 0x4, offset = 0x4, fixed_abs, tag = 'smem constant byte address 0x4 - core index']
  #allocation1 [shape = 'u32[144,128]{1,0:T(1,128)}', space=vmem, size = 0x12000, scoped, tag = 'internal scratch']
  %s0 = inlined_call_operand.vmem [shape: bf16[128,128], index: 0, kind: input, shape index: {}]
  %s1 = inlined_call_operand.vmem [shape: f32[1,128], index: 1, kind: input, shape index: {}]
  %s2 = inlined_call_operand.vmem [shape: f32[1,128], index: 2, kind: input, shape index: {}]
  %s3 = inlined_call_operand.vmem [shape: f32[128,128], index: 3, kind: input, shape index: {}]
  %s4 = inlined_call_operand.hbm [shape: f32[128,128], index: 4, kind: output, shape index: {}]
  %s5 = sld [smem:[#allocation0]]
  $region26: #{bottleneck_forward.7} parent=0
    _
  %s7 = ssub.s32 1, %s5
  %s8 = scalar_select 0, %s7, %s5
  $region1: #{bottleneck_forward.7} parent=0
    #allocation2 [shape = 'u8[65536]{0}', space=vmem, size = 0x10000, scoped, tag = 'output window, operand 0, single buffered']
    #allocation3 [shape = 's32[1]{0}', space=sflag, size = 0x4, scoped, tag = 'scoped memory for bottleneck_forward.7']
    %9 = vsyncpa [#allocation3], 0
    // Predicated region
    $region2: #{bottleneck_forward.7} parent=1 // pred_check
      _
    $region3: #{bottleneck_forward.7} parent=1 // pred_check_branch
      %11 = sbr.rel (0) target = $region5
    $region4: #{bottleneck_forward.7} parent=1 // pred_region
      _
    $region5: #{bottleneck_forward.7} parent=1 // pred_fallthru
      _
    // Predicated region
    $region6: #{bottleneck_forward.7} parent=1 // pred_check
      _
    $region7: #{bottleneck_forward.7} parent=1 // pred_check_branch
      %13 = sbr.rel (0) target = $region9
    $region8: #{bottleneck_forward.7} parent=1 // pred_region
      _
    $region9: #{bottleneck_forward.7} parent=1 // pred_fallthru
      _
    // Predicated region
    $region10: #{bottleneck_forward.7} parent=1 // pred_check
      _
    $region11: #{bottleneck_forward.7} parent=1 // pred_check_branch
      %15 = sbr.rel (0) target = $region13
    $region12: #{bottleneck_forward.7} parent=1 // pred_region
      _
    $region13: #{bottleneck_forward.7} parent=1 // pred_fallthru
      _
    // Predicated region
    $region14: #{bottleneck_forward.7} parent=1 // pred_check
      _
    $region15: #{bottleneck_forward.7} parent=1 // pred_check_branch
      %17 = sbr.rel (0) target = $region17
    $region16: #{bottleneck_forward.7} parent=1 // pred_region
      _
    $region17: #{bottleneck_forward.7} parent=1 // pred_fallthru
      _
    %v18 = vld [vmem:[%s0] sm:$0xf]
    %v19 = vld [vmem:[%s0 + $0x4] sm:$0xf]
    %v20 = vld [vmem:[%s0 + $0x8] sm:$0xf]
    %v21 = vld [vmem:[%s0 + $0xc] sm:$0xf]
    %v22 = vld [vmem:[%s0 + $0x10] sm:$0xf]
    %v23 = vld [vmem:[%s0 + $0x14] sm:$0xf]
    %v24 = vld [vmem:[%s0 + $0x18] sm:$0xf]
    %v25 = vld [vmem:[%s0 + $0x1c] sm:$0xf]
    %v26 = vld [vmem:[%s0 + $0x20] sm:$0xf]
    %v27 = vld [vmem:[%s0 + $0x24] sm:$0xf]
    %v28 = vld [vmem:[%s0 + $0x28] sm:$0xf]
    %v29 = vld [vmem:[%s0 + $0x2c] sm:$0xf]
    %v30 = vld [vmem:[%s0 + $0x30] sm:$0xf]
    %v31 = vld [vmem:[%s0 + $0x34] sm:$0xf]
    %v32 = vld [vmem:[%s0 + $0x38] sm:$0xf]
    %v33 = vld [vmem:[%s0 + $0x3c] sm:$0xf]
    %v34 = vld [vmem:[%s1] sm:$0x1]
    %v35 = vunpack.c.l.bf16 %v18
    %v36 = vunpack.c.l.bf16 %v19
    %v37 = vunpack.c.l.bf16 %v20
    %v38 = vunpack.c.l.bf16 %v21
    %v39 = vunpack.c.l.bf16 %v22
    %v40 = vunpack.c.l.bf16 %v23
    %v41 = vunpack.c.l.bf16 %v24
    %v42 = vunpack.c.l.bf16 %v25
    %v43 = vunpack.c.l.bf16 %v26
    %v44 = vunpack.c.l.bf16 %v27
    %v45 = vunpack.c.l.bf16 %v28
    %v46 = vunpack.c.l.bf16 %v29
    %v47 = vunpack.c.l.bf16 %v30
    %v48 = vunpack.c.l.bf16 %v31
    %v49 = vunpack.c.l.bf16 %v32
    %v50 = vunpack.c.l.bf16 %v33
    %v52 = vlaneseq
    %v53 = vshrl.u32 %v52, 7
    %v54 = vsub.s32 0, %v53
    %v55 = vrot.slane %v34, %v54
    %v57 = vmul.f32 %v35, %v55
    %v58 = vmul.f32 %v36, %v55
    %v59 = vmul.f32 %v37, %v55
    %v60 = vmul.f32 %v38, %v55
    %v61 = vmul.f32 %v39, %v55
    %v62 = vmul.f32 %v40, %v55
    %v63 = vmul.f32 %v41, %v55
    %v64 = vmul.f32 %v42, %v55
    %v65 = vmul.f32 %v43, %v55
    %v66 = vmul.f32 %v44, %v55
    %v67 = vmul.f32 %v45, %v55
    %v68 = vmul.f32 %v46, %v55
    %v69 = vmul.f32 %v47, %v55
    %v70 = vmul.f32 %v48, %v55
    %v71 = vmul.f32 %v49, %v55
    %v72 = vmul.f32 %v50, %v55
    %v73 = vld [vmem:[%s2] sm:$0x1]
    %v75 = vlaneseq
    %v76 = vshrl.u32 %v75, 7
    %v77 = vsub.s32 0, %v76
    %v78 = vrot.slane %v73, %v77
    %v80 = vadd.f32 %v57, %v78
    %v81 = vadd.f32 %v58, %v78
    %v82 = vadd.f32 %v59, %v78
    %v83 = vadd.f32 %v60, %v78
    %v84 = vadd.f32 %v61, %v78
    %v85 = vadd.f32 %v62, %v78
    %v86 = vadd.f32 %v63, %v78
    %v87 = vadd.f32 %v64, %v78
    %v88 = vadd.f32 %v65, %v78
    %v89 = vadd.f32 %v66, %v78
    %v90 = vadd.f32 %v67, %v78
    %v91 = vadd.f32 %v68, %v78
    %v92 = vadd.f32 %v69, %v78
    %v93 = vadd.f32 %v70, %v78
    %v94 = vadd.f32 %v71, %v78
    %v95 = vadd.f32 %v72, %v78
    %v96 = vld [vmem:[%s3] sm:$0xff]
    %v97 = vld [vmem:[%s3 + $0x8] sm:$0xff]
    %v98 = vld [vmem:[%s3 + $0x10] sm:$0xff]
    %v99 = vld [vmem:[%s3 + $0x18] sm:$0xff]
    %v100 = vld [vmem:[%s3 + $0x20] sm:$0xff]
    %v101 = vld [vmem:[%s3 + $0x28] sm:$0xff]
    %v102 = vld [vmem:[%s3 + $0x30] sm:$0xff]
    %v103 = vld [vmem:[%s3 + $0x38] sm:$0xff]
    %v104 = vld [vmem:[%s3 + $0x40] sm:$0xff]
    %v105 = vld [vmem:[%s3 + $0x48] sm:$0xff]
    %v106 = vld [vmem:[%s3 + $0x50] sm:$0xff]
    %v107 = vld [vmem:[%s3 + $0x58] sm:$0xff]
    %v108 = vld [vmem:[%s3 + $0x60] sm:$0xff]
    %v109 = vld [vmem:[%s3 + $0x68] sm:$0xff]
    %v110 = vld [vmem:[%s3 + $0x70] sm:$0xff]
    %v111 = vld [vmem:[%s3 + $0x78] sm:$0xff]
    %v112 = vadd.f32 %v80, %v96
    %v113 = vadd.f32 %v81, %v97
    %v114 = vadd.f32 %v82, %v98
    %v115 = vadd.f32 %v83, %v99
    %v116 = vadd.f32 %v84, %v100
    %v117 = vadd.f32 %v85, %v101
    %v118 = vadd.f32 %v86, %v102
    %v119 = vadd.f32 %v87, %v103
    %v120 = vadd.f32 %v88, %v104
    %v121 = vadd.f32 %v89, %v105
    %v122 = vadd.f32 %v90, %v106
    %v123 = vadd.f32 %v91, %v107
    %v124 = vadd.f32 %v92, %v108
    %v125 = vadd.f32 %v93, %v109
    %v126 = vadd.f32 %v94, %v110
    %v127 = vadd.f32 %v95, %v111
    %v128 = vmax.f32 %v112, 0.0
    %v129 = vmax.f32 %v113, 0.0
    %v130 = vmax.f32 %v114, 0.0
    %v131 = vmax.f32 %v115, 0.0
    %v132 = vmax.f32 %v116, 0.0
    %v133 = vmax.f32 %v117, 0.0
    %v134 = vmax.f32 %v118, 0.0
    %v135 = vmax.f32 %v119, 0.0
    %v136 = vmax.f32 %v120, 0.0
    %v137 = vmax.f32 %v121, 0.0
    %v138 = vmax.f32 %v122, 0.0
    %v139 = vmax.f32 %v123, 0.0
    %v140 = vmax.f32 %v124, 0.0
    %v141 = vmax.f32 %v125, 0.0
    %v142 = vmax.f32 %v126, 0.0
    %v143 = vmax.f32 %v127, 0.0
    %144 = vst [vmem:[#allocation2] sm:$0xff] %v128
    %145 = vst [vmem:[#allocation2 + $0x8] sm:$0xff] %v129
    %146 = vst [vmem:[#allocation2 + $0x10] sm:$0xff] %v130
    %147 = vst [vmem:[#allocation2 + $0x18] sm:$0xff] %v131
    %148 = vst [vmem:[#allocation2 + $0x20] sm:$0xff] %v132
    %149 = vst [vmem:[#allocation2 + $0x28] sm:$0xff] %v133
    %150 = vst [vmem:[#allocation2 + $0x30] sm:$0xff] %v134
    %151 = vst [vmem:[#allocation2 + $0x38] sm:$0xff] %v135
    %152 = vst [vmem:[#allocation2 + $0x40] sm:$0xff] %v136
    %153 = vst [vmem:[#allocation2 + $0x48] sm:$0xff] %v137
    %154 = vst [vmem:[#allocation2 + $0x50] sm:$0xff] %v138
    %155 = vst [vmem:[#allocation2 + $0x58] sm:$0xff] %v139
    %156 = vst [vmem:[#allocation2 + $0x60] sm:$0xff] %v140
    %157 = vst [vmem:[#allocation2 + $0x68] sm:$0xff] %v141
    %158 = vst [vmem:[#allocation2 + $0x70] sm:$0xff] %v142
    %159 = vst [vmem:[#allocation2 + $0x78] sm:$0xff] %v143
    // Predicated region
    $region18: #{bottleneck_forward.7} parent=1 // pred_check
      _
    $region19: #{bottleneck_forward.7} parent=1 // pred_check_branch
      %161 = sbr.rel (0) target = $region21
    $region20: #{bottleneck_forward.7} parent=1 // pred_region
      %s163 = ssub.s32 2048, 2048
      %164 = vsyncadd [#allocation3], %s163
      %s165 = sshll.u32 [#allocation2], 4
      %s166 = int_to_ptr.vmem [resolvable:$true] %s165
      %171 = dma.vmem_to_hbm [thread:$0]  %s166, 2048, %s4, [#allocation3], 128, 128, 8
    $region21: #{bottleneck_forward.7} parent=1 // pred_fallthru
      _
    // Predicated region
    $region22: #{bottleneck_forward.7} parent=1 // pred_check
      _
    $region23: #{bottleneck_forward.7} parent=1 // pred_check_branch
      %173 = sbr.rel (0) target = $region25
    $region24: #{bottleneck_forward.7} parent=1 // pred_region
      %174 = dma.done [#allocation3], 2048
    $region25: #{bottleneck_forward.7} parent=1 // pred_fallthru
      _
    %175 = vsyncpa [#allocation3], 1

// kernel: bottleneck_forward.5
$region0: #{bottleneck_forward.5}
  #allocation0 [shape = 'u32[]', space=smem, size = 0x4, offset = 0x4, fixed_abs, tag = 'smem constant byte address 0x4 - core index']
  #allocation1 [shape = 'u32[144,128]{1,0:T(1,128)}', space=vmem, size = 0x12000, scoped, tag = 'internal scratch']
  %s0 = inlined_call_operand.vmem [shape: bf16[2,8,8,128], index: 0, kind: input, shape index: {}]
  %s1 = inlined_call_operand.vmem [shape: f32[1,128], index: 1, kind: input, shape index: {}]
  %s2 = inlined_call_operand.vmem [shape: f32[1,128], index: 2, kind: input, shape index: {}]
  %s3 = inlined_call_operand.vmem [shape: bf16[1152,128], index: 3, kind: input, shape index: {}]
  %s4 = inlined_call_operand.vmem [shape: bf16[2,8,8,128], index: 4, kind: output, shape index: {0}]
  %s5 = inlined_call_operand.vmem [shape: f32[1,1,128], index: 5, kind: output, shape index: {1}]
  %s6 = inlined_call_operand.vmem [shape: f32[1,1,128], index: 6, kind: output, shape index: {2}]
  %7 = xla_tuple %s4, %s5, %s6
  %s8 = sld [smem:[#allocation0]]
  $region42: #{bottleneck_forward.5} parent=0
    _
  %s10 = ssub.s32 1, %s8
  %s11 = scalar_select 0, %s10, %s8
  // Predicated region
  $region2: #{bottleneck_forward.5} parent=0 // pred_check
    _
  $region3: #{bottleneck_forward.5} parent=0 // pred_check_branch
    %13 = sbr.rel (0) target = $region5
  $region4: #{bottleneck_forward.5} parent=0 // pred_region
    _
  $region5: #{bottleneck_forward.5} parent=0 // pred_fallthru
    _
  // Predicated region
  $region6: #{bottleneck_forward.5} parent=0 // pred_check
    _
  $region7: #{bottleneck_forward.5} parent=0 // pred_check_branch
    %15 = sbr.rel (0) target = $region9
  $region8: #{bottleneck_forward.5} parent=0 // pred_region
    _
  $region9: #{bottleneck_forward.5} parent=0 // pred_fallthru
    _
  // Predicated region
  $region10: #{bottleneck_forward.5} parent=0 // pred_check
    _
  $region11: #{bottleneck_forward.5} parent=0 // pred_check_branch
    %17 = sbr.rel (0) target = $region13
  $region12: #{bottleneck_forward.5} parent=0 // pred_region
    _
  $region13: #{bottleneck_forward.5} parent=0 // pred_fallthru
    _
  // Predicated region
  $region14: #{bottleneck_forward.5} parent=0 // pred_check
    _
  $region15: #{bottleneck_forward.5} parent=0 // pred_check_branch
    %19 = sbr.rel (0) target = $region17
  $region16: #{bottleneck_forward.5} parent=0 // pred_region
    _
  $region17: #{bottleneck_forward.5} parent=0 // pred_fallthru
    _
  %v21 = vld [vmem:[%s0] sm:$0xf]
  %v22 = vld [vmem:[%s0 + $0x4] sm:$0xf]
  %v23 = vld [vmem:[%s0 + $0x8] sm:$0xf]
  %v24 = vld [vmem:[%s0 + $0xc] sm:$0xf]
  %v25 = vld [vmem:[%s0 + $0x10] sm:$0xf]
  %v26 = vld [vmem:[%s0 + $0x14] sm:$0xf]
  %v27 = vld [vmem:[%s0 + $0x18] sm:$0xf]
  %v28 = vld [vmem:[%s0 + $0x1c] sm:$0xf]
  %v29 = vld [vmem:[%s0 + $0x20] sm:$0xf]
  %v30 = vld [vmem:[%s0 + $0x24] sm:$0xf]
  %v31 = vld [vmem:[%s0 + $0x28] sm:$0xf]
  %v32 = vld [vmem:[%s0 + $0x2c] sm:$0xf]
  %v33 = vld [vmem:[%s0 + $0x30] sm:$0xf]
  %v34 = vld [vmem:[%s0 + $0x34] sm:$0xf]
  %v35 = vld [vmem:[%s0 + $0x38] sm:$0xf]
  %v36 = vld [vmem:[%s0 + $0x3c] sm:$0xf]
  %v37 = vld [vmem:[%s1] sm:$0x1]
  %v38 = vunpack.c.l.bf16 %v21
  %v39 = vunpack.c.l.bf16 %v22
  %v40 = vunpack.c.l.bf16 %v23
  %v41 = vunpack.c.l.bf16 %v24
  %v42 = vunpack.c.l.bf16 %v25
  %v43 = vunpack.c.l.bf16 %v26
  %v44 = vunpack.c.l.bf16 %v27
  %v45 = vunpack.c.l.bf16 %v28
  %v46 = vunpack.c.l.bf16 %v29
  %v47 = vunpack.c.l.bf16 %v30
  %v48 = vunpack.c.l.bf16 %v31
  %v49 = vunpack.c.l.bf16 %v32
  %v50 = vunpack.c.l.bf16 %v33
  %v51 = vunpack.c.l.bf16 %v34
  %v52 = vunpack.c.l.bf16 %v35
  %v53 = vunpack.c.l.bf16 %v36
  %v55 = vlaneseq
  %v56 = vshrl.u32 %v55, 7
  %v57 = vsub.s32 0, %v56
  %v58 = vrot.slane %v37, %v57
  %v60 = vmul.f32 %v38, %v58
  %v61 = vmul.f32 %v39, %v58
  %v62 = vmul.f32 %v40, %v58
  %v63 = vmul.f32 %v41, %v58
  %v64 = vmul.f32 %v42, %v58
  %v65 = vmul.f32 %v43, %v58
  %v66 = vmul.f32 %v44, %v58
  %v67 = vmul.f32 %v45, %v58
  %v68 = vmul.f32 %v46, %v58
  %v69 = vmul.f32 %v47, %v58
  %v70 = vmul.f32 %v48, %v58
  %v71 = vmul.f32 %v49, %v58
  %v72 = vmul.f32 %v50, %v58
  %v73 = vmul.f32 %v51, %v58
  %v74 = vmul.f32 %v52, %v58
  %v75 = vmul.f32 %v53, %v58
  %v76 = vld [vmem:[%s2] sm:$0x1]
  %v78 = vlaneseq
  %v79 = vshrl.u32 %v78, 7
  %v80 = vsub.s32 0, %v79
  %v81 = vrot.slane %v76, %v80
  %v83 = vadd.f32 %v60, %v81
  %v84 = vadd.f32 %v61, %v81
  %v85 = vadd.f32 %v62, %v81
  %v86 = vadd.f32 %v63, %v81
  %v87 = vadd.f32 %v64, %v81
  %v88 = vadd.f32 %v65, %v81
  %v89 = vadd.f32 %v66, %v81
  %v90 = vadd.f32 %v67, %v81
  %v91 = vadd.f32 %v68, %v81
  %v92 = vadd.f32 %v69, %v81
  %v93 = vadd.f32 %v70, %v81
  %v94 = vadd.f32 %v71, %v81
  %v95 = vadd.f32 %v72, %v81
  %v96 = vadd.f32 %v73, %v81
  %v97 = vadd.f32 %v74, %v81
  %v98 = vadd.f32 %v75, %v81
  %v99 = vmax.f32 %v83, 0.0
  %v100 = vmax.f32 %v84, 0.0
  %v101 = vmax.f32 %v85, 0.0
  %v102 = vmax.f32 %v86, 0.0
  %v103 = vmax.f32 %v87, 0.0
  %v104 = vmax.f32 %v88, 0.0
  %v105 = vmax.f32 %v89, 0.0
  %v106 = vmax.f32 %v90, 0.0
  %v107 = vmax.f32 %v91, 0.0
  %v108 = vmax.f32 %v92, 0.0
  %v109 = vmax.f32 %v93, 0.0
  %v110 = vmax.f32 %v94, 0.0
  %v111 = vmax.f32 %v95, 0.0
  %v112 = vmax.f32 %v96, 0.0
  %v113 = vmax.f32 %v97, 0.0
  %v114 = vmax.f32 %v98, 0.0
  %v115 = vpack.c.bf16 %v99, %v99
  %v116 = vpack.c.bf16 %v100, %v100
  %v117 = vpack.c.bf16 %v101, %v101
  %v118 = vpack.c.bf16 %v102, %v102
  %v119 = vpack.c.bf16 %v103, %v103
  %v120 = vpack.c.bf16 %v104, %v104
  %v121 = vpack.c.bf16 %v105, %v105
  %v122 = vpack.c.bf16 %v106, %v106
  %v123 = vpack.c.bf16 %v107, %v107
  %v124 = vpack.c.bf16 %v108, %v108
  %v125 = vpack.c.bf16 %v109, %v109
  %v126 = vpack.c.bf16 %v110, %v110
  %v127 = vpack.c.bf16 %v111, %v111
  %v128 = vpack.c.bf16 %v112, %v112
  %v129 = vpack.c.bf16 %v113, %v113
  %v130 = vpack.c.bf16 %v114, %v114
  %v132 = vshrl.u32 0, 16
  %v134 = vrot.slane %v132, 7
  %v135 = vshll.u32 0, 16
  %v137 = vor.u32 %v134, %v135
  %v139 = vshrl.u32 %v115, 16
  %v141 = vrot.slane %v139, 7
  %v142 = vshll.u32 %v115, 16
  %v144 = vor.u32 %v141, %v142
  %v146 = vshrl.u32 %v116, 16
  %v148 = vrot.slane %v146, 7
  %v149 = vshll.u32 %v116, 16
  %v151 = vor.u32 %v148, %v149
  %v153 = vshrl.u32 %v117, 16
  %v155 = vrot.slane %v153, 7
  %v156 = vshll.u32 %v117, 16
  %v158 = vor.u32 %v155, %v156
  %v160 = vshrl.u32 %v118, 16
  %v162 = vrot.slane %v160, 7
  %v163 = vshll.u32 %v118, 16
  %v165 = vor.u32 %v162, %v163
  %v167 = vshrl.u32 %v119, 16
  %v169 = vrot.slane %v167, 7
  %v170 = vshll.u32 %v119, 16
  %v172 = vor.u32 %v169, %v170
  %v174 = vshrl.u32 %v120, 16
  %v176 = vrot.slane %v174, 7
  %v177 = vshll.u32 %v120, 16
  %v179 = vor.u32 %v176, %v177
  %v181 = vshrl.u32 %v121, 16
  %v183 = vrot.slane %v181, 7
  %v184 = vshll.u32 %v121, 16
  %v186 = vor.u32 %v183, %v184
  %v188 = vshrl.u32 %v122, 16
  %v190 = vrot.slane %v188, 7
  %v191 = vshll.u32 %v122, 16
  %v193 = vor.u32 %v190, %v191
  %v195 = vshrl.u32 %v123, 16
  %v197 = vrot.slane %v195, 7
  %v198 = vshll.u32 %v123, 16
  %v200 = vor.u32 %v197, %v198
  %v202 = vshrl.u32 %v124, 16
  %v204 = vrot.slane %v202, 7
  %v205 = vshll.u32 %v124, 16
  %v207 = vor.u32 %v204, %v205
  %v209 = vshrl.u32 %v125, 16
  %v211 = vrot.slane %v209, 7
  %v212 = vshll.u32 %v125, 16
  %v214 = vor.u32 %v211, %v212
  %v216 = vshrl.u32 %v126, 16
  %v218 = vrot.slane %v216, 7
  %v219 = vshll.u32 %v126, 16
  %v221 = vor.u32 %v218, %v219
  %v223 = vshrl.u32 %v127, 16
  %v225 = vrot.slane %v223, 7
  %v226 = vshll.u32 %v127, 16
  %v228 = vor.u32 %v225, %v226
  %v230 = vshrl.u32 %v128, 16
  %v232 = vrot.slane %v230, 7
  %v233 = vshll.u32 %v128, 16
  %v235 = vor.u32 %v232, %v233
  %v237 = vshrl.u32 %v129, 16
  %v239 = vrot.slane %v237, 7
  %v240 = vshll.u32 %v129, 16
  %v242 = vor.u32 %v239, %v240
  %v244 = vshrl.u32 %v130, 16
  %v246 = vrot.slane %v244, 7
  %v247 = vshll.u32 %v130, 16
  %v249 = vor.u32 %v246, %v247
  %vm267 = vcmask 1040384
  %vm268 = vsmask.f32 256
  %vm269 = vmand %vm267, %vm268
  %v270 = vsel %vm269, 0, %v137
  %v271 = vsel %vm269, 0, %v144
  %v272 = vsel %vm269, 0, %v151
  %v273 = vsel %vm269, 0, %v158
  %v274 = vsel %vm269, 0, %v165
  %v275 = vsel %vm269, 0, %v172
  %v276 = vsel %vm269, 0, %v179
  %v277 = vsel %vm269, 0, %v186
  %v278 = vsel %vm269, 0, %v193
  %v279 = vsel %vm269, 0, %v200
  %v280 = vsel %vm269, 0, %v207
  %v281 = vsel %vm269, 0, %v214
  %v282 = vsel %vm269, 0, %v221
  %v283 = vsel %vm269, 0, %v228
  %v284 = vsel %vm269, 0, %v235
  %v285 = vsel %vm269, 0, %v242
  %v286 = vsel %vm269, 0, %v249
  %vm287 = vcmask 1044480
  %vm288 = vsmask.f32 4352
  %vm289 = vmand %vm287, %vm288
  %v290 = vsel %vm289, %v270, 0
  %v291 = vsel %vm289, %v271, 0
  %v292 = vsel %vm289, %v272, 0
  %v293 = vsel %vm289, %v273, 0
  %v294 = vsel %vm289, %v274, 0
  %v295 = vsel %vm289, %v275, 0
  %v296 = vsel %vm289, %v276, 0
  %v297 = vsel %vm289, %v277, 0
  %v298 = vsel %vm289, %v278, 0
  %v299 = vsel %vm289, %v279, 0
  %v300 = vsel %vm289, %v280, 0
  %v301 = vsel %vm289, %v281, 0
  %v302 = vsel %vm289, %v282, 0
  %v303 = vsel %vm289, %v283, 0
  %v304 = vsel %vm289, %v284, 0
  %v305 = vsel %vm289, %v285, 0
  %v306 = vsel %vm289, %v286, 0
  %v322 = vunpack.c.l.b16 %v290
  %v323 = vunpack.c.h.b16 %v290
  %v324 = vunpack.c.l.b16 %v291
  %v325 = vunpack.c.h.b16 %v291
  %v326 = vunpack.c.l.b16 %v292
  %v327 = vunpack.c.h.b16 %v292
  %v328 = vunpack.c.l.b16 %v293
  %v329 = vunpack.c.h.b16 %v293
  %v330 = vunpack.c.l.b16 %v294
  %v331 = vunpack.c.h.b16 %v294
  %v332 = vunpack.c.l.b16 %v295
  %v333 = vunpack.c.h.b16 %v295
  %v334 = vunpack.c.l.b16 %v296
  %v335 = vunpack.c.h.b16 %v296
  %v336 = vunpack.c.l.b16 %v297
  %v337 = vunpack.c.h.b16 %v297
  %v338 = vunpack.c.l.b16 %v299
  %v339 = vunpack.c.h.b16 %v299
  %v340 = vunpack.c.l.b16 %v300
  %v341 = vunpack.c.h.b16 %v300
  %v342 = vunpack.c.l.b16 %v301
  %v343 = vunpack.c.h.b16 %v301
  %v344 = vunpack.c.l.b16 %v302
  %v345 = vunpack.c.h.b16 %v302
  %v346 = vunpack.c.l.b16 %v303
  %v347 = vunpack.c.h.b16 %v303
  %v348 = vunpack.c.l.b16 %v304
  %v349 = vunpack.c.h.b16 %v304
  %v350 = vunpack.c.l.b16 %v305
  %v351 = vunpack.c.h.b16 %v305
  %v352 = vpack.c.b16 %v322, %v322
  %v353 = vpack.c.b16 %v323, %v323
  %v354 = vpack.c.b16 %v324, %v324
  %v355 = vpack.c.b16 %v325, %v325
  %v356 = vpack.c.b16 %v326, %v326
  %v357 = vpack.c.b16 %v327, %v327
  %v358 = vpack.c.b16 %v328, %v328
  %v359 = vpack.c.b16 %v329, %v329
  %v360 = vpack.c.b16 %v330, %v330
  %v361 = vpack.c.b16 %v331, %v331
  %v362 = vpack.c.b16 %v332, %v332
  %v363 = vpack.c.b16 %v333, %v333
  %v364 = vpack.c.b16 %v334, %v334
  %v365 = vpack.c.b16 %v335, %v335
  %v366 = vpack.c.b16 %v336, %v336
  %v367 = vpack.c.b16 %v337, %v337
  %v368 = vpack.c.b16 %v338, %v338
  %v369 = vpack.c.b16 %v339, %v339
  %v370 = vpack.c.b16 %v340, %v340
  %v371 = vpack.c.b16 %v341, %v341
  %v372 = vpack.c.b16 %v342, %v342
  %v373 = vpack.c.b16 %v343, %v343
  %v374 = vpack.c.b16 %v344, %v344
  %v375 = vpack.c.b16 %v345, %v345
  %v376 = vpack.c.b16 %v346, %v346
  %v377 = vpack.c.b16 %v347, %v347
  %v378 = vpack.c.b16 %v348, %v348
  %v379 = vpack.c.b16 %v349, %v349
  %v380 = vpack.c.b16 %v350, %v350
  %v381 = vpack.c.b16 %v351, %v351
  %vm382 = vsmask.f32 3328
  %vm383 = vsmask.f32 7440
  %vm384 = vmor %vm382, %vm383
  %v386 = vshrl.u32 %v352, 16
  %v388 = vrot.slane %v386, 4
  %v389 = vshll.u32 %v352, 16
  %v391 = vrot.slane %v389, 5
  %v392 = vor.u32 %v388, %v391
  %v393 = vrot.slane %v392, 4
  %v395 = vshll.u32 %v353, 16
  %v397 = vrot.slane %v395, 5
  %v398 = vsel %vm384, %v393, %v397
  %v400 = vshrl.u32 %v354, 16
  %v402 = vrot.slane %v400, 4
  %v403 = vshll.u32 %v354, 16
  %v405 = vrot.slane %v403, 5
  %v406 = vor.u32 %v402, %v405
  %v407 = vrot.slane %v406, 4
  %v409 = vshll.u32 %v355, 16
  %v411 = vrot.slane %v409, 5
  %v412 = vsel %vm384, %v407, %v411
  %v414 = vshrl.u32 %v356, 16
  %v416 = vrot.slane %v414, 4
  %v417 = vshll.u32 %v356, 16
  %v419 = vrot.slane %v417, 5
  %v420 = vor.u32 %v416, %v419
  %v421 = vrot.slane %v420, 4
  %v423 = vshll.u32 %v357, 16
  %v425 = vrot.slane %v423, 5
  %v426 = vsel %vm384, %v421, %v425
  %v428 = vshrl.u32 %v358, 16
  %v430 = vrot.slane %v428, 4
  %v431 = vshll.u32 %v358, 16
  %v433 = vrot.slane %v431, 5
  %v434 = vor.u32 %v430, %v433
  %v435 = vrot.slane %v434, 4
  %v437 = vshll.u32 %v359, 16
  %v439 = vrot.slane %v437, 5
  %v440 = vsel %vm384, %v435, %v439
  %v442 = vshrl.u32 %v360, 16
  %v444 = vrot.slane %v442, 4
  %v445 = vshll.u32 %v360, 16
  %v447 = vrot.slane %v445, 5
  %v448 = vor.u32 %v444, %v447
  %v449 = vrot.slane %v448, 4
  %v451 = vshll.u32 %v361, 16
  %v453 = vrot.slane %v451, 5
  %v454 = vsel %vm384, %v449, %v453
  %v456 = vshrl.u32 %v362, 16
  %v458 = vrot.slane %v456, 4
  %v459 = vshll.u32 %v362, 16
  %v461 = vrot.slane %v459, 5
  %v462 = vor.u32 %v458, %v461
  %v463 = vrot.slane %v462, 4
  %v465 = vshll.u32 %v363, 16
  %v467 = vrot.slane %v465, 5
  %v468 = vsel %vm384, %v463, %v467
  %v470 = vshrl.u32 %v364, 16
  %v472 = vrot.slane %v470, 4
  %v473 = vshll.u32 %v364, 16
  %v475 = vrot.slane %v473, 5
  %v476 = vor.u32 %v472, %v475
  %v477 = vrot.slane %v476, 4
  %v479 = vshll.u32 %v365, 16
  %v481 = vrot.slane %v479, 5
  %v482 = vsel %vm384, %v477, %v481
  %v484 = vshrl.u32 %v366, 16
  %v486 = vrot.slane %v484, 4
  %v487 = vshll.u32 %v366, 16
  %v489 = vrot.slane %v487, 5
  %v490 = vor.u32 %v486, %v489
  %v491 = vrot.slane %v490, 4
  %v493 = vshll.u32 %v367, 16
  %v495 = vrot.slane %v493, 5
  %v496 = vsel %vm384, %v491, %v495
  %v498 = vshrl.u32 %v368, 16
  %v500 = vrot.slane %v498, 4
  %v501 = vshll.u32 %v368, 16
  %v503 = vrot.slane %v501, 5
  %v504 = vor.u32 %v500, %v503
  %v505 = vrot.slane %v504, 4
  %v507 = vshll.u32 %v369, 16
  %v509 = vrot.slane %v507, 5
  %v510 = vsel %vm384, %v505, %v509
  %v512 = vshrl.u32 %v370, 16
  %v514 = vrot.slane %v512, 4
  %v515 = vshll.u32 %v370, 16
  %v517 = vrot.slane %v515, 5
  %v518 = vor.u32 %v514, %v517
  %v519 = vrot.slane %v518, 4
  %v521 = vshll.u32 %v371, 16
  %v523 = vrot.slane %v521, 5
  %v524 = vsel %vm384, %v519, %v523
  %v526 = vshrl.u32 %v372, 16
  %v528 = vrot.slane %v526, 4
  %v529 = vshll.u32 %v372, 16
  %v531 = vrot.slane %v529, 5
  %v532 = vor.u32 %v528, %v531
  %v533 = vrot.slane %v532, 4
  %v535 = vshll.u32 %v373, 16
  %v537 = vrot.slane %v535, 5
  %v538 = vsel %vm384, %v533, %v537
  %v540 = vshrl.u32 %v374, 16
  %v542 = vrot.slane %v540, 4
  %v543 = vshll.u32 %v374, 16
  %v545 = vrot.slane %v543, 5
  %v546 = vor.u32 %v542, %v545
  %v547 = vrot.slane %v546, 4
  %v549 = vshll.u32 %v375, 16
  %v551 = vrot.slane %v549, 5
  %v552 = vsel %vm384, %v547, %v551
  %v554 = vshrl.u32 %v376, 16
  %v556 = vrot.slane %v554, 4
  %v557 = vshll.u32 %v376, 16
  %v559 = vrot.slane %v557, 5
  %v560 = vor.u32 %v556, %v559
  %v561 = vrot.slane %v560, 4
  %v563 = vshll.u32 %v377, 16
  %v565 = vrot.slane %v563, 5
  %v566 = vsel %vm384, %v561, %v565
  %v568 = vshrl.u32 %v378, 16
  %v570 = vrot.slane %v568, 4
  %v571 = vshll.u32 %v378, 16
  %v573 = vrot.slane %v571, 5
  %v574 = vor.u32 %v570, %v573
  %v575 = vrot.slane %v574, 4
  %v577 = vshll.u32 %v379, 16
  %v579 = vrot.slane %v577, 5
  %v580 = vsel %vm384, %v575, %v579
  %v582 = vshrl.u32 %v380, 16
  %v584 = vrot.slane %v582, 4
  %v585 = vshll.u32 %v380, 16
  %v587 = vrot.slane %v585, 5
  %v588 = vor.u32 %v584, %v587
  %v589 = vrot.slane %v588, 4
  %v591 = vshll.u32 %v381, 16
  %v593 = vrot.slane %v591, 5
  %v594 = vsel %vm384, %v589, %v593
  %vm595 = vcmask 1042432
  %vm596 = vcmask 1046532
  %vm597 = vmor %vm595, %vm596
  %v598 = vrot.slane %v352, 5
  %v599 = vrot.slane %v598, 4
  %v600 = vrot.slane %v353, 5
  %v601 = vsel %vm597, %v599, %v600
  %v602 = vrot.slane %v354, 5
  %v603 = vrot.slane %v602, 4
  %v604 = vrot.slane %v355, 5
  %v605 = vsel %vm597, %v603, %v604
  %v606 = vrot.slane %v356, 5
  %v607 = vrot.slane %v606, 4
  %v608 = vrot.slane %v357, 5
  %v609 = vsel %vm597, %v607, %v608
  %v610 = vrot.slane %v358, 5
  %v611 = vrot.slane %v610, 4
  %v612 = vrot.slane %v359, 5
  %v613 = vsel %vm597, %v611, %v612
  %v614 = vrot.slane %v360, 5
  %v615 = vrot.slane %v614, 4
  %v616 = vrot.slane %v361, 5
  %v617 = vsel %vm597, %v615, %v616
  %v618 = vrot.slane %v362, 5
  %v619 = vrot.slane %v618, 4
  %v620 = vrot.slane %v363, 5
  %v621 = vsel %vm597, %v619, %v620
  %v622 = vrot.slane %v364, 5
  %v623 = vrot.slane %v622, 4
  %v624 = vrot.slane %v365, 5
  %v625 = vsel %vm597, %v623, %v624
  %v626 = vrot.slane %v366, 5
  %v627 = vrot.slane %v626, 4
  %v628 = vrot.slane %v367, 5
  %v629 = vsel %vm597, %v627, %v628
  %v630 = vrot.slane %v368, 5
  %v631 = vrot.slane %v630, 4
  %v632 = vrot.slane %v369, 5
  %v633 = vsel %vm597, %v631, %v632
  %v634 = vrot.slane %v370, 5
  %v635 = vrot.slane %v634, 4
  %v636 = vrot.slane %v371, 5
  %v637 = vsel %vm597, %v635, %v636
  %v638 = vrot.slane %v372, 5
  %v639 = vrot.slane %v638, 4
  %v640 = vrot.slane %v373, 5
  %v641 = vsel %vm597, %v639, %v640
  %v642 = vrot.slane %v374, 5
  %v643 = vrot.slane %v642, 4
  %v644 = vrot.slane %v375, 5
  %v645 = vsel %vm597, %v643, %v644
  %v646 = vrot.slane %v376, 5
  %v647 = vrot.slane %v646, 4
  %v648 = vrot.slane %v377, 5
  %v649 = vsel %vm597, %v647, %v648
  %v650 = vrot.slane %v378, 5
  %v651 = vrot.slane %v650, 4
  %v652 = vrot.slane %v379, 5
  %v653 = vsel %vm597, %v651, %v652
  %v654 = vrot.slane %v380, 5
  %v655 = vrot.slane %v654, 4
  %v656 = vrot.slane %v381, 5
  %v657 = vsel %vm597, %v655, %v656
  %v660 = vunpack.c.l.b16 %v298
  %v661 = vunpack.c.h.b16 %v298
  %v662 = vunpack.c.l.b16 %v306
  %v663 = vunpack.c.h.b16 %v306
  %v664 = vpack.c.b16 %v660, %v660
  %v665 = vpack.c.b16 %v661, %v661
  %v666 = vpack.c.b16 %v662, %v662
  %v667 = vpack.c.b16 %v663, %v663
  %v669 = vshrl.u32 %v664, 16
  %v671 = vrot.slane %v669, 4
  %v672 = vshll.u32 %v664, 16
  %v674 = vrot.slane %v672, 5
  %v675 = vor.u32 %v671, %v674
  %v676 = vrot.slane %v675, 4
  %v678 = vshll.u32 %v665, 16
  %v680 = vrot.slane %v678, 5
  %v681 = vsel %vm384, %v676, %v680
  %v683 = vshrl.u32 %v666, 16
  %v685 = vrot.slane %v683, 4
  %v686 = vshll.u32 %v666, 16
  %v688 = vrot.slane %v686, 5
  %v689 = vor.u32 %v685, %v688
  %v690 = vrot.slane %v689, 4
  %v692 = vshll.u32 %v667, 16
  %v694 = vrot.slane %v692, 5
  %v695 = vsel %vm384, %v690, %v694
  %v696 = vrot.slane %v664, 5
  %v697 = vrot.slane %v696, 4
  %v698 = vrot.slane %v665, 5
  %v699 = vsel %vm597, %v697, %v698
  %v700 = vrot.slane %v666, 5
  %v701 = vrot.slane %v700, 4
  %v702 = vrot.slane %v667, 5
  %v703 = vsel %vm597, %v701, %v702
  %v704 = vpack.c.b16 %v324, %v322
  %v705 = vpack.c.b16 %v328, %v326
  %v706 = vpack.c.b16 %v332, %v330
  %v707 = vpack.c.b16 %v336, %v334
  %v708 = vpack.c.b16 %v338, %v322
  %v709 = vpack.c.b16 %v342, %v340
  %v710 = vpack.c.b16 %v346, %v344
  %v711 = vpack.c.b16 %v350, %v348
  %v720 = vunpack.c.l.b16 %v398
  %v721 = vunpack.c.l.b16 %v412
  %v722 = vunpack.c.l.b16 %v426
  %v723 = vunpack.c.l.b16 %v440
  %v724 = vunpack.c.l.b16 %v454
  %v725 = vunpack.c.l.b16 %v468
  %v726 = vunpack.c.l.b16 %v482
  %v727 = vunpack.c.l.b16 %v496
  %v728 = vunpack.c.l.b16 %v510
  %v729 = vunpack.c.l.b16 %v524
  %v730 = vunpack.c.l.b16 %v538
  %v731 = vunpack.c.l.b16 %v552
  %v732 = vunpack.c.l.b16 %v566
  %v733 = vunpack.c.l.b16 %v580
  %v734 = vunpack.c.l.b16 %v594
  %v735 = vpack.c.b16 %v721, %v720
  %v736 = vpack.c.b16 %v723, %v722
  %v737 = vpack.c.b16 %v725, %v724
  %v738 = vpack.c.b16 %v727, %v726
  %v739 = vpack.c.b16 %v728, %v720
  %v740 = vpack.c.b16 %v730, %v729
  %v741 = vpack.c.b16 %v732, %v731
  %v742 = vpack.c.b16 %v734, %v733
  %v751 = vunpack.c.l.b16 %v601
  %v752 = vunpack.c.l.b16 %v605
  %v753 = vunpack.c.l.b16 %v609
  %v754 = vunpack.c.l.b16 %v613
  %v755 = vunpack.c.l.b16 %v617
  %v756 = vunpack.c.l.b16 %v621
  %v757 = vunpack.c.l.b16 %v625
  %v758 = vunpack.c.l.b16 %v629
  %v759 = vunpack.c.l.b16 %v633
  %v760 = vunpack.c.l.b16 %v637
  %v761 = vunpack.c.l.b16 %v641
  %v762 = vunpack.c.l.b16 %v645
  %v763 = vunpack.c.l.b16 %v649
  %v764 = vunpack.c.l.b16 %v653
  %v765 = vunpack.c.l.b16 %v657
  %v766 = vpack.c.b16 %v752, %v751
  %v767 = vpack.c.b16 %v754, %v753
  %v768 = vpack.c.b16 %v756, %v755
  %v769 = vpack.c.b16 %v758, %v757
  %v770 = vpack.c.b16 %v759, %v751
  %v771 = vpack.c.b16 %v761, %v760
  %v772 = vpack.c.b16 %v763, %v762
  %v773 = vpack.c.b16 %v765, %v764
  %v782 = vpack.c.b16 %v326, %v324
  %v783 = vpack.c.b16 %v330, %v328
  %v784 = vpack.c.b16 %v334, %v332
  %v785 = vpack.c.b16 %v660, %v336
  %v786 = vpack.c.b16 %v340, %v338
  %v787 = vpack.c.b16 %v344, %v342
  %v788 = vpack.c.b16 %v348, %v346
  %v789 = vpack.c.b16 %v662, %v350
  %v798 = vunpack.c.l.b16 %v681
  %v799 = vunpack.c.l.b16 %v695
  %v800 = vpack.c.b16 %v722, %v721
  %v801 = vpack.c.b16 %v724, %v723
  %v802 = vpack.c.b16 %v726, %v725
  %v803 = vpack.c.b16 %v798, %v727
  %v804 = vpack.c.b16 %v729, %v728
  %v805 = vpack.c.b16 %v731, %v730
  %v806 = vpack.c.b16 %v733, %v732
  %v807 = vpack.c.b16 %v799, %v734
  %v816 = vunpack.c.l.b16 %v699
  %v817 = vunpack.c.l.b16 %v703
  %v818 = vpack.c.b16 %v753, %v752
  %v819 = vpack.c.b16 %v755, %v754
  %v820 = vpack.c.b16 %v757, %v756
  %v821 = vpack.c.b16 %v816, %v758
  %v822 = vpack.c.b16 %v760, %v759
  %v823 = vpack.c.b16 %v762, %v761
  %v824 = vpack.c.b16 %v764, %v763
  %v825 = vpack.c.b16 %v817, %v765
  %v834 = vpack.c.b16 %v322, %v660
  %v835 = vpack.c.b16 %v322, %v662
  %v838 = vpack.c.b16 %v720, %v798
  %v839 = vpack.c.b16 %v720, %v799
  %v842 = vpack.c.b16 %v751, %v816
  %v843 = vpack.c.b16 %v751, %v817
  %v846 = vld [vmem:[%s3] sm:$0xf]
  %v847 = vld [vmem:[%s3 + $0x4] sm:$0xf]
  %v848 = vld [vmem:[%s3 + $0x8] sm:$0xf]
  %v849 = vld [vmem:[%s3 + $0xc] sm:$0xf]
  %v850 = vld [vmem:[%s3 + $0x10] sm:$0xf]
  %v851 = vld [vmem:[%s3 + $0x14] sm:$0xf]
  %v852 = vld [vmem:[%s3 + $0x18] sm:$0xf]
  %v853 = vld [vmem:[%s3 + $0x1c] sm:$0xf]
  %v854 = vld [vmem:[%s3 + $0x20] sm:$0xf]
  %v855 = vld [vmem:[%s3 + $0x24] sm:$0xf]
  %v856 = vld [vmem:[%s3 + $0x28] sm:$0xf]
  %v857 = vld [vmem:[%s3 + $0x2c] sm:$0xf]
  %v858 = vld [vmem:[%s3 + $0x30] sm:$0xf]
  %v859 = vld [vmem:[%s3 + $0x34] sm:$0xf]
  %v860 = vld [vmem:[%s3 + $0x38] sm:$0xf]
  %v861 = vld [vmem:[%s3 + $0x3c] sm:$0xf]
  %v862 = vld [vmem:[%s3 + $0x40] sm:$0xf]
  %v863 = vld [vmem:[%s3 + $0x44] sm:$0xf]
  %v864 = vld [vmem:[%s3 + $0x48] sm:$0xf]
  %v865 = vld [vmem:[%s3 + $0x4c] sm:$0xf]
  %v866 = vld [vmem:[%s3 + $0x50] sm:$0xf]
  %v867 = vld [vmem:[%s3 + $0x54] sm:$0xf]
  %v868 = vld [vmem:[%s3 + $0x58] sm:$0xf]
  %v869 = vld [vmem:[%s3 + $0x5c] sm:$0xf]
  %v870 = vld [vmem:[%s3 + $0x60] sm:$0xf]
  %v871 = vld [vmem:[%s3 + $0x64] sm:$0xf]
  %v872 = vld [vmem:[%s3 + $0x68] sm:$0xf]
  %v873 = vld [vmem:[%s3 + $0x6c] sm:$0xf]
  %v874 = vld [vmem:[%s3 + $0x70] sm:$0xf]
  %v875 = vld [vmem:[%s3 + $0x74] sm:$0xf]
  %v876 = vld [vmem:[%s3 + $0x78] sm:$0xf]
  %v877 = vld [vmem:[%s3 + $0x7c] sm:$0xf]
  %v878 = vld [vmem:[%s3 + $0x80] sm:$0xf]
  %v879 = vld [vmem:[%s3 + $0x84] sm:$0xf]
  %v880 = vld [vmem:[%s3 + $0x88] sm:$0xf]
  %v881 = vld [vmem:[%s3 + $0x8c] sm:$0xf]
  %v882 = vld [vmem:[%s3 + $0x90] sm:$0xf]
  %v883 = vld [vmem:[%s3 + $0x94] sm:$0xf]
  %v884 = vld [vmem:[%s3 + $0x98] sm:$0xf]
  %v885 = vld [vmem:[%s3 + $0x9c] sm:$0xf]
  %v886 = vld [vmem:[%s3 + $0xa0] sm:$0xf]
  %v887 = vld [vmem:[%s3 + $0xa4] sm:$0xf]
  %v888 = vld [vmem:[%s3 + $0xa8] sm:$0xf]
  %v889 = vld [vmem:[%s3 + $0xac] sm:$0xf]
  %v890 = vld [vmem:[%s3 + $0xb0] sm:$0xf]
  %v891 = vld [vmem:[%s3 + $0xb4] sm:$0xf]
  %v892 = vld [vmem:[%s3 + $0xb8] sm:$0xf]
  %v893 = vld [vmem:[%s3 + $0xbc] sm:$0xf]
  %v894 = vld [vmem:[%s3 + $0xc0] sm:$0xf]
  %v895 = vld [vmem:[%s3 + $0xc4] sm:$0xf]
  %v896 = vld [vmem:[%s3 + $0xc8] sm:$0xf]
  %v897 = vld [vmem:[%s3 + $0xcc] sm:$0xf]
  %v898 = vld [vmem:[%s3 + $0xd0] sm:$0xf]
  %v899 = vld [vmem:[%s3 + $0xd4] sm:$0xf]
  %v900 = vld [vmem:[%s3 + $0xd8] sm:$0xf]
  %v901 = vld [vmem:[%s3 + $0xdc] sm:$0xf]
  %v902 = vld [vmem:[%s3 + $0xe0] sm:$0xf]
  %v903 = vld [vmem:[%s3 + $0xe4] sm:$0xf]
  %v904 = vld [vmem:[%s3 + $0xe8] sm:$0xf]
  %v905 = vld [vmem:[%s3 + $0xec] sm:$0xf]
  %v906 = vld [vmem:[%s3 + $0xf0] sm:$0xf]
  %v907 = vld [vmem:[%s3 + $0xf4] sm:$0xf]
  %v908 = vld [vmem:[%s3 + $0xf8] sm:$0xf]
  %v909 = vld [vmem:[%s3 + $0xfc] sm:$0xf]
  %v910 = vld [vmem:[%s3 + $0x100] sm:$0xf]
  %v911 = vld [vmem:[%s3 + $0x104] sm:$0xf]
  %v912 = vld [vmem:[%s3 + $0x108] sm:$0xf]
  %v913 = vld [vmem:[%s3 + $0x10c] sm:$0xf]
  %v914 = vld [vmem:[%s3 + $0x110] sm:$0xf]
  %v915 = vld [vmem:[%s3 + $0x114] sm:$0xf]
  %v916 = vld [vmem:[%s3 + $0x118] sm:$0xf]
  %v917 = vld [vmem:[%s3 + $0x11c] sm:$0xf]
  %v918 = vld [vmem:[%s3 + $0x120] sm:$0xf]
  %v919 = vld [vmem:[%s3 + $0x124] sm:$0xf]
  %v920 = vld [vmem:[%s3 + $0x128] sm:$0xf]
  %v921 = vld [vmem:[%s3 + $0x12c] sm:$0xf]
  %v922 = vld [vmem:[%s3 + $0x130] sm:$0xf]
  %v923 = vld [vmem:[%s3 + $0x134] sm:$0xf]
  %v924 = vld [vmem:[%s3 + $0x138] sm:$0xf]
  %v925 = vld [vmem:[%s3 + $0x13c] sm:$0xf]
  %v926 = vld [vmem:[%s3 + $0x140] sm:$0xf]
  %v927 = vld [vmem:[%s3 + $0x144] sm:$0xf]
  %v928 = vld [vmem:[%s3 + $0x148] sm:$0xf]
  %v929 = vld [vmem:[%s3 + $0x14c] sm:$0xf]
  %v930 = vld [vmem:[%s3 + $0x150] sm:$0xf]
  %v931 = vld [vmem:[%s3 + $0x154] sm:$0xf]
  %v932 = vld [vmem:[%s3 + $0x158] sm:$0xf]
  %v933 = vld [vmem:[%s3 + $0x15c] sm:$0xf]
  %v934 = vld [vmem:[%s3 + $0x160] sm:$0xf]
  %v935 = vld [vmem:[%s3 + $0x164] sm:$0xf]
  %v936 = vld [vmem:[%s3 + $0x168] sm:$0xf]
  %v937 = vld [vmem:[%s3 + $0x16c] sm:$0xf]
  %v938 = vld [vmem:[%s3 + $0x170] sm:$0xf]
  %v939 = vld [vmem:[%s3 + $0x174] sm:$0xf]
  %v940 = vld [vmem:[%s3 + $0x178] sm:$0xf]
  %v941 = vld [vmem:[%s3 + $0x17c] sm:$0xf]
  %v942 = vld [vmem:[%s3 + $0x180] sm:$0xf]
  %v943 = vld [vmem:[%s3 + $0x184] sm:$0xf]
  %v944 = vld [vmem:[%s3 + $0x188] sm:$0xf]
  %v945 = vld [vmem:[%s3 + $0x18c] sm:$0xf]
  %v946 = vld [vmem:[%s3 + $0x190] sm:$0xf]
  %v947 = vld [vmem:[%s3 + $0x194] sm:$0xf]
  %v948 = vld [vmem:[%s3 + $0x198] sm:$0xf]
  %v949 = vld [vmem:[%s3 + $0x19c] sm:$0xf]
  %v950 = vld [vmem:[%s3 + $0x1a0] sm:$0xf]
  %v951 = vld [vmem:[%s3 + $0x1a4] sm:$0xf]
  %v952 = vld [vmem:[%s3 + $0x1a8] sm:$0xf]
  %v953 = vld [vmem:[%s3 + $0x1ac] sm:$0xf]
  %v954 = vld [vmem:[%s3 + $0x1b0] sm:$0xf]
  %v955 = vld [vmem:[%s3 + $0x1b4] sm:$0xf]
  %v956 = vld [vmem:[%s3 + $0x1b8] sm:$0xf]
  %v957 = vld [vmem:[%s3 + $0x1bc] sm:$0xf]
  %v958 = vld [vmem:[%s3 + $0x1c0] sm:$0xf]
  %v959 = vld [vmem:[%s3 + $0x1c4] sm:$0xf]
  %v960 = vld [vmem:[%s3 + $0x1c8] sm:$0xf]
  %v961 = vld [vmem:[%s3 + $0x1cc] sm:$0xf]
  %v962 = vld [vmem:[%s3 + $0x1d0] sm:$0xf]
  %v963 = vld [vmem:[%s3 + $0x1d4] sm:$0xf]
  %v964 = vld [vmem:[%s3 + $0x1d8] sm:$0xf]
  %v965 = vld [vmem:[%s3 + $0x1dc] sm:$0xf]
  %v966 = vld [vmem:[%s3 + $0x1e0] sm:$0xf]
  %v967 = vld [vmem:[%s3 + $0x1e4] sm:$0xf]
  %v968 = vld [vmem:[%s3 + $0x1e8] sm:$0xf]
  %v969 = vld [vmem:[%s3 + $0x1ec] sm:$0xf]
  %v970 = vld [vmem:[%s3 + $0x1f0] sm:$0xf]
  %v971 = vld [vmem:[%s3 + $0x1f4] sm:$0xf]
  %v972 = vld [vmem:[%s3 + $0x1f8] sm:$0xf]
  %v973 = vld [vmem:[%s3 + $0x1fc] sm:$0xf]
  %v974 = vld [vmem:[%s3 + $0x200] sm:$0xf]
  %v975 = vld [vmem:[%s3 + $0x204] sm:$0xf]
  %v976 = vld [vmem:[%s3 + $0x208] sm:$0xf]
  %v977 = vld [vmem:[%s3 + $0x20c] sm:$0xf]
  %v978 = vld [vmem:[%s3 + $0x210] sm:$0xf]
  %v979 = vld [vmem:[%s3 + $0x214] sm:$0xf]
  %v980 = vld [vmem:[%s3 + $0x218] sm:$0xf]
  %v981 = vld [vmem:[%s3 + $0x21c] sm:$0xf]
  %v982 = vld [vmem:[%s3 + $0x220] sm:$0xf]
  %v983 = vld [vmem:[%s3 + $0x224] sm:$0xf]
  %v984 = vld [vmem:[%s3 + $0x228] sm:$0xf]
  %v985 = vld [vmem:[%s3 + $0x22c] sm:$0xf]
  %v986 = vld [vmem:[%s3 + $0x230] sm:$0xf]
  %v987 = vld [vmem:[%s3 + $0x234] sm:$0xf]
  %v988 = vld [vmem:[%s3 + $0x238] sm:$0xf]
  %v989 = vld [vmem:[%s3 + $0x23c] sm:$0xf]
  %v1134 = vunpack.c.l.b16 %v846
  %v1135 = vunpack.c.l.b16 %v847
  %v1136 = vunpack.c.l.b16 %v848
  %v1137 = vunpack.c.l.b16 %v849
  %v1138 = vunpack.c.l.b16 %v850
  %v1139 = vunpack.c.l.b16 %v851
  %v1140 = vunpack.c.l.b16 %v852
  %v1141 = vunpack.c.l.b16 %v853
  %v1142 = vunpack.c.l.b16 %v854
  %v1143 = vunpack.c.l.b16 %v855
  %v1144 = vunpack.c.l.b16 %v856
  %v1145 = vunpack.c.l.b16 %v857
  %v1146 = vunpack.c.l.b16 %v858
  %v1147 = vunpack.c.l.b16 %v859
  %v1148 = vunpack.c.l.b16 %v860
  %v1149 = vunpack.c.l.b16 %v861
  %v1150 = vunpack.c.l.b16 %v862
  %v1151 = vunpack.c.l.b16 %v863
  %v1152 = vunpack.c.l.b16 %v864
  %v1153 = vunpack.c.l.b16 %v865
  %v1154 = vunpack.c.l.b16 %v866
  %v1155 = vunpack.c.l.b16 %v867
  %v1156 = vunpack.c.l.b16 %v868
  %v1157 = vunpack.c.l.b16 %v869
  %v1158 = vunpack.c.l.b16 %v870
  %v1159 = vunpack.c.l.b16 %v871
  %v1160 = vunpack.c.l.b16 %v872
  %v1161 = vunpack.c.l.b16 %v873
  %v1162 = vunpack.c.l.b16 %v874
  %v1163 = vunpack.c.l.b16 %v875
  %v1164 = vunpack.c.l.b16 %v876
  %v1165 = vunpack.c.l.b16 %v877
  %v1166 = vunpack.c.l.b16 %v878
  %v1167 = vunpack.c.l.b16 %v879
  %v1168 = vunpack.c.l.b16 %v880
  %v1169 = vunpack.c.l.b16 %v881
  %v1170 = vunpack.c.l.b16 %v882
  %v1171 = vunpack.c.l.b16 %v883
  %v1172 = vunpack.c.l.b16 %v884
  %v1173 = vunpack.c.l.b16 %v885
  %v1174 = vunpack.c.l.b16 %v886
  %v1175 = vunpack.c.l.b16 %v887
  %v1176 = vunpack.c.l.b16 %v888
  %v1177 = vunpack.c.l.b16 %v889
  %v1178 = vunpack.c.l.b16 %v890
  %v1179 = vunpack.c.l.b16 %v891
  %v1180 = vunpack.c.l.b16 %v892
  %v1181 = vunpack.c.l.b16 %v893
  %v1182 = vunpack.c.l.b16 %v894
  %v1183 = vunpack.c.l.b16 %v895
  %v1184 = vunpack.c.l.b16 %v896
  %v1185 = vunpack.c.l.b16 %v897
  %v1186 = vunpack.c.l.b16 %v898
  %v1187 = vunpack.c.l.b16 %v899
  %v1188 = vunpack.c.l.b16 %v900
  %v1189 = vunpack.c.l.b16 %v901
  %v1190 = vunpack.c.l.b16 %v902
  %v1191 = vunpack.c.l.b16 %v903
  %v1192 = vunpack.c.l.b16 %v904
  %v1193 = vunpack.c.l.b16 %v905
  %v1194 = vunpack.c.l.b16 %v906
  %v1195 = vunpack.c.l.b16 %v907
  %v1196 = vunpack.c.l.b16 %v908
  %v1197 = vunpack.c.l.b16 %v909
  %v1198 = vunpack.c.l.b16 %v910
  %v1199 = vunpack.c.l.b16 %v911
  %v1200 = vunpack.c.l.b16 %v912
  %v1201 = vunpack.c.l.b16 %v913
  %v1202 = vunpack.c.l.b16 %v914
  %v1203 = vunpack.c.l.b16 %v915
  %v1204 = vunpack.c.l.b16 %v916
  %v1205 = vunpack.c.l.b16 %v917
  %v1206 = vunpack.c.l.b16 %v918
  %v1207 = vunpack.c.l.b16 %v919
  %v1208 = vunpack.c.l.b16 %v920
  %v1209 = vunpack.c.l.b16 %v921
  %v1210 = vunpack.c.l.b16 %v922
  %v1211 = vunpack.c.l.b16 %v923
  %v1212 = vunpack.c.l.b16 %v924
  %v1213 = vunpack.c.l.b16 %v925
  %v1214 = vunpack.c.l.b16 %v926
  %v1215 = vunpack.c.l.b16 %v927
  %v1216 = vunpack.c.l.b16 %v928
  %v1217 = vunpack.c.l.b16 %v929
  %v1218 = vunpack.c.l.b16 %v930
  %v1219 = vunpack.c.l.b16 %v931
  %v1220 = vunpack.c.l.b16 %v932
  %v1221 = vunpack.c.l.b16 %v933
  %v1222 = vunpack.c.l.b16 %v934
  %v1223 = vunpack.c.l.b16 %v935
  %v1224 = vunpack.c.l.b16 %v936
  %v1225 = vunpack.c.l.b16 %v937
  %v1226 = vunpack.c.l.b16 %v938
  %v1227 = vunpack.c.l.b16 %v939
  %v1228 = vunpack.c.l.b16 %v940
  %v1229 = vunpack.c.l.b16 %v941
  %v1230 = vunpack.c.l.b16 %v942
  %v1231 = vunpack.c.l.b16 %v943
  %v1232 = vunpack.c.l.b16 %v944
  %v1233 = vunpack.c.l.b16 %v945
  %v1234 = vunpack.c.l.b16 %v946
  %v1235 = vunpack.c.l.b16 %v947
  %v1236 = vunpack.c.l.b16 %v948
  %v1237 = vunpack.c.l.b16 %v949
  %v1238 = vunpack.c.l.b16 %v950
  %v1239 = vunpack.c.l.b16 %v951
  %v1240 = vunpack.c.l.b16 %v952
  %v1241 = vunpack.c.l.b16 %v953
  %v1242 = vunpack.c.l.b16 %v954
  %v1243 = vunpack.c.l.b16 %v955
  %v1244 = vunpack.c.l.b16 %v956
  %v1245 = vunpack.c.l.b16 %v957
  %v1246 = vunpack.c.l.b16 %v958
  %v1247 = vunpack.c.l.b16 %v959
  %v1248 = vunpack.c.l.b16 %v960
  %v1249 = vunpack.c.l.b16 %v961
  %v1250 = vunpack.c.l.b16 %v962
  %v1251 = vunpack.c.l.b16 %v963
  %v1252 = vunpack.c.l.b16 %v964
  %v1253 = vunpack.c.l.b16 %v965
  %v1254 = vunpack.c.l.b16 %v966
  %v1255 = vunpack.c.l.b16 %v967
  %v1256 = vunpack.c.l.b16 %v968
  %v1257 = vunpack.c.l.b16 %v969
  %v1258 = vunpack.c.l.b16 %v970
  %v1259 = vunpack.c.l.b16 %v971
  %v1260 = vunpack.c.l.b16 %v972
  %v1261 = vunpack.c.l.b16 %v973
  %v1262 = vunpack.c.l.b16 %v974
  %v1263 = vunpack.c.l.b16 %v975
  %v1264 = vunpack.c.l.b16 %v976
  %v1265 = vunpack.c.l.b16 %v977
  %v1266 = vunpack.c.l.b16 %v978
  %v1267 = vunpack.c.l.b16 %v979
  %v1268 = vunpack.c.l.b16 %v980
  %v1269 = vunpack.c.l.b16 %v981
  %v1270 = vunpack.c.l.b16 %v982
  %v1271 = vunpack.c.l.b16 %v983
  %v1272 = vunpack.c.l.b16 %v984
  %v1273 = vunpack.c.l.b16 %v985
  %v1274 = vunpack.c.l.b16 %v986
  %v1275 = vunpack.c.l.b16 %v987
  %v1276 = vunpack.c.l.b16 %v988
  %v1277 = vunpack.c.l.b16 %v989
  %v1278 = vpack.c.b16 %v1135, %v1134
  %v1279 = vpack.c.b16 %v1137, %v1136
  %v1280 = vpack.c.b16 %v1139, %v1138
  %v1281 = vpack.c.b16 %v1141, %v1140
  %v1282 = vpack.c.b16 %v1143, %v1142
  %v1283 = vpack.c.b16 %v1145, %v1144
  %v1284 = vpack.c.b16 %v1147, %v1146
  %v1285 = vpack.c.b16 %v1149, %v1148
  %v1286 = vpack.c.b16 %v1151, %v1150
  %v1287 = vpack.c.b16 %v1153, %v1152
  %v1288 = vpack.c.b16 %v1155, %v1154
  %v1289 = vpack.c.b16 %v1157, %v1156
  %v1290 = vpack.c.b16 %v1159, %v1158
  %v1291 = vpack.c.b16 %v1161, %v1160
  %v1292 = vpack.c.b16 %v1163, %v1162
  %v1293 = vpack.c.b16 %v1165, %v1164
  %v1294 = vpack.c.b16 %v1167, %v1166
  %v1295 = vpack.c.b16 %v1169, %v1168
  %v1296 = vpack.c.b16 %v1171, %v1170
  %v1297 = vpack.c.b16 %v1173, %v1172
  %v1298 = vpack.c.b16 %v1175, %v1174
  %v1299 = vpack.c.b16 %v1177, %v1176
  %v1300 = vpack.c.b16 %v1179, %v1178
  %v1301 = vpack.c.b16 %v1181, %v1180
  %v1302 = vpack.c.b16 %v1183, %v1182
  %v1303 = vpack.c.b16 %v1185, %v1184
  %v1304 = vpack.c.b16 %v1187, %v1186
  %v1305 = vpack.c.b16 %v1189, %v1188
  %v1306 = vpack.c.b16 %v1191, %v1190
  %v1307 = vpack.c.b16 %v1193, %v1192
  %v1308 = vpack.c.b16 %v1195, %v1194
  %v1309 = vpack.c.b16 %v1197, %v1196
  %v1310 = vpack.c.b16 %v1199, %v1198
  %v1311 = vpack.c.b16 %v1201, %v1200
  %v1312 = vpack.c.b16 %v1203, %v1202
  %v1313 = vpack.c.b16 %v1205, %v1204
  %v1314 = vpack.c.b16 %v1207, %v1206
  %v1315 = vpack.c.b16 %v1209, %v1208
  %v1316 = vpack.c.b16 %v1211, %v1210
  %v1317 = vpack.c.b16 %v1213, %v1212
  %v1318 = vpack.c.b16 %v1215, %v1214
  %v1319 = vpack.c.b16 %v1217, %v1216
  %v1320 = vpack.c.b16 %v1219, %v1218
  %v1321 = vpack.c.b16 %v1221, %v1220
  %v1322 = vpack.c.b16 %v1223, %v1222
  %v1323 = vpack.c.b16 %v1225, %v1224
  %v1324 = vpack.c.b16 %v1227, %v1226
  %v1325 = vpack.c.b16 %v1229, %v1228
  %v1326 = vpack.c.b16 %v1231, %v1230
  %v1327 = vpack.c.b16 %v1233, %v1232
  %v1328 = vpack.c.b16 %v1235, %v1234
  %v1329 = vpack.c.b16 %v1237, %v1236
  %v1330 = vpack.c.b16 %v1239, %v1238
  %v1331 = vpack.c.b16 %v1241, %v1240
  %v1332 = vpack.c.b16 %v1243, %v1242
  %v1333 = vpack.c.b16 %v1245, %v1244
  %v1334 = vpack.c.b16 %v1247, %v1246
  %v1335 = vpack.c.b16 %v1249, %v1248
  %v1336 = vpack.c.b16 %v1251, %v1250
  %v1337 = vpack.c.b16 %v1253, %v1252
  %v1338 = vpack.c.b16 %v1255, %v1254
  %v1339 = vpack.c.b16 %v1257, %v1256
  %v1340 = vpack.c.b16 %v1259, %v1258
  %v1341 = vpack.c.b16 %v1261, %v1260
  %v1342 = vpack.c.b16 %v1263, %v1262
  %v1343 = vpack.c.b16 %v1265, %v1264
  %v1344 = vpack.c.b16 %v1267, %v1266
  %v1345 = vpack.c.b16 %v1269, %v1268
  %v1346 = vpack.c.b16 %v1271, %v1270
  %v1347 = vpack.c.b16 %v1273, %v1272
  %v1348 = vpack.c.b16 %v1275, %v1274
  %v1349 = vpack.c.b16 %v1277, %v1276
  %1422 = vmatprep.subr.bf16.mxu0 0
  %1423 = vmatpush1.bf16.msra.mxu0 %v1285
  %1424 = vmatprep.subr.bf16.mxu0 0
  %1425 = vmatpush1.bf16.msra.mxu0 %v1284
  %1426 = vmatprep.subr.bf16.mxu0 0
  %1427 = vmatpush1.bf16.msra.mxu0 %v1283
  %1428 = vmatprep.subr.bf16.mxu0 0
  %1429 = vmatpush1.bf16.msra.mxu0 %v1282
  %1430 = vmatprep.subr.bf16.mxu0 0
  %1431 = vmatpush1.bf16.msra.mxu0 %v1281
  %1432 = vmatprep.subr.bf16.mxu0 0
  %1433 = vmatpush1.bf16.msra.mxu0 %v1280
  %1434 = vmatprep.subr.bf16.mxu0 0
  %1435 = vmatpush1.bf16.msra.mxu0 %v1279
  %1436 = vmatprep.subr.bf16.mxu0 0
  %1437 = vmatpush1.bf16.msra.mxu0 %v1278
  %1438 = vmatprep.subr.bf16.mxu0 0
  %1439 = vmatpush2.bf16.msra.mxu0 %v1293
  %1440 = vmatprep.subr.bf16.mxu0 0
  %1441 = vmatpush2.bf16.msra.mxu0 %v1292
  %1442 = vmatprep.subr.bf16.mxu0 0
  %1443 = vmatpush2.bf16.msra.mxu0 %v1291
  %1444 = vmatprep.subr.bf16.mxu0 0
  %1445 = vmatpush2.bf16.msra.mxu0 %v1290
  %1446 = vmatprep.subr.bf16.mxu0 0
  %1447 = vmatpush2.bf16.msra.mxu0 %v1289
  %1448 = vmatprep.subr.bf16.mxu0 0
  %1449 = vmatpush2.bf16.msra.mxu0 %v1288
  %1450 = vmatprep.subr.bf16.mxu0 0
  %1451 = vmatpush2.bf16.msra.mxu0 %v1287
  %1452 = vmatprep.subr.bf16.mxu0 0
  %1453 = vmatpush2.bf16.msra.mxu0 %v1286
  %1454 = vmatprep.mubr.bf16.mxu0 %v735
  %1455 = vmatmul.mubr.bf16.gmra.mxu0 %v704
  %v1456 = vpop.f32.mrf.mxu0
  %v1457 = vadd.f32 0.0, %v1456
  %v1458 = vpop.f32.mrf.mxu0
  %v1459 = vpop.f32.mrf.mxu0
  %v1460 = vadd.f32 0.0, %v1459
  %v1461 = vpop.f32.mrf.mxu0
  %1462 = vmatprep.mubr.bf16.mxu0 %v736
  %1463 = vmatmul.mubr.bf16.gmra.mxu0 %v705
  %v1464 = vpop.f32.mrf.mxu0
  %v1465 = vadd.f32 0.0, %v1464
  %v1466 = vpop.f32.mrf.mxu0
  %v1467 = vpop.f32.mrf.mxu0
  %v1468 = vadd.f32 0.0, %v1467
  %v1469 = vpop.f32.mrf.mxu0
  %1470 = vmatprep.mubr.bf16.mxu0 %v737
  %1471 = vmatmul.mubr.bf16.gmra.mxu0 %v706
  %v1472 = vpop.f32.mrf.mxu0
  %v1473 = vadd.f32 0.0, %v1472
  %v1474 = vpop.f32.mrf.mxu0
  %v1475 = vpop.f32.mrf.mxu0
  %v1476 = vadd.f32 0.0, %v1475
  %v1477 = vpop.f32.mrf.mxu0
  %1478 = vmatprep.mubr.bf16.mxu0 %v738
  %1479 = vmatmul.mubr.bf16.gmra.mxu0 %v707
  %v1480 = vpop.f32.mrf.mxu0
  %v1481 = vadd.f32 0.0, %v1480
  %v1482 = vpop.f32.mrf.mxu0
  %v1483 = vpop.f32.mrf.mxu0
  %v1484 = vadd.f32 0.0, %v1483
  %v1485 = vpop.f32.mrf.mxu0
  %1486 = vmatprep.mubr.bf16.mxu0 %v739
  %1487 = vmatmul.mubr.bf16.gmra.mxu0 %v708
  %v1488 = vpop.f32.mrf.mxu0
  %v1489 = vadd.f32 0.0, %v1488
  %v1490 = vpop.f32.mrf.mxu0
  %v1491 = vpop.f32.mrf.mxu0
  %v1492 = vadd.f32 0.0, %v1491
  %v1493 = vpop.f32.mrf.mxu0
  %1494 = vmatprep.mubr.bf16.mxu0 %v740
  %1495 = vmatmul.mubr.bf16.gmra.mxu0 %v709
  %v1496 = vpop.f32.mrf.mxu0
  %v1497 = vadd.f32 0.0, %v1496
  %v1498 = vpop.f32.mrf.mxu0
  %v1499 = vpop.f32.mrf.mxu0
  %v1500 = vadd.f32 0.0, %v1499
  %v1501 = vpop.f32.mrf.mxu0
  %1502 = vmatprep.mubr.bf16.mxu0 %v741
  %1503 = vmatmul.mubr.bf16.gmra.mxu0 %v710
  %v1504 = vpop.f32.mrf.mxu0
  %v1505 = vadd.f32 0.0, %v1504
  %v1506 = vpop.f32.mrf.mxu0
  %v1507 = vpop.f32.mrf.mxu0
  %v1508 = vadd.f32 0.0, %v1507
  %v1509 = vpop.f32.mrf.mxu0
  %1510 = vmatprep.mubr.bf16.mxu0 %v742
  %1511 = vmatmul.mubr.bf16.gmra.mxu0 %v711
  %v1512 = vpop.f32.mrf.mxu0
  %v1513 = vadd.f32 0.0, %v1512
  %v1514 = vpop.f32.mrf.mxu0
  %v1515 = vpop.f32.mrf.mxu0
  %v1516 = vadd.f32 0.0, %v1515
  %v1517 = vpop.f32.mrf.mxu0
  %1518 = vdwg.mxu0
  %1519 = vmatprep.subr.bf16.mxu0 0
  %1520 = vmatpush1.bf16.msra.mxu0 %v1301
  %1521 = vmatprep.subr.bf16.mxu0 0
  %1522 = vmatpush1.bf16.msra.mxu0 %v1300
  %1523 = vmatprep.subr.bf16.mxu0 0
  %1524 = vmatpush1.bf16.msra.mxu0 %v1299
  %1525 = vmatprep.subr.bf16.mxu0 0
  %1526 = vmatpush1.bf16.msra.mxu0 %v1298
  %1527 = vmatprep.subr.bf16.mxu0 0
  %1528 = vmatpush1.bf16.msra.mxu0 %v1297
  %1529 = vmatprep.subr.bf16.mxu0 0
  %1530 = vmatpush1.bf16.msra.mxu0 %v1296
  %1531 = vmatprep.subr.bf16.mxu0 0
  %1532 = vmatpush1.bf16.msra.mxu0 %v1295
  %1533 = vmatprep.subr.bf16.mxu0 0
  %1534 = vmatpush1.bf16.msra.mxu0 %v1294
  %1535 = vmatprep.subr.bf16.mxu0 0
  %1536 = vmatpush2.bf16.msra.mxu0 %v1309
  %1537 = vmatprep.subr.bf16.mxu0 0
  %1538 = vmatpush2.bf16.msra.mxu0 %v1308
  %1539 = vmatprep.subr.bf16.mxu0 0
  %1540 = vmatpush2.bf16.msra.mxu0 %v1307
  %1541 = vmatprep.subr.bf16.mxu0 0
  %1542 = vmatpush2.bf16.msra.mxu0 %v1306
  %1543 = vmatprep.subr.bf16.mxu0 0
  %1544 = vmatpush2.bf16.msra.mxu0 %v1305
  %1545 = vmatprep.subr.bf16.mxu0 0
  %1546 = vmatpush2.bf16.msra.mxu0 %v1304
  %1547 = vmatprep.subr.bf16.mxu0 0
  %1548 = vmatpush2.bf16.msra.mxu0 %v1303
  %1549 = vmatprep.subr.bf16.mxu0 0
  %1550 = vmatpush2.bf16.msra.mxu0 %v1302
  %1551 = vmatprep.mubr.bf16.mxu0 %v782
  %1552 = vmatmul.mubr.bf16.gmra.mxu0 %v766
  %v1553 = vpop.f32.mrf.mxu0
  %v1554 = vadd.f32 %v1457, %v1553
  %v1555 = vpop.f32.mrf.mxu0
  %v1556 = vpop.f32.mrf.mxu0
  %v1557 = vadd.f32 %v1460, %v1556
  %v1558 = vpop.f32.mrf.mxu0
  %1559 = vmatprep.mubr.bf16.mxu0 %v783
  %1560 = vmatmul.mubr.bf16.gmra.mxu0 %v767
  %v1561 = vpop.f32.mrf.mxu0
  %v1562 = vadd.f32 %v1465, %v1561
  %v1563 = vpop.f32.mrf.mxu0
  %v1564 = vpop.f32.mrf.mxu0
  %v1565 = vadd.f32 %v1468, %v1564
  %v1566 = vpop.f32.mrf.mxu0
  %1567 = vmatprep.mubr.bf16.mxu0 %v784
  %1568 = vmatmul.mubr.bf16.gmra.mxu0 %v768
  %v1569 = vpop.f32.mrf.mxu0
  %v1570 = vadd.f32 %v1473, %v1569
  %v1571 = vpop.f32.mrf.mxu0
  %v1572 = vpop.f32.mrf.mxu0
  %v1573 = vadd.f32 %v1476, %v1572
  %v1574 = vpop.f32.mrf.mxu0
  %1575 = vmatprep.mubr.bf16.mxu0 %v785
  %1576 = vmatmul.mubr.bf16.gmra.mxu0 %v769
  %v1577 = vpop.f32.mrf.mxu0
  %v1578 = vadd.f32 %v1481, %v1577
  %v1579 = vpop.f32.mrf.mxu0
  %v1580 = vpop.f32.mrf.mxu0
  %v1581 = vadd.f32 %v1484, %v1580
  %v1582 = vpop.f32.mrf.mxu0
  %1583 = vmatprep.mubr.bf16.mxu0 %v786
  %1584 = vmatmul.mubr.bf16.gmra.mxu0 %v770
  %v1585 = vpop.f32.mrf.mxu0
  %v1586 = vadd.f32 %v1489, %v1585
  %v1587 = vpop.f32.mrf.mxu0
  %v1588 = vpop.f32.mrf.mxu0
  %v1589 = vadd.f32 %v1492, %v1588
  %v1590 = vpop.f32.mrf.mxu0
  %1591 = vmatprep.mubr.bf16.mxu0 %v787
  %1592 = vmatmul.mubr.bf16.gmra.mxu0 %v771
  %v1593 = vpop.f32.mrf.mxu0
  %v1594 = vadd.f32 %v1497, %v1593
  %v1595 = vpop.f32.mrf.mxu0
  %v1596 = vpop.f32.mrf.mxu0
  %v1597 = vadd.f32 %v1500, %v1596
  %v1598 = vpop.f32.mrf.mxu0
  %1599 = vmatprep.mubr.bf16.mxu0 %v788
  %1600 = vmatmul.mubr.bf16.gmra.mxu0 %v772
  %v1601 = vpop.f32.mrf.mxu0
  %v1602 = vadd.f32 %v1505, %v1601
  %v1603 = vpop.f32.mrf.mxu0
  %v1604 = vpop.f32.mrf.mxu0
  %v1605 = vadd.f32 %v1508, %v1604
  %v1606 = vpop.f32.mrf.mxu0
  %1607 = vmatprep.mubr.bf16.mxu0 %v789
  %1608 = vmatmul.mubr.bf16.gmra.mxu0 %v773
  %v1609 = vpop.f32.mrf.mxu0
  %v1610 = vadd.f32 %v1513, %v1609
  %v1611 = vpop.f32.mrf.mxu0
  %v1612 = vpop.f32.mrf.mxu0
  %v1613 = vadd.f32 %v1516, %v1612
  %v1614 = vpop.f32.mrf.mxu0
  %1615 = vdwg.mxu0
  %1616 = vmatprep.subr.bf16.mxu0 0
  %1617 = vmatpush1.bf16.msra.mxu0 %v1317
  %1618 = vmatprep.subr.bf16.mxu0 0
  %1619 = vmatpush1.bf16.msra.mxu0 %v1316
  %1620 = vmatprep.subr.bf16.mxu0 0
  %1621 = vmatpush1.bf16.msra.mxu0 %v1315
  %1622 = vmatprep.subr.bf16.mxu0 0
  %1623 = vmatpush1.bf16.msra.mxu0 %v1314
  %1624 = vmatprep.subr.bf16.mxu0 0
  %1625 = vmatpush1.bf16.msra.mxu0 %v1313
  %1626 = vmatprep.subr.bf16.mxu0 0
  %1627 = vmatpush1.bf16.msra.mxu0 %v1312
  %1628 = vmatprep.subr.bf16.mxu0 0
  %1629 = vmatpush1.bf16.msra.mxu0 %v1311
  %1630 = vmatprep.subr.bf16.mxu0 0
  %1631 = vmatpush1.bf16.msra.mxu0 %v1310
  %1632 = vmatprep.subr.bf16.mxu0 0
  %1633 = vmatpush2.bf16.msra.mxu0 %v1325
  %1634 = vmatprep.subr.bf16.mxu0 0
  %1635 = vmatpush2.bf16.msra.mxu0 %v1324
  %1636 = vmatprep.subr.bf16.mxu0 0
  %1637 = vmatpush2.bf16.msra.mxu0 %v1323
  %1638 = vmatprep.subr.bf16.mxu0 0
  %1639 = vmatpush2.bf16.msra.mxu0 %v1322
  %1640 = vmatprep.subr.bf16.mxu0 0
  %1641 = vmatpush2.bf16.msra.mxu0 %v1321
  %1642 = vmatprep.subr.bf16.mxu0 0
  %1643 = vmatpush2.bf16.msra.mxu0 %v1320
  %1644 = vmatprep.subr.bf16.mxu0 0
  %1645 = vmatpush2.bf16.msra.mxu0 %v1319
  %1646 = vmatprep.subr.bf16.mxu0 0
  %1647 = vmatpush2.bf16.msra.mxu0 %v1318
  %1648 = vmatprep.mubr.bf16.mxu0 %v818
  %1649 = vmatmul.mubr.bf16.gmra.mxu0 %v800
  %v1650 = vpop.f32.mrf.mxu0
  %v1651 = vadd.f32 %v1554, %v1650
  %v1652 = vpop.f32.mrf.mxu0
  %v1653 = vpop.f32.mrf.mxu0
  %v1654 = vadd.f32 %v1557, %v1653
  %v1655 = vpop.f32.mrf.mxu0
  %1656 = vmatprep.mubr.bf16.mxu0 %v819
  %1657 = vmatmul.mubr.bf16.gmra.mxu0 %v801
  %v1658 = vpop.f32.mrf.mxu0
  %v1659 = vadd.f32 %v1562, %v1658
  %v1660 = vpop.f32.mrf.mxu0
  %v1661 = vpop.f32.mrf.mxu0
  %v1662 = vadd.f32 %v1565, %v1661
  %v1663 = vpop.f32.mrf.mxu0
  %1664 = vmatprep.mubr.bf16.mxu0 %v820
  %1665 = vmatmul.mubr.bf16.gmra.mxu0 %v802
  %v1666 = vpop.f32.mrf.mxu0
  %v1667 = vadd.f32 %v1570, %v1666
  %v1668 = vpop.f32.mrf.mxu0
  %v1669 = vpop.f32.mrf.mxu0
  %v1670 = vadd.f32 %v1573, %v1669
  %v1671 = vpop.f32.mrf.mxu0
  %1672 = vmatprep.mubr.bf16.mxu0 %v821
  %1673 = vmatmul.mubr.bf16.gmra.mxu0 %v803
  %v1674 = vpop.f32.mrf.mxu0
  %v1675 = vadd.f32 %v1578, %v1674
  %v1676 = vpop.f32.mrf.mxu0
  %v1677 = vpop.f32.mrf.mxu0
  %v1678 = vadd.f32 %v1581, %v1677
  %v1679 = vpop.f32.mrf.mxu0
  %1680 = vmatprep.mubr.bf16.mxu0 %v822
  %1681 = vmatmul.mubr.bf16.gmra.mxu0 %v804
  %v1682 = vpop.f32.mrf.mxu0
  %v1683 = vadd.f32 %v1586, %v1682
  %v1684 = vpop.f32.mrf.mxu0
  %v1685 = vpop.f32.mrf.mxu0
  %v1686 = vadd.f32 %v1589, %v1685
  %v1687 = vpop.f32.mrf.mxu0
  %1688 = vmatprep.mubr.bf16.mxu0 %v823
  %1689 = vmatmul.mubr.bf16.gmra.mxu0 %v805
  %v1690 = vpop.f32.mrf.mxu0
  %v1691 = vadd.f32 %v1594, %v1690
  %v1692 = vpop.f32.mrf.mxu0
  %v1693 = vpop.f32.mrf.mxu0
  %v1694 = vadd.f32 %v1597, %v1693
  %v1695 = vpop.f32.mrf.mxu0
  %1696 = vmatprep.mubr.bf16.mxu0 %v824
  %1697 = vmatmul.mubr.bf16.gmra.mxu0 %v806
  %v1698 = vpop.f32.mrf.mxu0
  %v1699 = vadd.f32 %v1602, %v1698
  %v1700 = vpop.f32.mrf.mxu0
  %v1701 = vpop.f32.mrf.mxu0
  %v1702 = vadd.f32 %v1605, %v1701
  %v1703 = vpop.f32.mrf.mxu0
  %1704 = vmatprep.mubr.bf16.mxu0 %v825
  %1705 = vmatmul.mubr.bf16.gmra.mxu0 %v807
  %v1706 = vpop.f32.mrf.mxu0
  %v1707 = vadd.f32 %v1610, %v1706
  %v1708 = vpop.f32.mrf.mxu0
  %v1709 = vpop.f32.mrf.mxu0
  %v1710 = vadd.f32 %v1613, %v1709
  %v1711 = vpop.f32.mrf.mxu0
  %1712 = vdwg.mxu0
  %1713 = vmatprep.subr.bf16.mxu0 0
  %1714 = vmatpush1.bf16.msra.mxu0 %v1333
  %1715 = vmatprep.subr.bf16.mxu0 0
  %1716 = vmatpush1.bf16.msra.mxu0 %v1332
  %1717 = vmatprep.subr.bf16.mxu0 0
  %1718 = vmatpush1.bf16.msra.mxu0 %v1331
  %1719 = vmatprep.subr.bf16.mxu0 0
  %1720 = vmatpush1.bf16.msra.mxu0 %v1330
  %1721 = vmatprep.subr.bf16.mxu0 0
  %1722 = vmatpush1.bf16.msra.mxu0 %v1329
  %1723 = vmatprep.subr.bf16.mxu0 0
  %1724 = vmatpush1.bf16.msra.mxu0 %v1328
  %1725 = vmatprep.subr.bf16.mxu0 0
  %1726 = vmatpush1.bf16.msra.mxu0 %v1327
  %1727 = vmatprep.subr.bf16.mxu0 0
  %1728 = vmatpush1.bf16.msra.mxu0 %v1326
  %1729 = vmatprep.subr.bf16.mxu0 0
  %1730 = vmatpush2.bf16.msra.mxu0 %v1341
  %1731 = vmatprep.subr.bf16.mxu0 0
  %1732 = vmatpush2.bf16.msra.mxu0 %v1340
  %1733 = vmatprep.subr.bf16.mxu0 0
  %1734 = vmatpush2.bf16.msra.mxu0 %v1339
  %1735 = vmatprep.subr.bf16.mxu0 0
  %1736 = vmatpush2.bf16.msra.mxu0 %v1338
  %1737 = vmatprep.subr.bf16.mxu0 0
  %1738 = vmatpush2.bf16.msra.mxu0 %v1337
  %1739 = vmatprep.subr.bf16.mxu0 0
  %1740 = vmatpush2.bf16.msra.mxu0 %v1336
  %1741 = vmatprep.subr.bf16.mxu0 0
  %1742 = vmatpush2.bf16.msra.mxu0 %v1335
  %1743 = vmatprep.subr.bf16.mxu0 0
  %1744 = vmatpush2.bf16.msra.mxu0 %v1334
  %1745 = vmatprep.mubr.bf16.mxu0 %v736
  %1746 = vmatmul.mubr.bf16.gmra.mxu0 %v705
  %v1747 = vpop.f32.mrf.mxu0
  %v1748 = vadd.f32 %v1651, %v1747
  %v1749 = vpop.f32.mrf.mxu0
  %v1750 = vpop.f32.mrf.mxu0
  %v1751 = vadd.f32 %v1654, %v1750
  %v1752 = vpop.f32.mrf.mxu0
  %1753 = vmatprep.mubr.bf16.mxu0 %v737
  %1754 = vmatmul.mubr.bf16.gmra.mxu0 %v706
  %v1755 = vpop.f32.mrf.mxu0
  %v1756 = vadd.f32 %v1659, %v1755
  %v1757 = vpop.f32.mrf.mxu0
  %v1758 = vpop.f32.mrf.mxu0
  %v1759 = vadd.f32 %v1662, %v1758
  %v1760 = vpop.f32.mrf.mxu0
  %1761 = vmatprep.mubr.bf16.mxu0 %v738
  %1762 = vmatmul.mubr.bf16.gmra.mxu0 %v707
  %v1763 = vpop.f32.mrf.mxu0
  %v1764 = vadd.f32 %v1667, %v1763
  %v1765 = vpop.f32.mrf.mxu0
  %v1766 = vpop.f32.mrf.mxu0
  %v1767 = vadd.f32 %v1670, %v1766
  %v1768 = vpop.f32.mrf.mxu0
  %1769 = vmatprep.mubr.bf16.mxu0 %v838
  %1770 = vmatmul.mubr.bf16.gmra.mxu0 %v834
  %v1771 = vpop.f32.mrf.mxu0
  %v1772 = vadd.f32 %v1675, %v1771
  %v1773 = vpop.f32.mrf.mxu0
  %v1774 = vpop.f32.mrf.mxu0
  %v1775 = vadd.f32 %v1678, %v1774
  %v1776 = vpop.f32.mrf.mxu0
  %1777 = vmatprep.mubr.bf16.mxu0 %v740
  %1778 = vmatmul.mubr.bf16.gmra.mxu0 %v709
  %v1779 = vpop.f32.mrf.mxu0
  %v1780 = vadd.f32 %v1683, %v1779
  %v1781 = vpop.f32.mrf.mxu0
  %v1782 = vpop.f32.mrf.mxu0
  %v1783 = vadd.f32 %v1686, %v1782
  %v1784 = vpop.f32.mrf.mxu0
  %1785 = vmatprep.mubr.bf16.mxu0 %v741
  %1786 = vmatmul.mubr.bf16.gmra.mxu0 %v710
  %v1787 = vpop.f32.mrf.mxu0
  %v1788 = vadd.f32 %v1691, %v1787
  %v1789 = vpop.f32.mrf.mxu0
  %v1790 = vpop.f32.mrf.mxu0
  %v1791 = vadd.f32 %v1694, %v1790
  %v1792 = vpop.f32.mrf.mxu0
  %1793 = vmatprep.mubr.bf16.mxu0 %v742
  %1794 = vmatmul.mubr.bf16.gmra.mxu0 %v711
  %v1795 = vpop.f32.mrf.mxu0
  %v1796 = vadd.f32 %v1699, %v1795
  %v1797 = vpop.f32.mrf.mxu0
  %v1798 = vpop.f32.mrf.mxu0
  %v1799 = vadd.f32 %v1702, %v1798
  %v1800 = vpop.f32.mrf.mxu0
  %1801 = vmatprep.mubr.bf16.mxu0 %v839
  %1802 = vmatmul.mubr.bf16.gmra.mxu0 %v835
  %v1803 = vpop.f32.mrf.mxu0
  %v1804 = vadd.f32 %v1707, %v1803
  %v1805 = vpop.f32.mrf.mxu0
  %v1806 = vpop.f32.mrf.mxu0
  %v1807 = vadd.f32 %v1710, %v1806
  %v1808 = vpop.f32.mrf.mxu0
  %1809 = vdwg.mxu0
  %1810 = vmatprep.subr.bf16.mxu0 0
  %1811 = vmatpush1.bf16.msra.mxu0 %v1349
  %1812 = vmatprep.subr.bf16.mxu0 0
  %1813 = vmatpush1.bf16.msra.mxu0 %v1348
  %1814 = vmatprep.subr.bf16.mxu0 0
  %1815 = vmatpush1.bf16.msra.mxu0 %v1347
  %1816 = vmatprep.subr.bf16.mxu0 0
  %1817 = vmatpush1.bf16.msra.mxu0 %v1346
  %1818 = vmatprep.subr.bf16.mxu0 0
  %1819 = vmatpush1.bf16.msra.mxu0 %v1345
  %1820 = vmatprep.subr.bf16.mxu0 0
  %1821 = vmatpush1.bf16.msra.mxu0 %v1344
  %1822 = vmatprep.subr.bf16.mxu0 0
  %1823 = vmatpush1.bf16.msra.mxu0 %v1343
  %1824 = vmatprep.subr.bf16.mxu0 0
  %1825 = vmatpush1.bf16.msra.mxu0 %v1342
  %1826 = vmatprep.subr.bf16.mxu0 0
  %1827 = vmatpush2.bf16.msra.mxu0 0
  %1828 = vmatprep.subr.bf16.mxu0 0
  %1829 = vmatpush2.bf16.msra.mxu0 0
  %1830 = vmatprep.subr.bf16.mxu0 0
  %1831 = vmatpush2.bf16.msra.mxu0 0
  %1832 = vmatprep.subr.bf16.mxu0 0
  %1833 = vmatpush2.bf16.msra.mxu0 0
  %1834 = vmatprep.subr.bf16.mxu0 0
  %1835 = vmatpush2.bf16.msra.mxu0 0
  %1836 = vmatprep.subr.bf16.mxu0 0
  %1837 = vmatpush2.bf16.msra.mxu0 0
  %1838 = vmatprep.subr.bf16.mxu0 0
  %1839 = vmatpush2.bf16.msra.mxu0 0
  %1840 = vmatprep.subr.bf16.mxu0 0
  %1841 = vmatpush2.bf16.msra.mxu0 0
  %1842 = vmatprep.mubr.bf16.mxu0 0
  %1843 = vmatmul.mubr.bf16.gmra.mxu0 %v767
  %v1844 = vpop.f32.mrf.mxu0
  %v1845 = vadd.f32 %v1748, %v1844
  %v1846 = vpop.f32.mrf.mxu0
  %v1847 = vpop.f32.mrf.mxu0
  %v1848 = vadd.f32 %v1751, %v1847
  %v1849 = vpop.f32.mrf.mxu0
  %1850 = vmatprep.mubr.bf16.mxu0 0
  %1851 = vmatmul.mubr.bf16.gmra.mxu0 %v768
  %v1852 = vpop.f32.mrf.mxu0
  %v1853 = vadd.f32 %v1756, %v1852
  %v1854 = vpop.f32.mrf.mxu0
  %v1855 = vpop.f32.mrf.mxu0
  %v1856 = vadd.f32 %v1759, %v1855
  %v1857 = vpop.f32.mrf.mxu0
  %1858 = vmatprep.mubr.bf16.mxu0 0
  %1859 = vmatmul.mubr.bf16.gmra.mxu0 %v769
  %v1860 = vpop.f32.mrf.mxu0
  %v1861 = vadd.f32 %v1764, %v1860
  %v1862 = vpop.f32.mrf.mxu0
  %v1863 = vpop.f32.mrf.mxu0
  %v1864 = vadd.f32 %v1767, %v1863
  %v1865 = vpop.f32.mrf.mxu0
  %1866 = vmatprep.mubr.bf16.mxu0 0
  %1867 = vmatmul.mubr.bf16.gmra.mxu0 %v842
  %v1868 = vpop.f32.mrf.mxu0
  %v1869 = vadd.f32 %v1772, %v1868
  %v1870 = vpop.f32.mrf.mxu0
  %v1871 = vpop.f32.mrf.mxu0
  %v1872 = vadd.f32 %v1775, %v1871
  %v1873 = vpop.f32.mrf.mxu0
  %1874 = vmatprep.mubr.bf16.mxu0 0
  %1875 = vmatmul.mubr.bf16.gmra.mxu0 %v771
  %v1876 = vpop.f32.mrf.mxu0
  %v1877 = vadd.f32 %v1780, %v1876
  %v1878 = vpop.f32.mrf.mxu0
  %v1879 = vpop.f32.mrf.mxu0
  %v1880 = vadd.f32 %v1783, %v1879
  %v1881 = vpop.f32.mrf.mxu0
  %1882 = vmatprep.mubr.bf16.mxu0 0
  %1883 = vmatmul.mubr.bf16.gmra.mxu0 %v772
  %v1884 = vpop.f32.mrf.mxu0
  %v1885 = vadd.f32 %v1788, %v1884
  %v1886 = vpop.f32.mrf.mxu0
  %v1887 = vpop.f32.mrf.mxu0
  %v1888 = vadd.f32 %v1791, %v1887
  %v1889 = vpop.f32.mrf.mxu0
  %1890 = vmatprep.mubr.bf16.mxu0 0
  %1891 = vmatmul.mubr.bf16.gmra.mxu0 %v773
  %v1892 = vpop.f32.mrf.mxu0
  %v1893 = vadd.f32 %v1796, %v1892
  %v1894 = vpop.f32.mrf.mxu0
  %v1895 = vpop.f32.mrf.mxu0
  %v1896 = vadd.f32 %v1799, %v1895
  %v1897 = vpop.f32.mrf.mxu0
  %1898 = vmatprep.mubr.bf16.mxu0 0
  %1899 = vmatmul.mubr.bf16.gmra.mxu0 %v843
  %v1900 = vpop.f32.mrf.mxu0
  %v1901 = vadd.f32 %v1804, %v1900
  %v1902 = vpop.f32.mrf.mxu0
  %v1903 = vpop.f32.mrf.mxu0
  %v1904 = vadd.f32 %v1807, %v1903
  %v1905 = vpop.f32.mrf.mxu0
  %1906 = vdwg.mxu0
  %v1907 = vadd.f32 %v1845, %v1848
  %v1908 = vadd.f32 %v1907, %v1853
  %v1909 = vadd.f32 %v1908, %v1856
  %v1910 = vadd.f32 %v1909, %v1861
  %v1911 = vadd.f32 %v1910, %v1864
  %v1912 = vadd.f32 %v1911, %v1869
  %v1913 = vadd.f32 %v1912, %v1872
  %v1914 = vadd.f32 %v1913, %v1877
  %v1915 = vadd.f32 %v1914, %v1880
  %v1916 = vadd.f32 %v1915, %v1885
  %v1917 = vadd.f32 %v1916, %v1888
  %v1918 = vadd.f32 %v1917, %v1893
  %v1919 = vadd.f32 %v1918, %v1896
  %v1920 = vadd.f32 %v1919, %v1901
  %v1921 = vadd.f32 %v1920, %v1904
  %v1922 = vrot.slane %v1921, 4
  %v1923 = vadd.f32 %v1921, %v1922
  %v1924 = vrot.slane %v1923, 2
  %v1925 = vadd.f32 %v1923, %v1924
  %v1926 = vrot.slane %v1925, 1
  %v1927 = vadd.f32 %v1925, %v1926
  %1928 = vst [vmem:[%s5] sm:$0x1] %v1927
  %v1929 = vmul.f32 %v1845, %v1845
  %v1930 = vmul.f32 %v1848, %v1848
  %v1931 = vmul.f32 %v1853, %v1853
  %v1932 = vmul.f32 %v1856, %v1856
  %v1933 = vmul.f32 %v1861, %v1861
  %v1934 = vmul.f32 %v1864, %v1864
  %v1935 = vmul.f32 %v1869, %v1869
  %v1936 = vmul.f32 %v1872, %v1872
  %v1937 = vmul.f32 %v1877, %v1877
  %v1938 = vmul.f32 %v1880, %v1880
  %v1939 = vmul.f32 %v1885, %v1885
  %v1940 = vmul.f32 %v1888, %v1888
  %v1941 = vmul.f32 %v1893, %v1893
  %v1942 = vmul.f32 %v1896, %v1896
  %v1943 = vmul.f32 %v1901, %v1901
  %v1944 = vmul.f32 %v1904, %v1904
  %v1945 = vadd.f32 %v1929, %v1930
  %v1946 = vadd.f32 %v1945, %v1931
  %v1947 = vadd.f32 %v1946, %v1932
  %v1948 = vadd.f32 %v1947, %v1933
  %v1949 = vadd.f32 %v1948, %v1934
  %v1950 = vadd.f32 %v1949, %v1935
  %v1951 = vadd.f32 %v1950, %v1936
  %v1952 = vadd.f32 %v1951, %v1937
  %v1953 = vadd.f32 %v1952, %v1938
  %v1954 = vadd.f32 %v1953, %v1939
  %v1955 = vadd.f32 %v1954, %v1940
  %v1956 = vadd.f32 %v1955, %v1941
  %v1957 = vadd.f32 %v1956, %v1942
  %v1958 = vadd.f32 %v1957, %v1943
  %v1959 = vadd.f32 %v1958, %v1944
  %v1960 = vrot.slane %v1959, 4
  %v1961 = vadd.f32 %v1959, %v1960
  %v1962 = vrot.slane %v1961, 2
  %v1963 = vadd.f32 %v1961, %v1962
  %v1964 = vrot.slane %v1963, 1
  %v1965 = vadd.f32 %v1963, %v1964
  %1966 = vst [vmem:[%s6] sm:$0x1] %v1965
  %v1967 = vpack.c.bf16 %v1845, %v1845
  %v1968 = vpack.c.bf16 %v1848, %v1848
  %v1969 = vpack.c.bf16 %v1853, %v1853
  %v1970 = vpack.c.bf16 %v1856, %v1856
  %v1971 = vpack.c.bf16 %v1861, %v1861
  %v1972 = vpack.c.bf16 %v1864, %v1864
  %v1973 = vpack.c.bf16 %v1869, %v1869
  %v1974 = vpack.c.bf16 %v1872, %v1872
  %v1975 = vpack.c.bf16 %v1877, %v1877
  %v1976 = vpack.c.bf16 %v1880, %v1880
  %v1977 = vpack.c.bf16 %v1885, %v1885
  %v1978 = vpack.c.bf16 %v1888, %v1888
  %v1979 = vpack.c.bf16 %v1893, %v1893
  %v1980 = vpack.c.bf16 %v1896, %v1896
  %v1981 = vpack.c.bf16 %v1901, %v1901
  %v1982 = vpack.c.bf16 %v1904, %v1904
  %1983 = vst [vmem:[%s4] sm:$0xf] %v1967
  %1984 = vst [vmem:[%s4 + $0x4] sm:$0xf] %v1968
  %1985 = vst [vmem:[%s4 + $0x8] sm:$0xf] %v1969
  %1986 = vst [vmem:[%s4 + $0xc] sm:$0xf] %v1970
  %1987 = vst [vmem:[%s4 + $0x10] sm:$0xf] %v1971
  %1988 = vst [vmem:[%s4 + $0x14] sm:$0xf] %v1972
  %1989 = vst [vmem:[%s4 + $0x18] sm:$0xf] %v1973
  %1990 = vst [vmem:[%s4 + $0x1c] sm:$0xf] %v1974
  %1991 = vst [vmem:[%s4 + $0x20] sm:$0xf] %v1975
  %1992 = vst [vmem:[%s4 + $0x24] sm:$0xf] %v1976
  %1993 = vst [vmem:[%s4 + $0x28] sm:$0xf] %v1977
  %1994 = vst [vmem:[%s4 + $0x2c] sm:$0xf] %v1978
  %1995 = vst [vmem:[%s4 + $0x30] sm:$0xf] %v1979
  %1996 = vst [vmem:[%s4 + $0x34] sm:$0xf] %v1980
  %1997 = vst [vmem:[%s4 + $0x38] sm:$0xf] %v1981
  %1998 = vst [vmem:[%s4 + $0x3c] sm:$0xf] %v1982
  // Predicated region
  $region18: #{bottleneck_forward.5} parent=0 // pred_check
    _
  $region19: #{bottleneck_forward.5} parent=0 // pred_check_branch
    %2000 = sbr.rel (0) target = $region21
  $region20: #{bottleneck_forward.5} parent=0 // pred_region
    _
  $region21: #{bottleneck_forward.5} parent=0 // pred_fallthru
    _
  // Predicated region
  $region22: #{bottleneck_forward.5} parent=0 // pred_check
    _
  $region23: #{bottleneck_forward.5} parent=0 // pred_check_branch
    %2002 = sbr.rel (0) target = $region25
  $region24: #{bottleneck_forward.5} parent=0 // pred_region
    _
  $region25: #{bottleneck_forward.5} parent=0 // pred_fallthru
    _
  // Predicated region
  $region26: #{bottleneck_forward.5} parent=0 // pred_check
    _
  $region27: #{bottleneck_forward.5} parent=0 // pred_check_branch
    %2004 = sbr.rel (0) target = $region29
  $region28: #{bottleneck_forward.5} parent=0 // pred_region
    _
  $region29: #{bottleneck_forward.5} parent=0 // pred_fallthru
    _
  // Predicated region
  $region30: #{bottleneck_forward.5} parent=0 // pred_check
    _
  $region31: #{bottleneck_forward.5} parent=0 // pred_check_branch
    %2006 = sbr.rel (0) target = $region33
  $region32: #{bottleneck_forward.5} parent=0 // pred_region
    _
  $region33: #{bottleneck_forward.5} parent=0 // pred_fallthru
    _
  // Predicated region
  $region34: #{bottleneck_forward.5} parent=0 // pred_check
    _
  $region35: #{bottleneck_forward.5} parent=0 // pred_check_branch
    %2008 = sbr.rel (0) target = $region37
  $region36: #{bottleneck_forward.5} parent=0 // pred_region
    _
  $region37: #{bottleneck_forward.5} parent=0 // pred_fallthru
    _
  // Predicated region
  $region38: #{bottleneck_forward.5} parent=0 // pred_check
    _
  $region39: #{bottleneck_forward.5} parent=0 // pred_check_branch
    %2010 = sbr.rel (0) target = $region41
  $region40: #{bottleneck_forward.5} parent=0 // pred_region
    _
  $region41: #{bottleneck_forward.5} parent=0 // pred_fallthru
    _

</llo_original>
